<compile_context>
chip_gen: v7x
topology: tpu7x:2x2x1
jax: 0.10.0
libtpu: 0.0.40
codegen_flags: <defaults>
</compile_context>

<pallas_src>
import functools

import jax
import jax.numpy as jnp
from jax.experimental import pallas as pl
from jax.experimental.pallas import tpu as pltpu


# ----------------------------------------------------------------------------
# Fused kernel.  One grid step = one batch tile of TB rows:
#   conv1 (4 parity-phase GEMMs) -> conv2 (in-kernel im2col, ONE GEMM) ->
#   encoder Linear as accumulation over spatial blocks -> L2 normalize ->
#   DQN MLP.  Everything stays in VMEM / vregs.
# ----------------------------------------------------------------------------
def _gen_dqn_kernel(patches_ref, w1_ref, b1_ref, w2_ref, b2_ref,
                    wout_ref, bout_ref, wd1_ref, bd1_ref, wd2_ref, bd2_ref,
                    out_ref, planes_ref, im2col_ref,
                    *, TB, H2, W2, C1, C2, EMB):
    WB = W2 * TB
    MT = H2 * W2 * TB

    # Zero ONLY the conv2 SAME-padding regions of the conv1 phase planes
    # (plane row 0 = top pad read by the di=0 tap, column block [0:TB) = left
    # pad read by the dj=0 tap).  Re-done every grid step because scratch is
    # per-core and persistent; everything else is fully overwritten below.
    for pr in range(2):
        for pc in range(2):
            planes_ref[pr, pc, 0, :, :] = jnp.zeros(((W2 + 1) * TB, C1),
                                                    jnp.float32)
            planes_ref[pr, pc, :, 0:TB, :] = jnp.zeros((H2 + 1, TB, C1),
                                                       jnp.float32)

    # ---- conv1 (k3 s2 p1) + ReLU: one GEMM per output-parity phase ----------
    w1 = w1_ref[...]                       # (Kp, C1) bf16
    b1 = b1_ref[...]                       # (1, C1)  f32
    for pr in range(2):
        for pc in range(2):
            p = pr * 2 + pc
            h1 = jnp.dot(patches_ref[p], w1,
                         preferred_element_type=jnp.float32) + b1
            h1 = jnp.maximum(h1, 0.0)                       # (MT, C1) f32
            # One block store per phase; rows ordered (row a, col a', batch b).
            planes_ref[pr, pc, 1:1 + H2, TB:(W2 + 1) * TB, :] = \
                h1.reshape(H2, WB, C1)

    # ---- conv2 (k3 s2 p1): build im2col with 9 block copies ------------------
    # tap offset d -> (parity plane, start offset inside the padded plane):
    #   d=0 reads conv1 index 2i-1 (odd plane, shifted through the zero pad),
    #   d=1 -> even plane, d=2 -> odd plane unshifted.
    tap = {0: (1, 0), 1: (0, 1), 2: (1, 1)}
    for di in range(3):
        pr, rs = tap[di]
        for dj in range(3):
            pc, cs = tap[dj]
            t = di * 3 + dj
            x = planes_ref[pr, pc, rs:rs + H2, cs * TB:(cs + W2) * TB, :]
            im2col_ref[:, t * C1:(t + 1) * C1] = x.reshape(MT, C1)

    # ---- conv2 as ONE (MT x 9*C1) @ (9*C1 x C2) MXU matmul + bias + ReLU -----
    h2 = jnp.dot(im2col_ref[...].astype(jnp.bfloat16), w2_ref[...],
                 preferred_element_type=jnp.float32) + b2_ref[...]
    h2 = jnp.maximum(h2, 0.0)              # (MT, C2) f32, rows ordered (s, b)

    # ---- encoder last layer (Sequential(ReLU, Linear); the extra ReLU is
    #      idempotent after the conv ReLU) as an accumulation over spatial
    #      blocks: no flatten transpose, no h2/zflat scratch, no masked stores.
    e = jnp.zeros((TB, EMB), jnp.float32)
    for s in range(H2 * W2):
        blk = h2[s * TB:(s + 1) * TB, :].astype(jnp.bfloat16)   # (TB, C2)
        e = e + jnp.dot(blk, wout_ref[s], preferred_element_type=jnp.float32)
    e = e + bout_ref[...]

    # ---- row-wise L2 normalize (rsqrt on EUP); == x / max(||x||, 1e-12) ------
    nrm2 = jnp.sum(e * e, axis=1, keepdims=True)
    e = e * jax.lax.rsqrt(jnp.maximum(nrm2, 1e-24))

    # ---- DQN MLP: Linear + ReLU, Linear (output lane-padded to 128k) ---------
    h = jnp.dot(e.astype(jnp.bfloat16), wd1_ref[...],
                preferred_element_type=jnp.float32) + bd1_ref[...]
    h = jnp.maximum(h, 0.0)
    out_ref[...] = jnp.dot(h.astype(jnp.bfloat16), wd2_ref[...],
                           preferred_element_type=jnp.float32) + bd2_ref[...]


# ----------------------------------------------------------------------------
# Glue: conv1 im2col grouped by output parity phase and by batch tile.
# Rows within a tile ordered (row a, col a', batch b); columns (di, dj, cin).
# Emitted in bf16 to halve the patches HBM->VMEM DMA.
# ----------------------------------------------------------------------------
def _phase_patches(x_nhwc, H2, W2, tb, kp):
    Bp, H, W, C = x_nhwc.shape
    nbt = Bp // tb
    xp = jnp.pad(x_nhwc, ((0, 0), (1, 1), (1, 1), (0, 0)))
    phases = []
    for pr in range(2):
        for pc in range(2):
            taps = []
            for di in range(3):
                for dj in range(3):
                    r0 = 2 * pr + di
                    c0 = 2 * pc + dj
                    taps.append(xp[:, r0:r0 + 4 * (H2 - 1) + 1:4,
                                      c0:c0 + 4 * (W2 - 1) + 1:4, :])
            ph = jnp.stack(taps, axis=-2).reshape(Bp, H2, W2, 9 * C)
            ph = ph.reshape(nbt, tb, H2, W2, 9 * C)
            ph = jnp.transpose(ph, (0, 2, 3, 1, 4))       # (nbt, H2, W2, tb, 9C)
            phases.append(ph.reshape(nbt, H2 * W2 * tb, 9 * C))
    p = jnp.stack(phases, axis=1)                         # (nbt, 4, MT, 9C)
    p = jnp.pad(p, ((0, 0), (0, 0), (0, 0), (0, kp - 9 * C)))
    return p.astype(jnp.bfloat16)


# ----------------------------------------------------------------------------
# Parameters (deterministic, synthetic), built directly in kernel layouts.
# ----------------------------------------------------------------------------
def init_params(key, in_ch, atoms, H, W, *, emb=64, hidden=128, c1=16, c2=32):
    H2, W2 = H // 4, W // 4
    flat = H2 * W2 * c2
    out_dim = 4 * atoms                                   # GenDQN(..., 4*atoms)
    nout = ((out_dim + 127) // 128) * 128                 # lane-pad (any atoms)
    ks = jax.random.split(key, 10)

    def lin(kw, kb, fi, fo):
        s = 1.0 / jnp.sqrt(jnp.float32(fi))
        w = jax.random.uniform(kw, (fi, fo), jnp.float32, -s, s)
        b = jax.random.uniform(kb, (1, fo), jnp.float32, -s, s)
        return w, b

    p = {}
    k1 = 9 * in_ch
    k1p = ((k1 + 15) // 16) * 16                          # K align (bf16 tiles)
    w1, p["b1"] = lin(ks[0], ks[1], k1, c1)
    p["w1"] = jnp.pad(w1, ((0, k1p - k1), (0, 0))).astype(jnp.bfloat16)
    w2, p["b2"] = lin(ks[2], ks[3], 9 * c1, c2)
    p["w2"] = w2.astype(jnp.bfloat16)                     # (144, 32), K=(di,dj,c1)
    wout, p["bout"] = lin(ks[4], ks[5], flat, emb)
    p["wout"] = wout.reshape(H2 * W2, c2, emb).astype(jnp.bfloat16)
    wd1, p["bd1"] = lin(ks[6], ks[7], emb, hidden)
    p["wd1"] = wd1.astype(jnp.bfloat16)
    wd2, bd2 = lin(ks[8], ks[9], hidden, out_dim)
    p["wd2"] = jnp.pad(wd2, ((0, 0), (0, nout - out_dim))).astype(jnp.bfloat16)
    p["bd2"] = jnp.pad(bd2, ((0, 0), (0, nout - out_dim)))
    return p


# ----------------------------------------------------------------------------
# Forward pass (mirrors GenDQNHER.forward) — one pallas_call, batch-tile grid.
# ----------------------------------------------------------------------------
def gen_dqn_her_forward(params, obs_nchw, action_dim, atoms, *, tb=8):
    obs = obs_nchw.astype(jnp.float32)
    B, C, H, W = obs.shape
    assert H % 4 == 0 and W % 4 == 0, (H, W)
    assert tb % 8 == 0, tb
    H2, W2 = H // 4, W // 4
    C1, C2 = 16, 32
    EMB = params["wout"].shape[-1]
    NOUT = params["wd2"].shape[1]
    Kp = params["w1"].shape[0]
    MT = H2 * W2 * tb

    nbt = (B + tb - 1) // tb
    Bp = nbt * tb
    x = jnp.transpose(obs, (0, 2, 3, 1))                  # NCHW -> NHWC
    if Bp != B:
        x = jnp.pad(x, ((0, Bp - B), (0, 0), (0, 0), (0, 0)))
    patches = _phase_patches(x, H2, W2, tb, Kp)           # (nbt, 4, MT, Kp) bf16

    kern = functools.partial(_gen_dqn_kernel, TB=tb, H2=H2, W2=W2,
                             C1=C1, C2=C2, EMB=EMB)

    def _const_map(n):
        return lambda t: (0,) * n

    weight_keys = ("w1", "b1", "w2", "b2", "wout", "bout",
                   "wd1", "bd1", "wd2", "bd2")
    in_specs = [pl.BlockSpec((None, 4, MT, Kp), lambda t: (t, 0, 0, 0))]
    in_specs += [pl.BlockSpec(params[k].shape, _const_map(params[k].ndim))
                 for k in weight_keys]

    out = pl.pallas_call(
        kern,
        out_shape=jax.ShapeDtypeStruct((Bp, NOUT), jnp.float32),
        grid_spec=pltpu.PrefetchScalarGridSpec(
            num_scalar_prefetch=0,
            grid=(nbt,),
            in_specs=in_specs,
            out_specs=pl.BlockSpec((tb, NOUT), lambda t: (t, 0)),
            scratch_shapes=[
                # conv1 output, parity-phase split, zero-padded (SAME padding)
                pltpu.VMEM((2, 2, H2 + 1, (W2 + 1) * tb, C1), jnp.float32),
                # conv2 im2col: rows (i2, j2, b), cols (di, dj, c1)
                pltpu.VMEM((MT, 9 * C1), jnp.float32),
            ]),
        compiler_params=pltpu.CompilerParams(
            dimension_semantics=("parallel",),
            # plenty for this tile size; raise with TB (keep <= ~48 MiB on v7x)
            vmem_limit_bytes=32 * 1024 * 1024),
    )(patches, *(params[k] for k in weight_keys))

    logits = out[:B, :4 * atoms]
    if atoms == 1:
        logits = logits.reshape(-1, action_dim)
    else:
        logits = logits.reshape(-1, action_dim, atoms)
    state = None
    return logits, state


# ----------------------------------------------------------------------------
# Pure-JAX reference (same math, same bf16 operand casts, standard ops).
# ----------------------------------------------------------------------------
def reference_forward(params, obs_nchw, action_dim, atoms):
    obs = obs_nchw.astype(jnp.float32)
    B, C, H, W = obs.shape
    x = jnp.transpose(obs, (0, 2, 3, 1)).astype(jnp.bfloat16)
    w1 = params["w1"][:9 * C, :].reshape(3, 3, C, 16)
    y = jax.lax.conv_general_dilated(x, w1, (2, 2), ((1, 1), (1, 1)),
                                     dimension_numbers=("NHWC", "HWIO", "NHWC"),
                                     preferred_element_type=jnp.float32)
    y = jnp.maximum(y + params["b1"][0], 0.0).astype(jnp.bfloat16)
    w2 = params["w2"].reshape(3, 3, 16, 32)
    y = jax.lax.conv_general_dilated(y, w2, (2, 2), ((1, 1), (1, 1)),
                                     dimension_numbers=("NHWC", "HWIO", "NHWC"),
                                     preferred_element_type=jnp.float32)
    y = jnp.maximum(y + params["b2"][0], 0.0)
    z = y.reshape(B, -1)                                  # NHWC flatten
    wout = params["wout"].reshape(-1, params["wout"].shape[-1])
    e = jnp.dot(jnp.maximum(z, 0.0).astype(jnp.bfloat16), wout,
                preferred_element_type=jnp.float32) + params["bout"][0]
    e = e / jnp.maximum(jnp.linalg.norm(e, axis=1, keepdims=True), 1e-12)
    h = jnp.maximum(
        jnp.dot(e.astype(jnp.bfloat16), params["wd1"],
                preferred_element_type=jnp.float32) + params["bd1"][0], 0.0)
    logits = (jnp.dot(h.astype(jnp.bfloat16), params["wd2"],
                      preferred_element_type=jnp.float32)
              + params["bd2"][0])[:, :4 * atoms]
    if atoms == 1:
        return logits.reshape(-1, action_dim)
    return logits.reshape(-1, action_dim, atoms)


if __name__ == "__main__":
    B, C, H, W = 2, 4, 16, 16
    action_dim, atoms = 4, 4

    key = jax.random.PRNGKey(0)
    k_obs, k_par = jax.random.split(key)
    obs = jax.random.normal(k_obs, (B, C, H, W), jnp.float32)   # NCHW like PyTorch
    params = init_params(k_par, C, atoms, H, W)

    fwd = jax.jit(lambda p, o: gen_dqn_her_forward(p, o, action_dim, atoms)[0])
    logits = jax.block_until_ready(fwd(params, obs))

    assert logits.shape == (B, action_dim, atoms), logits.shape
    assert logits.dtype == jnp.float32
    assert bool(jnp.all(jnp.isfinite(logits)))

    ref = reference_forward(params, obs, action_dim, atoms)
    err = float(jnp.max(jnp.abs(logits - ref)))
    # Both paths use identical bf16 MXU operands with f32 accumulation; only the
    # accumulation order differs, so 5e-3 still catches any layout/tap bug
    # (those produce O(0.1-1) errors) while tolerating bf16 rounding.
    assert err < 5e-3, f"mismatch vs reference: {err}"

    print("KERNEL_OK")
</pallas_src>

<mosaic_0001>
module attributes {stable_mosaic.version = 11 : i64} {
  func.func @_gen_dqn_kernel(%arg0: i32, %arg1: memref<1x4x128x48xbf16, #tpu.memory_space<vmem>>, %arg2: memref<48x16xbf16, #tpu.memory_space<vmem>>, %arg3: memref<1x16xf32, #tpu.memory_space<vmem>>, %arg4: memref<144x32xbf16, #tpu.memory_space<vmem>>, %arg5: memref<1x32xf32, #tpu.memory_space<vmem>>, %arg6: memref<16x32x64xbf16, #tpu.memory_space<vmem>>, %arg7: memref<1x64xf32, #tpu.memory_space<vmem>>, %arg8: memref<64x128xbf16, #tpu.memory_space<vmem>>, %arg9: memref<1x128xf32, #tpu.memory_space<vmem>>, %arg10: memref<128x128xbf16, #tpu.memory_space<vmem>>, %arg11: memref<1x128xf32, #tpu.memory_space<vmem>>, %arg12: memref<8x128xf32, #tpu.memory_space<vmem>>, %arg13: memref<2x2x5x40x16xf32, #tpu.memory_space<vmem>>, %arg14: memref<128x144xf32, #tpu.memory_space<vmem>>) attributes {dimension_semantics = [#tpu.dimension_semantics<parallel>], iteration_bounds = array<i64: 1>, scalar_prefetch = 0 : i64, scratch_operands = 2 : i64, tpu.core_type = #tpu.core_type<tc>, window_params = [{transform_indices = @transform_0, window_bounds = array<i64: 1, 4, 128, 48>}, {pipeline_mode = #tpu.pipeline_mode<synchronous>, transform_indices = @transform_1, window_bounds = array<i64: 48, 16>}, {pipeline_mode = #tpu.pipeline_mode<synchronous>, transform_indices = @transform_2, window_bounds = array<i64: 1, 16>}, {pipeline_mode = #tpu.pipeline_mode<synchronous>, transform_indices = @transform_3, window_bounds = array<i64: 144, 32>}, {pipeline_mode = #tpu.pipeline_mode<synchronous>, transform_indices = @transform_4, window_bounds = array<i64: 1, 32>}, {pipeline_mode = #tpu.pipeline_mode<synchronous>, transform_indices = @transform_5, window_bounds = array<i64: 16, 32, 64>}, {pipeline_mode = #tpu.pipeline_mode<synchronous>, transform_indices = @transform_6, window_bounds = array<i64: 1, 64>}, {pipeline_mode = #tpu.pipeline_mode<synchronous>, transform_indices = @transform_7, window_bounds = array<i64: 64, 128>}, {pipeline_mode = #tpu.pipeline_mode<synchronous>, transform_indices = @transform_8, window_bounds = array<i64: 1, 128>}, {pipeline_mode = #tpu.pipeline_mode<synchronous>, transform_indices = @transform_9, window_bounds = array<i64: 128, 128>}, {pipeline_mode = #tpu.pipeline_mode<synchronous>, transform_indices = @transform_10, window_bounds = array<i64: 1, 128>}, {transform_indices = @transform_11, window_bounds = array<i64: 8, 128>}]} {
    %cst = arith.constant 0.000000e+00 : f32
    %0 = vector.broadcast %cst : f32 to vector<40x16xf32>
    %c0 = arith.constant 0 : index
    %c0_0 = arith.constant 0 : index
    %c0_1 = arith.constant 0 : index
    %c0_2 = arith.constant 0 : index
    %c0_3 = arith.constant 0 : index
    %1 = vector.load %arg13[%c0, %c0_0, %c0_1, %c0_2, %c0_3] : memref<2x2x5x40x16xf32, #tpu.memory_space<vmem>>, vector<1x1x1x40x16xf32>
    %2 = vector.shape_cast %1 : vector<1x1x1x40x16xf32> to vector<40x16xf32>
    %3 = vector.shape_cast %0 : vector<40x16xf32> to vector<1x1x1x40x16xf32>
    tpu.vector_store %arg13[%c0, %c0_0, %c0_1, %c0_2, %c0_3], %3 {strides = array<i32>} : memref<2x2x5x40x16xf32, #tpu.memory_space<vmem>>, vector<1x1x1x40x16xf32>,
    %cst_4 = arith.constant 0.000000e+00 : f32
    %4 = vector.broadcast %cst_4 : f32 to vector<5x8x16xf32>
    %c0_5 = arith.constant 0 : index
    %c0_6 = arith.constant 0 : index
    %c0_7 = arith.constant 0 : index
    %c0_8 = arith.constant 0 : index
    %c0_9 = arith.constant 0 : index
    %5 = vector.load %arg13[%c0_5, %c0_6, %c0_7, %c0_8, %c0_9] : memref<2x2x5x40x16xf32, #tpu.memory_space<vmem>>, vector<1x1x5x8x16xf32>
    %6 = vector.shape_cast %5 : vector<1x1x5x8x16xf32> to vector<5x8x16xf32>
    %7 = vector.shape_cast %4 : vector<5x8x16xf32> to vector<1x1x5x8x16xf32>
    tpu.vector_store %arg13[%c0_5, %c0_6, %c0_7, %c0_8, %c0_9], %7 {strides = array<i32>} : memref<2x2x5x40x16xf32, #tpu.memory_space<vmem>>, vector<1x1x5x8x16xf32>,
    %cst_10 = arith.constant 0.000000e+00 : f32
    %8 = vector.broadcast %cst_10 : f32 to vector<40x16xf32>
    %c0_11 = arith.constant 0 : index
    %c1 = arith.constant 1 : index
    %c0_12 = arith.constant 0 : index
    %c0_13 = arith.constant 0 : index
    %c0_14 = arith.constant 0 : index
    %9 = vector.load %arg13[%c0_11, %c1, %c0_12, %c0_13, %c0_14] : memref<2x2x5x40x16xf32, #tpu.memory_space<vmem>>, vector<1x1x1x40x16xf32>
    %10 = vector.shape_cast %9 : vector<1x1x1x40x16xf32> to vector<40x16xf32>
    %11 = vector.shape_cast %8 : vector<40x16xf32> to vector<1x1x1x40x16xf32>
    tpu.vector_store %arg13[%c0_11, %c1, %c0_12, %c0_13, %c0_14], %11 {strides = array<i32>} : memref<2x2x5x40x16xf32, #tpu.memory_space<vmem>>, vector<1x1x1x40x16xf32>,
    %cst_15 = arith.constant 0.000000e+00 : f32
    %12 = vector.broadcast %cst_15 : f32 to vector<5x8x16xf32>
    %c0_16 = arith.constant 0 : index
    %c1_17 = arith.constant 1 : index
    %c0_18 = arith.constant 0 : index
    %c0_19 = arith.constant 0 : index
    %c0_20 = arith.constant 0 : index
    %13 = vector.load %arg13[%c0_16, %c1_17, %c0_18, %c0_19, %c0_20] : memref<2x2x5x40x16xf32, #tpu.memory_space<vmem>>, vector<1x1x5x8x16xf32>
    %14 = vector.shape_cast %13 : vector<1x1x5x8x16xf32> to vector<5x8x16xf32>
    %15 = vector.shape_cast %12 : vector<5x8x16xf32> to vector<1x1x5x8x16xf32>
    tpu.vector_store %arg13[%c0_16, %c1_17, %c0_18, %c0_19, %c0_20], %15 {strides = array<i32>} : memref<2x2x5x40x16xf32, #tpu.memory_space<vmem>>, vector<1x1x5x8x16xf32>,
    %cst_21 = arith.constant 0.000000e+00 : f32
    %16 = vector.broadcast %cst_21 : f32 to vector<40x16xf32>
    %c1_22 = arith.constant 1 : index
    %c0_23 = arith.constant 0 : index
    %c0_24 = arith.constant 0 : index
    %c0_25 = arith.constant 0 : index
    %c0_26 = arith.constant 0 : index
    %17 = vector.load %arg13[%c1_22, %c0_23, %c0_24, %c0_25, %c0_26] : memref<2x2x5x40x16xf32, #tpu.memory_space<vmem>>, vector<1x1x1x40x16xf32>
    %18 = vector.shape_cast %17 : vector<1x1x1x40x16xf32> to vector<40x16xf32>
    %19 = vector.shape_cast %16 : vector<40x16xf32> to vector<1x1x1x40x16xf32>
    tpu.vector_store %arg13[%c1_22, %c0_23, %c0_24, %c0_25, %c0_26], %19 {strides = array<i32>} : memref<2x2x5x40x16xf32, #tpu.memory_space<vmem>>, vector<1x1x1x40x16xf32>,
    %cst_27 = arith.constant 0.000000e+00 : f32
    %20 = vector.broadcast %cst_27 : f32 to vector<5x8x16xf32>
    %c1_28 = arith.constant 1 : index
    %c0_29 = arith.constant 0 : index
    %c0_30 = arith.constant 0 : index
    %c0_31 = arith.constant 0 : index
    %c0_32 = arith.constant 0 : index
    %21 = vector.load %arg13[%c1_28, %c0_29, %c0_30, %c0_31, %c0_32] : memref<2x2x5x40x16xf32, #tpu.memory_space<vmem>>, vector<1x1x5x8x16xf32>
    %22 = vector.shape_cast %21 : vector<1x1x5x8x16xf32> to vector<5x8x16xf32>
    %23 = vector.shape_cast %20 : vector<5x8x16xf32> to vector<1x1x5x8x16xf32>
    tpu.vector_store %arg13[%c1_28, %c0_29, %c0_30, %c0_31, %c0_32], %23 {strides = array<i32>} : memref<2x2x5x40x16xf32, #tpu.memory_space<vmem>>, vector<1x1x5x8x16xf32>,
    %cst_33 = arith.constant 0.000000e+00 : f32
    %24 = vector.broadcast %cst_33 : f32 to vector<40x16xf32>
    %c1_34 = arith.constant 1 : index
    %c1_35 = arith.constant 1 : index
    %c0_36 = arith.constant 0 : index
    %c0_37 = arith.constant 0 : index
    %c0_38 = arith.constant 0 : index
    %25 = vector.load %arg13[%c1_34, %c1_35, %c0_36, %c0_37, %c0_38] : memref<2x2x5x40x16xf32, #tpu.memory_space<vmem>>, vector<1x1x1x40x16xf32>
    %26 = vector.shape_cast %25 : vector<1x1x1x40x16xf32> to vector<40x16xf32>
    %27 = vector.shape_cast %24 : vector<40x16xf32> to vector<1x1x1x40x16xf32>
    tpu.vector_store %arg13[%c1_34, %c1_35, %c0_36, %c0_37, %c0_38], %27 {strides = array<i32>} : memref<2x2x5x40x16xf32, #tpu.memory_space<vmem>>, vector<1x1x1x40x16xf32>,
    %cst_39 = arith.constant 0.000000e+00 : f32
    %28 = vector.broadcast %cst_39 : f32 to vector<5x8x16xf32>
    %c1_40 = arith.constant 1 : index
    %c1_41 = arith.constant 1 : index
    %c0_42 = arith.constant 0 : index
    %c0_43 = arith.constant 0 : index
    %c0_44 = arith.constant 0 : index
    %29 = vector.load %arg13[%c1_40, %c1_41, %c0_42, %c0_43, %c0_44] : memref<2x2x5x40x16xf32, #tpu.memory_space<vmem>>, vector<1x1x5x8x16xf32>
    %30 = vector.shape_cast %29 : vector<1x1x5x8x16xf32> to vector<5x8x16xf32>
    %31 = vector.shape_cast %28 : vector<5x8x16xf32> to vector<1x1x5x8x16xf32>
    tpu.vector_store %arg13[%c1_40, %c1_41, %c0_42, %c0_43, %c0_44], %31 {strides = array<i32>} : memref<2x2x5x40x16xf32, #tpu.memory_space<vmem>>, vector<1x1x5x8x16xf32>,
    %c0_45 = arith.constant 0 : index
    %c0_46 = arith.constant 0 : index
    %32 = vector.load %arg2[%c0_45, %c0_46] : memref<48x16xbf16, #tpu.memory_space<vmem>>, vector<48x16xbf16>
    %c0_47 = arith.constant 0 : index
    %c0_48 = arith.constant 0 : index
    %33 = vector.load %arg3[%c0_47, %c0_48] : memref<1x16xf32, #tpu.memory_space<vmem>>, vector<1x16xf32>
    %c0_49 = arith.constant 0 : index
    %c0_50 = arith.constant 0 : index
    %c0_51 = arith.constant 0 : index
    %c0_52 = arith.constant 0 : index
    %34 = vector.load %arg1[%c0_49, %c0_50, %c0_51, %c0_52] : memref<1x4x128x48xbf16, #tpu.memory_space<vmem>>, vector<1x1x128x48xbf16>
    %35 = vector.shape_cast %34 : vector<1x1x128x48xbf16> to vector<128x48xbf16>
    %cst_53 = arith.constant dense<0.000000e+00> : vector<128x16xf32>
    %36 = tpu.matmul %35, %32, %cst_53 {dimension_numbers = #tpu.dot_dimension_numbers<[1], [0], [0], [1], [0, 0, 1, 1], [], []>} : vector<128x48xbf16>, vector<48x16xbf16>, vector<128x16xf32> -> vector<128x16xf32>
    %37 = vector.broadcast %33 : vector<1x16xf32> to vector<128x16xf32>
    %38 = arith.addf %36, %37 : vector<128x16xf32>
    %cst_54 = arith.constant 0.000000e+00 : f32
    %39 = vector.broadcast %cst_54 : f32 to vector<128x16xf32>
    %40 = arith.maximumf %38, %39 : vector<128x16xf32>
    %41 = vector.shape_cast %40 : vector<128x16xf32> to vector<4x32x16xf32>
    %c0_55 = arith.constant 0 : index
    %c0_56 = arith.constant 0 : index
    %c1_57 = arith.constant 1 : index
    %c8 = arith.constant 8 : index
    %c0_58 = arith.constant 0 : index
    %42 = vector.load %arg13[%c0_55, %c0_56, %c1_57, %c8, %c0_58] : memref<2x2x5x40x16xf32, #tpu.memory_space<vmem>>, vector<1x1x4x32x16xf32>
    %43 = vector.shape_cast %42 : vector<1x1x4x32x16xf32> to vector<4x32x16xf32>
    %44 = vector.shape_cast %41 : vector<4x32x16xf32> to vector<1x1x4x32x16xf32>
    tpu.vector_store %arg13[%c0_55, %c0_56, %c1_57, %c8, %c0_58], %44 {strides = array<i32>} : memref<2x2x5x40x16xf32, #tpu.memory_space<vmem>>, vector<1x1x4x32x16xf32>,
    %c0_59 = arith.constant 0 : index
    %c1_60 = arith.constant 1 : index
    %c0_61 = arith.constant 0 : index
    %c0_62 = arith.constant 0 : index
    %45 = vector.load %arg1[%c0_59, %c1_60, %c0_61, %c0_62] : memref<1x4x128x48xbf16, #tpu.memory_space<vmem>>, vector<1x1x128x48xbf16>
    %46 = vector.shape_cast %45 : vector<1x1x128x48xbf16> to vector<128x48xbf16>
    %cst_63 = arith.constant dense<0.000000e+00> : vector<128x16xf32>
    %47 = tpu.matmul %46, %32, %cst_63 {dimension_numbers = #tpu.dot_dimension_numbers<[1], [0], [0], [1], [0, 0, 1, 1], [], []>} : vector<128x48xbf16>, vector<48x16xbf16>, vector<128x16xf32> -> vector<128x16xf32>
    %48 = vector.broadcast %33 : vector<1x16xf32> to vector<128x16xf32>
    %49 = arith.addf %47, %48 : vector<128x16xf32>
    %cst_64 = arith.constant 0.000000e+00 : f32
    %50 = vector.broadcast %cst_64 : f32 to vector<128x16xf32>
    %51 = arith.maximumf %49, %50 : vector<128x16xf32>
    %52 = vector.shape_cast %51 : vector<128x16xf32> to vector<4x32x16xf32>
    %c0_65 = arith.constant 0 : index
    %c1_66 = arith.constant 1 : index
    %c1_67 = arith.constant 1 : index
    %c8_68 = arith.constant 8 : index
    %c0_69 = arith.constant 0 : index
    %53 = vector.load %arg13[%c0_65, %c1_66, %c1_67, %c8_68, %c0_69] : memref<2x2x5x40x16xf32, #tpu.memory_space<vmem>>, vector<1x1x4x32x16xf32>
    %54 = vector.shape_cast %53 : vector<1x1x4x32x16xf32> to vector<4x32x16xf32>
    %55 = vector.shape_cast %52 : vector<4x32x16xf32> to vector<1x1x4x32x16xf32>
    tpu.vector_store %arg13[%c0_65, %c1_66, %c1_67, %c8_68, %c0_69], %55 {strides = array<i32>} : memref<2x2x5x40x16xf32, #tpu.memory_space<vmem>>, vector<1x1x4x32x16xf32>,
    %c0_70 = arith.constant 0 : index
    %c2 = arith.constant 2 : index
    %c0_71 = arith.constant 0 : index
    %c0_72 = arith.constant 0 : index
    %56 = vector.load %arg1[%c0_70, %c2, %c0_71, %c0_72] : memref<1x4x128x48xbf16, #tpu.memory_space<vmem>>, vector<1x1x128x48xbf16>
    %57 = vector.shape_cast %56 : vector<1x1x128x48xbf16> to vector<128x48xbf16>
    %cst_73 = arith.constant dense<0.000000e+00> : vector<128x16xf32>
    %58 = tpu.matmul %57, %32, %cst_73 {dimension_numbers = #tpu.dot_dimension_numbers<[1], [0], [0], [1], [0, 0, 1, 1], [], []>} : vector<128x48xbf16>, vector<48x16xbf16>, vector<128x16xf32> -> vector<128x16xf32>
    %59 = vector.broadcast %33 : vector<1x16xf32> to vector<128x16xf32>
    %60 = arith.addf %58, %59 : vector<128x16xf32>
    %cst_74 = arith.constant 0.000000e+00 : f32
    %61 = vector.broadcast %cst_74 : f32 to vector<128x16xf32>
    %62 = arith.maximumf %60, %61 : vector<128x16xf32>
    %63 = vector.shape_cast %62 : vector<128x16xf32> to vector<4x32x16xf32>
    %c1_75 = arith.constant 1 : index
    %c0_76 = arith.constant 0 : index
    %c1_77 = arith.constant 1 : index
    %c8_78 = arith.constant 8 : index
    %c0_79 = arith.constant 0 : index
    %64 = vector.load %arg13[%c1_75, %c0_76, %c1_77, %c8_78, %c0_79] : memref<2x2x5x40x16xf32, #tpu.memory_space<vmem>>, vector<1x1x4x32x16xf32>
    %65 = vector.shape_cast %64 : vector<1x1x4x32x16xf32> to vector<4x32x16xf32>
    %66 = vector.shape_cast %63 : vector<4x32x16xf32> to vector<1x1x4x32x16xf32>
    tpu.vector_store %arg13[%c1_75, %c0_76, %c1_77, %c8_78, %c0_79], %66 {strides = array<i32>} : memref<2x2x5x40x16xf32, #tpu.memory_space<vmem>>, vector<1x1x4x32x16xf32>,
    %c0_80 = arith.constant 0 : index
    %c3 = arith.constant 3 : index
    %c0_81 = arith.constant 0 : index
    %c0_82 = arith.constant 0 : index
    %67 = vector.load %arg1[%c0_80, %c3, %c0_81, %c0_82] : memref<1x4x128x48xbf16, #tpu.memory_space<vmem>>, vector<1x1x128x48xbf16>
    %68 = vector.shape_cast %67 : vector<1x1x128x48xbf16> to vector<128x48xbf16>
    %cst_83 = arith.constant dense<0.000000e+00> : vector<128x16xf32>
    %69 = tpu.matmul %68, %32, %cst_83 {dimension_numbers = #tpu.dot_dimension_numbers<[1], [0], [0], [1], [0, 0, 1, 1], [], []>} : vector<128x48xbf16>, vector<48x16xbf16>, vector<128x16xf32> -> vector<128x16xf32>
    %70 = vector.broadcast %33 : vector<1x16xf32> to vector<128x16xf32>
    %71 = arith.addf %69, %70 : vector<128x16xf32>
    %cst_84 = arith.constant 0.000000e+00 : f32
    %72 = vector.broadcast %cst_84 : f32 to vector<128x16xf32>
    %73 = arith.maximumf %71, %72 : vector<128x16xf32>
    %74 = vector.shape_cast %73 : vector<128x16xf32> to vector<4x32x16xf32>
    %c1_85 = arith.constant 1 : index
    %c1_86 = arith.constant 1 : index
    %c1_87 = arith.constant 1 : index
    %c8_88 = arith.constant 8 : index
    %c0_89 = arith.constant 0 : index
    %75 = vector.load %arg13[%c1_85, %c1_86, %c1_87, %c8_88, %c0_89] : memref<2x2x5x40x16xf32, #tpu.memory_space<vmem>>, vector<1x1x4x32x16xf32>
    %76 = vector.shape_cast %75 : vector<1x1x4x32x16xf32> to vector<4x32x16xf32>
    %77 = vector.shape_cast %74 : vector<4x32x16xf32> to vector<1x1x4x32x16xf32>
    tpu.vector_store %arg13[%c1_85, %c1_86, %c1_87, %c8_88, %c0_89], %77 {strides = array<i32>} : memref<2x2x5x40x16xf32, #tpu.memory_space<vmem>>, vector<1x1x4x32x16xf32>,
    %c1_90 = arith.constant 1 : index
    %c1_91 = arith.constant 1 : index
    %c0_92 = arith.constant 0 : index
    %c0_93 = arith.constant 0 : index
    %c0_94 = arith.constant 0 : index
    %78 = vector.load %arg13[%c1_90, %c1_91, %c0_92, %c0_93, %c0_94] : memref<2x2x5x40x16xf32, #tpu.memory_space<vmem>>, vector<1x1x4x32x16xf32>
    %79 = vector.shape_cast %78 : vector<1x1x4x32x16xf32> to vector<4x32x16xf32>
    %80 = vector.shape_cast %79 : vector<4x32x16xf32> to vector<128x16xf32>
    %c0_95 = arith.constant 0 : index
    %c0_96 = arith.constant 0 : index
    %81 = vector.load %arg14[%c0_95, %c0_96] : memref<128x144xf32, #tpu.memory_space<vmem>>, vector<128x16xf32>
    tpu.vector_store %arg14[%c0_95, %c0_96], %80 {strides = array<i32>} : memref<128x144xf32, #tpu.memory_space<vmem>>, vector<128x16xf32>,
    %c1_97 = arith.constant 1 : index
    %c0_98 = arith.constant 0 : index
    %c0_99 = arith.constant 0 : index
    %c8_100 = arith.constant 8 : index
    %c0_101 = arith.constant 0 : index
    %82 = vector.load %arg13[%c1_97, %c0_98, %c0_99, %c8_100, %c0_101] : memref<2x2x5x40x16xf32, #tpu.memory_space<vmem>>, vector<1x1x4x32x16xf32>
    %83 = vector.shape_cast %82 : vector<1x1x4x32x16xf32> to vector<4x32x16xf32>
    %84 = vector.shape_cast %83 : vector<4x32x16xf32> to vector<128x16xf32>
    %c0_102 = arith.constant 0 : index
    %c16 = arith.constant 16 : index
    %85 = vector.load %arg14[%c0_102, %c16] : memref<128x144xf32, #tpu.memory_space<vmem>>, vector<128x16xf32>
    tpu.vector_store %arg14[%c0_102, %c16], %84 {strides = array<i32>} : memref<128x144xf32, #tpu.memory_space<vmem>>, vector<128x16xf32>,
    %c1_103 = arith.constant 1 : index
    %c1_104 = arith.constant 1 : index
    %c0_105 = arith.constant 0 : index
    %c8_106 = arith.constant 8 : index
    %c0_107 = arith.constant 0 : index
    %86 = vector.load %arg13[%c1_103, %c1_104, %c0_105, %c8_106, %c0_107] : memref<2x2x5x40x16xf32, #tpu.memory_space<vmem>>, vector<1x1x4x32x16xf32>
    %87 = vector.shape_cast %86 : vector<1x1x4x32x16xf32> to vector<4x32x16xf32>
    %88 = vector.shape_cast %87 : vector<4x32x16xf32> to vector<128x16xf32>
    %c0_108 = arith.constant 0 : index
    %c32 = arith.constant 32 : index
    %89 = vector.load %arg14[%c0_108, %c32] : memref<128x144xf32, #tpu.memory_space<vmem>>, vector<128x16xf32>
    tpu.vector_store %arg14[%c0_108, %c32], %88 {strides = array<i32>} : memref<128x144xf32, #tpu.memory_space<vmem>>, vector<128x16xf32>,
    %c0_109 = arith.constant 0 : index
    %c1_110 = arith.constant 1 : index
    %c1_111 = arith.constant 1 : index
    %c0_112 = arith.constant 0 : index
    %c0_113 = arith.constant 0 : index
    %90 = vector.load %arg13[%c0_109, %c1_110, %c1_111, %c0_112, %c0_113] : memref<2x2x5x40x16xf32, #tpu.memory_space<vmem>>, vector<1x1x4x32x16xf32>
    %91 = vector.shape_cast %90 : vector<1x1x4x32x16xf32> to vector<4x32x16xf32>
    %92 = vector.shape_cast %91 : vector<4x32x16xf32> to vector<128x16xf32>
    %c0_114 = arith.constant 0 : index
    %c48 = arith.constant 48 : index
    %93 = vector.load %arg14[%c0_114, %c48] : memref<128x144xf32, #tpu.memory_space<vmem>>, vector<128x16xf32>
    tpu.vector_store %arg14[%c0_114, %c48], %92 {strides = array<i32>} : memref<128x144xf32, #tpu.memory_space<vmem>>, vector<128x16xf32>,
    %c0_115 = arith.constant 0 : index
    %c0_116 = arith.constant 0 : index
    %c1_117 = arith.constant 1 : index
    %c8_118 = arith.constant 8 : index
    %c0_119 = arith.constant 0 : index
    %94 = vector.load %arg13[%c0_115, %c0_116, %c1_117, %c8_118, %c0_119] : memref<2x2x5x40x16xf32, #tpu.memory_space<vmem>>, vector<1x1x4x32x16xf32>
    %95 = vector.shape_cast %94 : vector<1x1x4x32x16xf32> to vector<4x32x16xf32>
    %96 = vector.shape_cast %95 : vector<4x32x16xf32> to vector<128x16xf32>
    %c0_120 = arith.constant 0 : index
    %c64 = arith.constant 64 : index
    %97 = vector.load %arg14[%c0_120, %c64] : memref<128x144xf32, #tpu.memory_space<vmem>>, vector<128x16xf32>
    tpu.vector_store %arg14[%c0_120, %c64], %96 {strides = array<i32>} : memref<128x144xf32, #tpu.memory_space<vmem>>, vector<128x16xf32>,
    %c0_121 = arith.constant 0 : index
    %c1_122 = arith.constant 1 : index
    %c1_123 = arith.constant 1 : index
    %c8_124 = arith.constant 8 : index
    %c0_125 = arith.constant 0 : index
    %98 = vector.load %arg13[%c0_121, %c1_122, %c1_123, %c8_124, %c0_125] : memref<2x2x5x40x16xf32, #tpu.memory_space<vmem>>, vector<1x1x4x32x16xf32>
    %99 = vector.shape_cast %98 : vector<1x1x4x32x16xf32> to vector<4x32x16xf32>
    %100 = vector.shape_cast %99 : vector<4x32x16xf32> to vector<128x16xf32>
    %c0_126 = arith.constant 0 : index
    %c80 = arith.constant 80 : index
    %101 = vector.load %arg14[%c0_126, %c80] : memref<128x144xf32, #tpu.memory_space<vmem>>, vector<128x16xf32>
    tpu.vector_store %arg14[%c0_126, %c80], %100 {strides = array<i32>} : memref<128x144xf32, #tpu.memory_space<vmem>>, vector<128x16xf32>,
    %c1_127 = arith.constant 1 : index
    %c1_128 = arith.constant 1 : index
    %c1_129 = arith.constant 1 : index
    %c0_130 = arith.constant 0 : index
    %c0_131 = arith.constant 0 : index
    %102 = vector.load %arg13[%c1_127, %c1_128, %c1_129, %c0_130, %c0_131] : memref<2x2x5x40x16xf32, #tpu.memory_space<vmem>>, vector<1x1x4x32x16xf32>
    %103 = vector.shape_cast %102 : vector<1x1x4x32x16xf32> to vector<4x32x16xf32>
    %104 = vector.shape_cast %103 : vector<4x32x16xf32> to vector<128x16xf32>
    %c0_132 = arith.constant 0 : index
    %c96 = arith.constant 96 : index
    %105 = vector.load %arg14[%c0_132, %c96] : memref<128x144xf32, #tpu.memory_space<vmem>>, vector<128x16xf32>
    tpu.vector_store %arg14[%c0_132, %c96], %104 {strides = array<i32>} : memref<128x144xf32, #tpu.memory_space<vmem>>, vector<128x16xf32>,
    %c1_133 = arith.constant 1 : index
    %c0_134 = arith.constant 0 : index
    %c1_135 = arith.constant 1 : index
    %c8_136 = arith.constant 8 : index
    %c0_137 = arith.constant 0 : index
    %106 = vector.load %arg13[%c1_133, %c0_134, %c1_135, %c8_136, %c0_137] : memref<2x2x5x40x16xf32, #tpu.memory_space<vmem>>, vector<1x1x4x32x16xf32>
    %107 = vector.shape_cast %106 : vector<1x1x4x32x16xf32> to vector<4x32x16xf32>
    %108 = vector.shape_cast %107 : vector<4x32x16xf32> to vector<128x16xf32>
    %c0_138 = arith.constant 0 : index
    %c112 = arith.constant 112 : index
    %109 = vector.load %arg14[%c0_138, %c112] : memref<128x144xf32, #tpu.memory_space<vmem>>, vector<128x16xf32>
    tpu.vector_store %arg14[%c0_138, %c112], %108 {strides = array<i32>} : memref<128x144xf32, #tpu.memory_space<vmem>>, vector<128x16xf32>,
    %c1_139 = arith.constant 1 : index
    %c1_140 = arith.constant 1 : index
    %c1_141 = arith.constant 1 : index
    %c8_142 = arith.constant 8 : index
    %c0_143 = arith.constant 0 : index
    %110 = vector.load %arg13[%c1_139, %c1_140, %c1_141, %c8_142, %c0_143] : memref<2x2x5x40x16xf32, #tpu.memory_space<vmem>>, vector<1x1x4x32x16xf32>
    %111 = vector.shape_cast %110 : vector<1x1x4x32x16xf32> to vector<4x32x16xf32>
    %112 = vector.shape_cast %111 : vector<4x32x16xf32> to vector<128x16xf32>
    %c0_144 = arith.constant 0 : index
    %c128 = arith.constant 128 : index
    %113 = vector.load %arg14[%c0_144, %c128] : memref<128x144xf32, #tpu.memory_space<vmem>>, vector<128x16xf32>
    tpu.vector_store %arg14[%c0_144, %c128], %112 {strides = array<i32>} : memref<128x144xf32, #tpu.memory_space<vmem>>, vector<128x16xf32>,
    %c0_145 = arith.constant 0 : index
    %c0_146 = arith.constant 0 : index
    %114 = vector.load %arg14[%c0_145, %c0_146] : memref<128x144xf32, #tpu.memory_space<vmem>>, vector<128x144xf32>
    %115 = arith.truncf %114 : vector<128x144xf32> to vector<128x144xbf16>
    %c0_147 = arith.constant 0 : index
    %c0_148 = arith.constant 0 : index
    %116 = vector.load %arg4[%c0_147, %c0_148] : memref<144x32xbf16, #tpu.memory_space<vmem>>, vector<144x32xbf16>
    %cst_149 = arith.constant dense<0.000000e+00> : vector<128x32xf32>
    %117 = tpu.matmul %115, %116, %cst_149 {dimension_numbers = #tpu.dot_dimension_numbers<[1], [0], [0], [1], [0, 0, 1, 1], [], []>} : vector<128x144xbf16>, vector<144x32xbf16>, vector<128x32xf32> -> vector<128x32xf32>
    %c0_150 = arith.constant 0 : index
    %c0_151 = arith.constant 0 : index
    %118 = vector.load %arg5[%c0_150, %c0_151] : memref<1x32xf32, #tpu.memory_space<vmem>>, vector<1x32xf32>
    %119 = vector.broadcast %118 : vector<1x32xf32> to vector<128x32xf32>
    %120 = arith.addf %117, %119 : vector<128x32xf32>
    %cst_152 = arith.constant 0.000000e+00 : f32
    %121 = vector.broadcast %cst_152 : f32 to vector<128x32xf32>
    %122 = arith.maximumf %120, %121 : vector<128x32xf32>
    %cst_153 = arith.constant 0.000000e+00 : f32
    %123 = vector.broadcast %cst_153 : f32 to vector<8x64xf32>
    %124 = vector.extract_strided_slice %122 {offsets = [0, 0], sizes = [8, 32], strides = [1, 1]} : vector<128x32xf32> to vector<8x32xf32>
    %125 = arith.truncf %124 : vector<8x32xf32> to vector<8x32xbf16>
    %c0_154 = arith.constant 0 : index
    %c0_155 = arith.constant 0 : index
    %c0_156 = arith.constant 0 : index
    %126 = vector.load %arg6[%c0_154, %c0_155, %c0_156] : memref<16x32x64xbf16, #tpu.memory_space<vmem>>, vector<1x32x64xbf16>
    %127 = vector.shape_cast %126 : vector<1x32x64xbf16> to vector<32x64xbf16>
    %cst_157 = arith.constant dense<0.000000e+00> : vector<8x64xf32>
    %128 = tpu.matmul %125, %127, %cst_157 {dimension_numbers = #tpu.dot_dimension_numbers<[1], [0], [0], [1], [0, 0, 1, 1], [], []>} : vector<8x32xbf16>, vector<32x64xbf16>, vector<8x64xf32> -> vector<8x64xf32>
    %129 = arith.addf %123, %128 : vector<8x64xf32>
    %130 = vector.extract_strided_slice %122 {offsets = [8, 0], sizes = [8, 32], strides = [1, 1]} : vector<128x32xf32> to vector<8x32xf32>
    %131 = arith.truncf %130 : vector<8x32xf32> to vector<8x32xbf16>
    %c1_158 = arith.constant 1 : index
    %c0_159 = arith.constant 0 : index
    %c0_160 = arith.constant 0 : index
    %132 = vector.load %arg6[%c1_158, %c0_159, %c0_160] : memref<16x32x64xbf16, #tpu.memory_space<vmem>>, vector<1x32x64xbf16>
    %133 = vector.shape_cast %132 : vector<1x32x64xbf16> to vector<32x64xbf16>
    %cst_161 = arith.constant dense<0.000000e+00> : vector<8x64xf32>
    %134 = tpu.matmul %131, %133, %cst_161 {dimension_numbers = #tpu.dot_dimension_numbers<[1], [0], [0], [1], [0, 0, 1, 1], [], []>} : vector<8x32xbf16>, vector<32x64xbf16>, vector<8x64xf32> -> vector<8x64xf32>
    %135 = arith.addf %129, %134 : vector<8x64xf32>
    %136 = vector.extract_strided_slice %122 {offsets = [16, 0], sizes = [8, 32], strides = [1, 1]} : vector<128x32xf32> to vector<8x32xf32>
    %137 = arith.truncf %136 : vector<8x32xf32> to vector<8x32xbf16>
    %c2_162 = arith.constant 2 : index
    %c0_163 = arith.constant 0 : index
    %c0_164 = arith.constant 0 : index
    %138 = vector.load %arg6[%c2_162, %c0_163, %c0_164] : memref<16x32x64xbf16, #tpu.memory_space<vmem>>, vector<1x32x64xbf16>
    %139 = vector.shape_cast %138 : vector<1x32x64xbf16> to vector<32x64xbf16>
    %cst_165 = arith.constant dense<0.000000e+00> : vector<8x64xf32>
    %140 = tpu.matmul %137, %139, %cst_165 {dimension_numbers = #tpu.dot_dimension_numbers<[1], [0], [0], [1], [0, 0, 1, 1], [], []>} : vector<8x32xbf16>, vector<32x64xbf16>, vector<8x64xf32> -> vector<8x64xf32>
    %141 = arith.addf %135, %140 : vector<8x64xf32>
    %142 = vector.extract_strided_slice %122 {offsets = [24, 0], sizes = [8, 32], strides = [1, 1]} : vector<128x32xf32> to vector<8x32xf32>
    %143 = arith.truncf %142 : vector<8x32xf32> to vector<8x32xbf16>
    %c3_166 = arith.constant 3 : index
    %c0_167 = arith.constant 0 : index
    %c0_168 = arith.constant 0 : index
    %144 = vector.load %arg6[%c3_166, %c0_167, %c0_168] : memref<16x32x64xbf16, #tpu.memory_space<vmem>>, vector<1x32x64xbf16>
    %145 = vector.shape_cast %144 : vector<1x32x64xbf16> to vector<32x64xbf16>
    %cst_169 = arith.constant dense<0.000000e+00> : vector<8x64xf32>
    %146 = tpu.matmul %143, %145, %cst_169 {dimension_numbers = #tpu.dot_dimension_numbers<[1], [0], [0], [1], [0, 0, 1, 1], [], []>} : vector<8x32xbf16>, vector<32x64xbf16>, vector<8x64xf32> -> vector<8x64xf32>
    %147 = arith.addf %141, %146 : vector<8x64xf32>
    %148 = vector.extract_strided_slice %122 {offsets = [32, 0], sizes = [8, 32], strides = [1, 1]} : vector<128x32xf32> to vector<8x32xf32>
    %149 = arith.truncf %148 : vector<8x32xf32> to vector<8x32xbf16>
    %c4 = arith.constant 4 : index
    %c0_170 = arith.constant 0 : index
    %c0_171 = arith.constant 0 : index
    %150 = vector.load %arg6[%c4, %c0_170, %c0_171] : memref<16x32x64xbf16, #tpu.memory_space<vmem>>, vector<1x32x64xbf16>
    %151 = vector.shape_cast %150 : vector<1x32x64xbf16> to vector<32x64xbf16>
    %cst_172 = arith.constant dense<0.000000e+00> : vector<8x64xf32>
    %152 = tpu.matmul %149, %151, %cst_172 {dimension_numbers = #tpu.dot_dimension_numbers<[1], [0], [0], [1], [0, 0, 1, 1], [], []>} : vector<8x32xbf16>, vector<32x64xbf16>, vector<8x64xf32> -> vector<8x64xf32>
    %153 = arith.addf %147, %152 : vector<8x64xf32>
    %154 = vector.extract_strided_slice %122 {offsets = [40, 0], sizes = [8, 32], strides = [1, 1]} : vector<128x32xf32> to vector<8x32xf32>
    %155 = arith.truncf %154 : vector<8x32xf32> to vector<8x32xbf16>
    %c5 = arith.constant 5 : index
    %c0_173 = arith.constant 0 : index
    %c0_174 = arith.constant 0 : index
    %156 = vector.load %arg6[%c5, %c0_173, %c0_174] : memref<16x32x64xbf16, #tpu.memory_space<vmem>>, vector<1x32x64xbf16>
    %157 = vector.shape_cast %156 : vector<1x32x64xbf16> to vector<32x64xbf16>
    %cst_175 = arith.constant dense<0.000000e+00> : vector<8x64xf32>
    %158 = tpu.matmul %155, %157, %cst_175 {dimension_numbers = #tpu.dot_dimension_numbers<[1], [0], [0], [1], [0, 0, 1, 1], [], []>} : vector<8x32xbf16>, vector<32x64xbf16>, vector<8x64xf32> -> vector<8x64xf32>
    %159 = arith.addf %153, %158 : vector<8x64xf32>
    %160 = vector.extract_strided_slice %122 {offsets = [48, 0], sizes = [8, 32], strides = [1, 1]} : vector<128x32xf32> to vector<8x32xf32>
    %161 = arith.truncf %160 : vector<8x32xf32> to vector<8x32xbf16>
    %c6 = arith.constant 6 : index
    %c0_176 = arith.constant 0 : index
    %c0_177 = arith.constant 0 : index
    %162 = vector.load %arg6[%c6, %c0_176, %c0_177] : memref<16x32x64xbf16, #tpu.memory_space<vmem>>, vector<1x32x64xbf16>
    %163 = vector.shape_cast %162 : vector<1x32x64xbf16> to vector<32x64xbf16>
    %cst_178 = arith.constant dense<0.000000e+00> : vector<8x64xf32>
    %164 = tpu.matmul %161, %163, %cst_178 {dimension_numbers = #tpu.dot_dimension_numbers<[1], [0], [0], [1], [0, 0, 1, 1], [], []>} : vector<8x32xbf16>, vector<32x64xbf16>, vector<8x64xf32> -> vector<8x64xf32>
    %165 = arith.addf %159, %164 : vector<8x64xf32>
    %166 = vector.extract_strided_slice %122 {offsets = [56, 0], sizes = [8, 32], strides = [1, 1]} : vector<128x32xf32> to vector<8x32xf32>
    %167 = arith.truncf %166 : vector<8x32xf32> to vector<8x32xbf16>
    %c7 = arith.constant 7 : index
    %c0_179 = arith.constant 0 : index
    %c0_180 = arith.constant 0 : index
    %168 = vector.load %arg6[%c7, %c0_179, %c0_180] : memref<16x32x64xbf16, #tpu.memory_space<vmem>>, vector<1x32x64xbf16>
    %169 = vector.shape_cast %168 : vector<1x32x64xbf16> to vector<32x64xbf16>
    %cst_181 = arith.constant dense<0.000000e+00> : vector<8x64xf32>
    %170 = tpu.matmul %167, %169, %cst_181 {dimension_numbers = #tpu.dot_dimension_numbers<[1], [0], [0], [1], [0, 0, 1, 1], [], []>} : vector<8x32xbf16>, vector<32x64xbf16>, vector<8x64xf32> -> vector<8x64xf32>
    %171 = arith.addf %165, %170 : vector<8x64xf32>
    %172 = vector.extract_strided_slice %122 {offsets = [64, 0], sizes = [8, 32], strides = [1, 1]} : vector<128x32xf32> to vector<8x32xf32>
    %173 = arith.truncf %172 : vector<8x32xf32> to vector<8x32xbf16>
    %c8_182 = arith.constant 8 : index
    %c0_183 = arith.constant 0 : index
    %c0_184 = arith.constant 0 : index
    %174 = vector.load %arg6[%c8_182, %c0_183, %c0_184] : memref<16x32x64xbf16, #tpu.memory_space<vmem>>, vector<1x32x64xbf16>
    %175 = vector.shape_cast %174 : vector<1x32x64xbf16> to vector<32x64xbf16>
    %cst_185 = arith.constant dense<0.000000e+00> : vector<8x64xf32>
    %176 = tpu.matmul %173, %175, %cst_185 {dimension_numbers = #tpu.dot_dimension_numbers<[1], [0], [0], [1], [0, 0, 1, 1], [], []>} : vector<8x32xbf16>, vector<32x64xbf16>, vector<8x64xf32> -> vector<8x64xf32>
    %177 = arith.addf %171, %176 : vector<8x64xf32>
    %178 = vector.extract_strided_slice %122 {offsets = [72, 0], sizes = [8, 32], strides = [1, 1]} : vector<128x32xf32> to vector<8x32xf32>
    %179 = arith.truncf %178 : vector<8x32xf32> to vector<8x32xbf16>
    %c9 = arith.constant 9 : index
    %c0_186 = arith.constant 0 : index
    %c0_187 = arith.constant 0 : index
    %180 = vector.load %arg6[%c9, %c0_186, %c0_187] : memref<16x32x64xbf16, #tpu.memory_space<vmem>>, vector<1x32x64xbf16>
    %181 = vector.shape_cast %180 : vector<1x32x64xbf16> to vector<32x64xbf16>
    %cst_188 = arith.constant dense<0.000000e+00> : vector<8x64xf32>
    %182 = tpu.matmul %179, %181, %cst_188 {dimension_numbers = #tpu.dot_dimension_numbers<[1], [0], [0], [1], [0, 0, 1, 1], [], []>} : vector<8x32xbf16>, vector<32x64xbf16>, vector<8x64xf32> -> vector<8x64xf32>
    %183 = arith.addf %177, %182 : vector<8x64xf32>
    %184 = vector.extract_strided_slice %122 {offsets = [80, 0], sizes = [8, 32], strides = [1, 1]} : vector<128x32xf32> to vector<8x32xf32>
    %185 = arith.truncf %184 : vector<8x32xf32> to vector<8x32xbf16>
    %c10 = arith.constant 10 : index
    %c0_189 = arith.constant 0 : index
    %c0_190 = arith.constant 0 : index
    %186 = vector.load %arg6[%c10, %c0_189, %c0_190] : memref<16x32x64xbf16, #tpu.memory_space<vmem>>, vector<1x32x64xbf16>
    %187 = vector.shape_cast %186 : vector<1x32x64xbf16> to vector<32x64xbf16>
    %cst_191 = arith.constant dense<0.000000e+00> : vector<8x64xf32>
    %188 = tpu.matmul %185, %187, %cst_191 {dimension_numbers = #tpu.dot_dimension_numbers<[1], [0], [0], [1], [0, 0, 1, 1], [], []>} : vector<8x32xbf16>, vector<32x64xbf16>, vector<8x64xf32> -> vector<8x64xf32>
    %189 = arith.addf %183, %188 : vector<8x64xf32>
    %190 = vector.extract_strided_slice %122 {offsets = [88, 0], sizes = [8, 32], strides = [1, 1]} : vector<128x32xf32> to vector<8x32xf32>
    %191 = arith.truncf %190 : vector<8x32xf32> to vector<8x32xbf16>
    %c11 = arith.constant 11 : index
    %c0_192 = arith.constant 0 : index
    %c0_193 = arith.constant 0 : index
    %192 = vector.load %arg6[%c11, %c0_192, %c0_193] : memref<16x32x64xbf16, #tpu.memory_space<vmem>>, vector<1x32x64xbf16>
    %193 = vector.shape_cast %192 : vector<1x32x64xbf16> to vector<32x64xbf16>
    %cst_194 = arith.constant dense<0.000000e+00> : vector<8x64xf32>
    %194 = tpu.matmul %191, %193, %cst_194 {dimension_numbers = #tpu.dot_dimension_numbers<[1], [0], [0], [1], [0, 0, 1, 1], [], []>} : vector<8x32xbf16>, vector<32x64xbf16>, vector<8x64xf32> -> vector<8x64xf32>
    %195 = arith.addf %189, %194 : vector<8x64xf32>
    %196 = vector.extract_strided_slice %122 {offsets = [96, 0], sizes = [8, 32], strides = [1, 1]} : vector<128x32xf32> to vector<8x32xf32>
    %197 = arith.truncf %196 : vector<8x32xf32> to vector<8x32xbf16>
    %c12 = arith.constant 12 : index
    %c0_195 = arith.constant 0 : index
    %c0_196 = arith.constant 0 : index
    %198 = vector.load %arg6[%c12, %c0_195, %c0_196] : memref<16x32x64xbf16, #tpu.memory_space<vmem>>, vector<1x32x64xbf16>
    %199 = vector.shape_cast %198 : vector<1x32x64xbf16> to vector<32x64xbf16>
    %cst_197 = arith.constant dense<0.000000e+00> : vector<8x64xf32>
    %200 = tpu.matmul %197, %199, %cst_197 {dimension_numbers = #tpu.dot_dimension_numbers<[1], [0], [0], [1], [0, 0, 1, 1], [], []>} : vector<8x32xbf16>, vector<32x64xbf16>, vector<8x64xf32> -> vector<8x64xf32>
    %201 = arith.addf %195, %200 : vector<8x64xf32>
    %202 = vector.extract_strided_slice %122 {offsets = [104, 0], sizes = [8, 32], strides = [1, 1]} : vector<128x32xf32> to vector<8x32xf32>
    %203 = arith.truncf %202 : vector<8x32xf32> to vector<8x32xbf16>
    %c13 = arith.constant 13 : index
    %c0_198 = arith.constant 0 : index
    %c0_199 = arith.constant 0 : index
    %204 = vector.load %arg6[%c13, %c0_198, %c0_199] : memref<16x32x64xbf16, #tpu.memory_space<vmem>>, vector<1x32x64xbf16>
    %205 = vector.shape_cast %204 : vector<1x32x64xbf16> to vector<32x64xbf16>
    %cst_200 = arith.constant dense<0.000000e+00> : vector<8x64xf32>
    %206 = tpu.matmul %203, %205, %cst_200 {dimension_numbers = #tpu.dot_dimension_numbers<[1], [0], [0], [1], [0, 0, 1, 1], [], []>} : vector<8x32xbf16>, vector<32x64xbf16>, vector<8x64xf32> -> vector<8x64xf32>
    %207 = arith.addf %201, %206 : vector<8x64xf32>
    %208 = vector.extract_strided_slice %122 {offsets = [112, 0], sizes = [8, 32], strides = [1, 1]} : vector<128x32xf32> to vector<8x32xf32>
    %209 = arith.truncf %208 : vector<8x32xf32> to vector<8x32xbf16>
    %c14 = arith.constant 14 : index
    %c0_201 = arith.constant 0 : index
    %c0_202 = arith.constant 0 : index
    %210 = vector.load %arg6[%c14, %c0_201, %c0_202] : memref<16x32x64xbf16, #tpu.memory_space<vmem>>, vector<1x32x64xbf16>
    %211 = vector.shape_cast %210 : vector<1x32x64xbf16> to vector<32x64xbf16>
    %cst_203 = arith.constant dense<0.000000e+00> : vector<8x64xf32>
    %212 = tpu.matmul %209, %211, %cst_203 {dimension_numbers = #tpu.dot_dimension_numbers<[1], [0], [0], [1], [0, 0, 1, 1], [], []>} : vector<8x32xbf16>, vector<32x64xbf16>, vector<8x64xf32> -> vector<8x64xf32>
    %213 = arith.addf %207, %212 : vector<8x64xf32>
    %214 = vector.extract_strided_slice %122 {offsets = [120, 0], sizes = [8, 32], strides = [1, 1]} : vector<128x32xf32> to vector<8x32xf32>
    %215 = arith.truncf %214 : vector<8x32xf32> to vector<8x32xbf16>
    %c15 = arith.constant 15 : index
    %c0_204 = arith.constant 0 : index
    %c0_205 = arith.constant 0 : index
    %216 = vector.load %arg6[%c15, %c0_204, %c0_205] : memref<16x32x64xbf16, #tpu.memory_space<vmem>>, vector<1x32x64xbf16>
    %217 = vector.shape_cast %216 : vector<1x32x64xbf16> to vector<32x64xbf16>
    %cst_206 = arith.constant dense<0.000000e+00> : vector<8x64xf32>
    %218 = tpu.matmul %215, %217, %cst_206 {dimension_numbers = #tpu.dot_dimension_numbers<[1], [0], [0], [1], [0, 0, 1, 1], [], []>} : vector<8x32xbf16>, vector<32x64xbf16>, vector<8x64xf32> -> vector<8x64xf32>
    %219 = arith.addf %213, %218 : vector<8x64xf32>
    %c0_207 = arith.constant 0 : index
    %c0_208 = arith.constant 0 : index
    %220 = vector.load %arg7[%c0_207, %c0_208] : memref<1x64xf32, #tpu.memory_space<vmem>>, vector<1x64xf32>
    %221 = vector.broadcast %220 : vector<1x64xf32> to vector<8x64xf32>
    %222 = arith.addf %219, %221 : vector<8x64xf32>
    %223 = arith.mulf %222, %222 : vector<8x64xf32>
    %cst_209 = arith.constant dense<0.000000e+00> : vector<8xf32>
    %224 = vector.multi_reduction <add>, %223, %cst_209 [1] : vector<8x64xf32> to vector<8xf32>
    %225 = vector.shape_cast %224 : vector<8xf32> to vector<8x1xf32>
    %cst_210 = arith.constant 1.000000e-24 : f32
    %226 = vector.broadcast %cst_210 : f32 to vector<8x1xf32>
    %227 = arith.maximumf %225, %226 : vector<8x1xf32>
    %228 = math.rsqrt %227 : vector<8x1xf32>
    %229 = vector.broadcast %228 : vector<8x1xf32> to vector<8x64xf32>
    %230 = arith.mulf %222, %229 : vector<8x64xf32>
    %231 = arith.truncf %230 : vector<8x64xf32> to vector<8x64xbf16>
    %c0_211 = arith.constant 0 : index
    %c0_212 = arith.constant 0 : index
    %232 = vector.load %arg8[%c0_211, %c0_212] : memref<64x128xbf16, #tpu.memory_space<vmem>>, vector<64x128xbf16>
    %cst_213 = arith.constant dense<0.000000e+00> : vector<8x128xf32>
    %233 = tpu.matmul %231, %232, %cst_213 {dimension_numbers = #tpu.dot_dimension_numbers<[1], [0], [0], [1], [0, 0, 1, 1], [], []>} : vector<8x64xbf16>, vector<64x128xbf16>, vector<8x128xf32> -> vector<8x128xf32>
    %c0_214 = arith.constant 0 : index
    %c0_215 = arith.constant 0 : index
    %234 = vector.load %arg9[%c0_214, %c0_215] : memref<1x128xf32, #tpu.memory_space<vmem>>, vector<1x128xf32>
    %235 = vector.broadcast %234 : vector<1x128xf32> to vector<8x128xf32>
    %236 = arith.addf %233, %235 : vector<8x128xf32>
    %cst_216 = arith.constant 0.000000e+00 : f32
    %237 = vector.broadcast %cst_216 : f32 to vector<8x128xf32>
    %238 = arith.maximumf %236, %237 : vector<8x128xf32>
    %239 = arith.truncf %238 : vector<8x128xf32> to vector<8x128xbf16>
    %c0_217 = arith.constant 0 : index
    %c0_218 = arith.constant 0 : index
    %240 = vector.load %arg10[%c0_217, %c0_218] : memref<128x128xbf16, #tpu.memory_space<vmem>>, vector<128x128xbf16>
    %cst_219 = arith.constant dense<0.000000e+00> : vector<8x128xf32>
    %241 = tpu.matmul %239, %240, %cst_219 {dimension_numbers = #tpu.dot_dimension_numbers<[1], [0], [0], [1], [0, 0, 1, 1], [], []>} : vector<8x128xbf16>, vector<128x128xbf16>, vector<8x128xf32> -> vector<8x128xf32>
    %c0_220 = arith.constant 0 : index
    %c0_221 = arith.constant 0 : index
    %242 = vector.load %arg11[%c0_220, %c0_221] : memref<1x128xf32, #tpu.memory_space<vmem>>, vector<1x128xf32>
    %243 = vector.broadcast %242 : vector<1x128xf32> to vector<8x128xf32>
    %244 = arith.addf %241, %243 : vector<8x128xf32>
    %c0_222 = arith.constant 0 : index
    %c0_223 = arith.constant 0 : index
    %245 = vector.load %arg12[%c0_222, %c0_223] : memref<8x128xf32, #tpu.memory_space<vmem>>, vector<8x128xf32>
    tpu.vector_store %arg12[%c0_222, %c0_223], %244 {strides = array<i32>} : memref<8x128xf32, #tpu.memory_space<vmem>>, vector<8x128xf32>,
    return
  }
  func.func @transform_0(%arg0: i32) -> (i32, i32, i32, i32) {
    %c0_i32 = arith.constant 0 : i32
    %c0_i32_0 = arith.constant 0 : i32
    %c0_i32_1 = arith.constant 0 : i32
    %c0_i32_2 = arith.constant 0 : i32
    return %arg0, %c0_i32, %c0_i32_0, %c0_i32_1 : i32, i32, i32, i32
  }
  func.func @transform_1(%arg0: i32) -> (i32, i32) {
    %c0_i32 = arith.constant 0 : i32
    %c0_i32_0 = arith.constant 0 : i32
    %c0_i32_1 = arith.constant 0 : i32
    return %c0_i32, %c0_i32_0 : i32, i32
  }
  func.func @transform_2(%arg0: i32) -> (i32, i32) {
    %c0_i32 = arith.constant 0 : i32
    %c0_i32_0 = arith.constant 0 : i32
    %c0_i32_1 = arith.constant 0 : i32
    return %c0_i32, %c0_i32_0 : i32, i32
  }
  func.func @transform_3(%arg0: i32) -> (i32, i32) {
    %c0_i32 = arith.constant 0 : i32
    %c0_i32_0 = arith.constant 0 : i32
    %c0_i32_1 = arith.constant 0 : i32
    return %c0_i32, %c0_i32_0 : i32, i32
  }
  func.func @transform_4(%arg0: i32) -> (i32, i32) {
    %c0_i32 = arith.constant 0 : i32
    %c0_i32_0 = arith.constant 0 : i32
    %c0_i32_1 = arith.constant 0 : i32
    return %c0_i32, %c0_i32_0 : i32, i32
  }
  func.func @transform_5(%arg0: i32) -> (i32, i32, i32) {
    %c0_i32 = arith.constant 0 : i32
    %c0_i32_0 = arith.constant 0 : i32
    %c0_i32_1 = arith.constant 0 : i32
    %c0_i32_2 = arith.constant 0 : i32
    return %c0_i32, %c0_i32_0, %c0_i32_1 : i32, i32, i32
  }
  func.func @transform_6(%arg0: i32) -> (i32, i32) {
    %c0_i32 = arith.constant 0 : i32
    %c0_i32_0 = arith.constant 0 : i32
    %c0_i32_1 = arith.constant 0 : i32
    return %c0_i32, %c0_i32_0 : i32, i32
  }
  func.func @transform_7(%arg0: i32) -> (i32, i32) {
    %c0_i32 = arith.constant 0 : i32
    %c0_i32_0 = arith.constant 0 : i32
    %c0_i32_1 = arith.constant 0 : i32
    return %c0_i32, %c0_i32_0 : i32, i32
  }
  func.func @transform_8(%arg0: i32) -> (i32, i32) {
    %c0_i32 = arith.constant 0 : i32
    %c0_i32_0 = arith.constant 0 : i32
    %c0_i32_1 = arith.constant 0 : i32
    return %c0_i32, %c0_i32_0 : i32, i32
  }
  func.func @transform_9(%arg0: i32) -> (i32, i32) {
    %c0_i32 = arith.constant 0 : i32
    %c0_i32_0 = arith.constant 0 : i32
    %c0_i32_1 = arith.constant 0 : i32
    return %c0_i32, %c0_i32_0 : i32, i32
  }
  func.func @transform_10(%arg0: i32) -> (i32, i32) {
    %c0_i32 = arith.constant 0 : i32
    %c0_i32_0 = arith.constant 0 : i32
    %c0_i32_1 = arith.constant 0 : i32
    return %c0_i32, %c0_i32_0 : i32, i32
  }
  func.func @transform_11(%arg0: i32) -> (i32, i32) {
    %c0_i32 = arith.constant 0 : i32
    %c0_i32_0 = arith.constant 0 : i32
    return %arg0, %c0_i32 : i32, i32
  }
}

</mosaic_0001>

<llo_original>
// kernel: _lambda_.1
$region0: #{_lambda_.1}
  #allocation0 [shape = 'u32[]', space=smem, size = 0x4, offset = 0x4, fixed_abs, tag = 'smem constant byte address 0x4 - core index']
  #allocation1 [shape = 'u32[144,128]{1,0:T(1,128)}', space=vmem, size = 0x12000, scoped, tag = 'internal scratch']
  #allocation2 [shape = 'f32[2,2,5,40,16]{4,3,2,1,0:T(8,128)}', space=vmem, size = 0x64000, scoped, tag = 'scratch operand']
  #allocation3 [shape = 'f32[128,144]{1,0:T(8,128)}', space=vmem, size = 0x20000, scoped, tag = 'scratch operand']
  %s0 = inlined_call_operand.vmem [shape: bf16[1,4,128,48], index: 0, kind: input, shape index: {}]
  %s1 = inlined_call_operand.vmem [shape: bf16[48,16], index: 1, kind: input, shape index: {}]
  %s2 = inlined_call_operand.vmem [shape: f32[1,16], index: 2, kind: input, shape index: {}]
  %s3 = inlined_call_operand.vmem [shape: bf16[144,32], index: 3, kind: input, shape index: {}]
  %s4 = inlined_call_operand.vmem [shape: f32[1,32], index: 4, kind: input, shape index: {}]
  %s5 = inlined_call_operand.vmem [shape: bf16[16,32,64], index: 5, kind: input, shape index: {}]
  %s6 = inlined_call_operand.vmem [shape: f32[1,64], index: 6, kind: input, shape index: {}]
  %s7 = inlined_call_operand.vmem [shape: bf16[64,128], index: 7, kind: input, shape index: {}]
  %s8 = inlined_call_operand.vmem [shape: f32[1,128], index: 8, kind: input, shape index: {}]
  %s9 = inlined_call_operand.vmem [shape: bf16[128,128], index: 9, kind: input, shape index: {}]
  %s10 = inlined_call_operand.vmem [shape: f32[1,128], index: 10, kind: input, shape index: {}]
  %s11 = inlined_call_operand.vmem [shape: f32[8,128], index: 11, kind: output, shape index: {}]
  %s12 = sld [smem:[#allocation0]]
  $region54: #{_lambda_.1} parent=0
    _
  %s14 = ssub.s32 1, %s12
  %s15 = scalar_select 0, %s14, %s12
  // Predicated region
  $region2: #{_lambda_.1} parent=0 // pred_check
    _
  $region3: #{_lambda_.1} parent=0 // pred_check_branch
    %17 = sbr.rel (0) target = $region5
  $region4: #{_lambda_.1} parent=0 // pred_region
    _
  $region5: #{_lambda_.1} parent=0 // pred_fallthru
    _
  // Predicated region
  $region6: #{_lambda_.1} parent=0 // pred_check
    _
  $region7: #{_lambda_.1} parent=0 // pred_check_branch
    %19 = sbr.rel (0) target = $region9
  $region8: #{_lambda_.1} parent=0 // pred_region
    _
  $region9: #{_lambda_.1} parent=0 // pred_fallthru
    _
  // Predicated region
  $region10: #{_lambda_.1} parent=0 // pred_check
    _
  $region11: #{_lambda_.1} parent=0 // pred_check_branch
    %21 = sbr.rel (0) target = $region13
  $region12: #{_lambda_.1} parent=0 // pred_region
    _
  $region13: #{_lambda_.1} parent=0 // pred_fallthru
    _
  // Predicated region
  $region14: #{_lambda_.1} parent=0 // pred_check
    _
  $region15: #{_lambda_.1} parent=0 // pred_check_branch
    %23 = sbr.rel (0) target = $region17
  $region16: #{_lambda_.1} parent=0 // pred_region
    _
  $region17: #{_lambda_.1} parent=0 // pred_fallthru
    _
  // Predicated region
  $region18: #{_lambda_.1} parent=0 // pred_check
    _
  $region19: #{_lambda_.1} parent=0 // pred_check_branch
    %25 = sbr.rel (0) target = $region21
  $region20: #{_lambda_.1} parent=0 // pred_region
    _
  $region21: #{_lambda_.1} parent=0 // pred_fallthru
    _
  // Predicated region
  $region22: #{_lambda_.1} parent=0 // pred_check
    _
  $region23: #{_lambda_.1} parent=0 // pred_check_branch
    %27 = sbr.rel (0) target = $region25
  $region24: #{_lambda_.1} parent=0 // pred_region
    _
  $region25: #{_lambda_.1} parent=0 // pred_fallthru
    _
  // Predicated region
  $region26: #{_lambda_.1} parent=0 // pred_check
    _
  $region27: #{_lambda_.1} parent=0 // pred_check_branch
    %29 = sbr.rel (0) target = $region29
  $region28: #{_lambda_.1} parent=0 // pred_region
    _
  $region29: #{_lambda_.1} parent=0 // pred_fallthru
    _
  // Predicated region
  $region30: #{_lambda_.1} parent=0 // pred_check
    _
  $region31: #{_lambda_.1} parent=0 // pred_check_branch
    %31 = sbr.rel (0) target = $region33
  $region32: #{_lambda_.1} parent=0 // pred_region
    _
  $region33: #{_lambda_.1} parent=0 // pred_fallthru
    _
  // Predicated region
  $region34: #{_lambda_.1} parent=0 // pred_check
    _
  $region35: #{_lambda_.1} parent=0 // pred_check_branch
    %33 = sbr.rel (0) target = $region37
  $region36: #{_lambda_.1} parent=0 // pred_region
    _
  $region37: #{_lambda_.1} parent=0 // pred_fallthru
    _
  // Predicated region
  $region38: #{_lambda_.1} parent=0 // pred_check
    _
  $region39: #{_lambda_.1} parent=0 // pred_check_branch
    %35 = sbr.rel (0) target = $region41
  $region40: #{_lambda_.1} parent=0 // pred_region
    _
  $region41: #{_lambda_.1} parent=0 // pred_fallthru
    _
  // Predicated region
  $region42: #{_lambda_.1} parent=0 // pred_check
    _
  $region43: #{_lambda_.1} parent=0 // pred_check_branch
    %37 = sbr.rel (0) target = $region45
  $region44: #{_lambda_.1} parent=0 // pred_region
    _
  $region45: #{_lambda_.1} parent=0 // pred_fallthru
    _
  %vm39 = vcmask 130048
  %40 = vst.msk [vmem:[#allocation2] sm:$0xff] %vm39, 0.0
  %41 = vst.msk [vmem:[#allocation2 + $0x8] sm:$0xff] %vm39, 0.0
  %42 = vst.msk [vmem:[#allocation2 + $0x10] sm:$0xff] %vm39, 0.0
  %43 = vst.msk [vmem:[#allocation2 + $0x18] sm:$0xff] %vm39, 0.0
  %44 = vst.msk [vmem:[#allocation2 + $0x20] sm:$0xff] %vm39, 0.0
  %45 = vst.msk [vmem:[#allocation2] sm:$0xff] %vm39, 0.0
  %46 = vst.msk [vmem:[#allocation2 + $0x28] sm:$0xff] %vm39, 0.0
  %47 = vst.msk [vmem:[#allocation2 + $0x50] sm:$0xff] %vm39, 0.0
  %48 = vst.msk [vmem:[#allocation2 + $0x78] sm:$0xff] %vm39, 0.0
  %49 = vst.msk [vmem:[#allocation2 + $0xa0] sm:$0xff] %vm39, 0.0
  %s50 = scalar_lea.vmem [#allocation2], 200
  %51 = vst.msk [vmem:[%s50] sm:$0xff] %vm39, 0.0
  %52 = vst.msk [vmem:[%s50 + $0x8] sm:$0xff] %vm39, 0.0
  %53 = vst.msk [vmem:[%s50 + $0x10] sm:$0xff] %vm39, 0.0
  %54 = vst.msk [vmem:[%s50 + $0x18] sm:$0xff] %vm39, 0.0
  %55 = vst.msk [vmem:[%s50 + $0x20] sm:$0xff] %vm39, 0.0
  %56 = vst.msk [vmem:[%s50] sm:$0xff] %vm39, 0.0
  %57 = vst.msk [vmem:[%s50 + $0x28] sm:$0xff] %vm39, 0.0
  %58 = vst.msk [vmem:[%s50 + $0x50] sm:$0xff] %vm39, 0.0
  %59 = vst.msk [vmem:[%s50 + $0x78] sm:$0xff] %vm39, 0.0
  %60 = vst.msk [vmem:[%s50 + $0xa0] sm:$0xff] %vm39, 0.0
  %s61 = scalar_lea.vmem [#allocation2], 400
  %62 = vst.msk [vmem:[%s61] sm:$0xff] %vm39, 0.0
  %63 = vst.msk [vmem:[%s61 + $0x8] sm:$0xff] %vm39, 0.0
  %64 = vst.msk [vmem:[%s61 + $0x10] sm:$0xff] %vm39, 0.0
  %65 = vst.msk [vmem:[%s61 + $0x18] sm:$0xff] %vm39, 0.0
  %66 = vst.msk [vmem:[%s61 + $0x20] sm:$0xff] %vm39, 0.0
  %67 = vst.msk [vmem:[%s61] sm:$0xff] %vm39, 0.0
  %68 = vst.msk [vmem:[%s61 + $0x28] sm:$0xff] %vm39, 0.0
  %69 = vst.msk [vmem:[%s61 + $0x50] sm:$0xff] %vm39, 0.0
  %70 = vst.msk [vmem:[%s61 + $0x78] sm:$0xff] %vm39, 0.0
  %71 = vst.msk [vmem:[%s61 + $0xa0] sm:$0xff] %vm39, 0.0
  %s72 = scalar_lea.vmem [#allocation2], 600
  %73 = vst.msk [vmem:[%s72] sm:$0xff] %vm39, 0.0
  %74 = vst.msk [vmem:[%s72 + $0x8] sm:$0xff] %vm39, 0.0
  %75 = vst.msk [vmem:[%s72 + $0x10] sm:$0xff] %vm39, 0.0
  %76 = vst.msk [vmem:[%s72 + $0x18] sm:$0xff] %vm39, 0.0
  %77 = vst.msk [vmem:[%s72 + $0x20] sm:$0xff] %vm39, 0.0
  %78 = vst.msk [vmem:[%s72] sm:$0xff] %vm39, 0.0
  %79 = vst.msk [vmem:[%s72 + $0x28] sm:$0xff] %vm39, 0.0
  %80 = vst.msk [vmem:[%s72 + $0x50] sm:$0xff] %vm39, 0.0
  %81 = vst.msk [vmem:[%s72 + $0x78] sm:$0xff] %vm39, 0.0
  %82 = vst.msk [vmem:[%s72 + $0xa0] sm:$0xff] %vm39, 0.0
  %v83 = vld [vmem:[%s1] sm:$0xf]
  %v84 = vld [vmem:[%s1 + $0x4] sm:$0xf]
  %v85 = vld [vmem:[%s1 + $0x8] sm:$0xf]
  %v86 = vld [vmem:[%s1 + $0xc] sm:$0xf]
  %v87 = vld [vmem:[%s1 + $0x10] sm:$0xf]
  %v88 = vld [vmem:[%s1 + $0x14] sm:$0xf]
  %v89 = vld [vmem:[%s2] sm:$0x1]
  %v90 = vld [vmem:[%s0] sm:$0xf]
  %v91 = vld [vmem:[%s0 + $0x4] sm:$0xf]
  %v92 = vld [vmem:[%s0 + $0x8] sm:$0xf]
  %v93 = vld [vmem:[%s0 + $0xc] sm:$0xf]
  %v94 = vld [vmem:[%s0 + $0x10] sm:$0xf]
  %v95 = vld [vmem:[%s0 + $0x14] sm:$0xf]
  %v96 = vld [vmem:[%s0 + $0x18] sm:$0xf]
  %v97 = vld [vmem:[%s0 + $0x1c] sm:$0xf]
  %v98 = vld [vmem:[%s0 + $0x20] sm:$0xf]
  %v99 = vld [vmem:[%s0 + $0x24] sm:$0xf]
  %v100 = vld [vmem:[%s0 + $0x28] sm:$0xf]
  %v101 = vld [vmem:[%s0 + $0x2c] sm:$0xf]
  %v102 = vld [vmem:[%s0 + $0x30] sm:$0xf]
  %v103 = vld [vmem:[%s0 + $0x34] sm:$0xf]
  %v104 = vld [vmem:[%s0 + $0x38] sm:$0xf]
  %v105 = vld [vmem:[%s0 + $0x3c] sm:$0xf]
  %v107 = vlaneseq
  %v108 = vshrl.u32 %v107, 7
  %v109 = vsub.s32 0, %v108
  %v110 = vrot.slane %v89, %v109
  %v128 = vunpack.c.l.b16 %v90
  %v129 = vunpack.c.l.b16 %v91
  %v130 = vunpack.c.l.b16 %v92
  %v131 = vunpack.c.l.b16 %v93
  %v132 = vunpack.c.l.b16 %v94
  %v133 = vunpack.c.l.b16 %v95
  %v134 = vunpack.c.l.b16 %v96
  %v135 = vunpack.c.l.b16 %v97
  %v136 = vunpack.c.l.b16 %v98
  %v137 = vunpack.c.l.b16 %v99
  %v138 = vunpack.c.l.b16 %v100
  %v139 = vunpack.c.l.b16 %v101
  %v140 = vunpack.c.l.b16 %v102
  %v141 = vunpack.c.l.b16 %v103
  %v142 = vunpack.c.l.b16 %v104
  %v143 = vunpack.c.l.b16 %v105
  %v144 = vpack.c.b16 %v129, %v128
  %v145 = vpack.c.b16 %v131, %v130
  %v146 = vpack.c.b16 %v133, %v132
  %v147 = vpack.c.b16 %v135, %v134
  %v148 = vpack.c.b16 %v137, %v136
  %v149 = vpack.c.b16 %v139, %v138
  %v150 = vpack.c.b16 %v141, %v140
  %v151 = vpack.c.b16 %v143, %v142
  %v158 = vunpack.c.l.b16 %v83
  %v159 = vunpack.c.l.b16 %v84
  %v160 = vunpack.c.l.b16 %v85
  %v161 = vunpack.c.l.b16 %v86
  %v162 = vunpack.c.l.b16 %v87
  %v163 = vunpack.c.l.b16 %v88
  %v164 = vpack.c.b16 %v159, %v158
  %v165 = vpack.c.b16 %v161, %v160
  %v166 = vpack.c.b16 %v163, %v162
  %vm170 = vcmask 392192
  %v172 = vsel %vm170, %v144, 0
  %v175 = vsel %vm170, %v145, 0
  %v178 = vsel %vm170, %v146, 0
  %v181 = vsel %vm170, %v147, 0
  %v184 = vsel %vm170, %v148, 0
  %v187 = vsel %vm170, %v149, 0
  %v190 = vsel %vm170, %v150, 0
  %v193 = vsel %vm170, %v151, 0
  %195 = vmatprep.subr.bf16.mxu0 0
  %196 = vmatpush1.bf16.msra.mxu0 %v164
  %197 = vmatprep.subr.bf16.mxu0 0
  %198 = vmatpush1.bf16.msra.mxu0 %v165
  %199 = vmatprep.subr.bf16.mxu0 0
  %200 = vmatpush1.bf16.msra.mxu0 %v166
  %201 = vmatprep.subr.bf16.mxu0 0
  %202 = vmatpush1.bf16.msra.mxu0 0
  %203 = vmatprep.subr.bf16.mxu0 0
  %204 = vmatpush1.bf16.msra.mxu0 0
  %205 = vmatprep.subr.bf16.mxu0 0
  %206 = vmatpush1.bf16.msra.mxu0 0
  %207 = vmatprep.subr.bf16.mxu0 0
  %208 = vmatpush1.bf16.msra.mxu0 0
  %209 = vmatprep.subr.bf16.mxu0 0
  %210 = vmatpush1.bf16.msra.mxu0 0
  %211 = vmatprep.subr.bf16.mxu0 0
  %212 = vmatpush1.bf16.msra.mxu0 0
  %213 = vmatprep.subr.bf16.mxu0 0
  %214 = vmatpush1.bf16.msra.mxu0 0
  %215 = vmatprep.subr.bf16.mxu0 0
  %216 = vmatpush1.bf16.msra.mxu0 0
  %217 = vmatprep.subr.bf16.mxu0 0
  %218 = vmatpush1.bf16.msra.mxu0 0
  %219 = vmatprep.subr.bf16.mxu0 0
  %220 = vmatpush1.bf16.msra.mxu0 0
  %221 = vmatprep.subr.bf16.mxu0 0
  %222 = vmatpush1.bf16.msra.mxu0 0
  %223 = vmatprep.subr.bf16.mxu0 0
  %224 = vmatpush1.bf16.msra.mxu0 0
  %225 = vmatprep.subr.bf16.mxu0 0
  %226 = vmatpush1.bf16.msra.mxu0 0
  %227 = vmatprep.mubr.bf16.mxu0 0
  %228 = vmatmul.mubr.bf16.gmra.mrb[0].mxu0 %v172
  %v229 = vpop.f32.mrb[0].mxu0
  %v230 = vadd.f32 %v110, %v229
  %v231 = vpop.f32.mrb[0].mxu0
  %v232 = vpop.f32.mrb[0].mxu0
  %v233 = vadd.f32 %v110, %v232
  %v234 = vpop.f32.mrb[0].mxu0
  %235 = vmatprep.mubr.bf16.mxu0 0
  %236 = vmatmul.mubr.bf16.gmra.mrb[0].mxu0 %v175
  %v237 = vpop.f32.mrb[0].mxu0
  %v238 = vadd.f32 %v110, %v237
  %v239 = vpop.f32.mrb[0].mxu0
  %v240 = vpop.f32.mrb[0].mxu0
  %v241 = vadd.f32 %v110, %v240
  %v242 = vpop.f32.mrb[0].mxu0
  %243 = vmatprep.mubr.bf16.mxu0 0
  %244 = vmatmul.mubr.bf16.gmra.mrb[0].mxu0 %v178
  %v245 = vpop.f32.mrb[0].mxu0
  %v246 = vadd.f32 %v110, %v245
  %v247 = vpop.f32.mrb[0].mxu0
  %v248 = vpop.f32.mrb[0].mxu0
  %v249 = vadd.f32 %v110, %v248
  %v250 = vpop.f32.mrb[0].mxu0
  %251 = vmatprep.mubr.bf16.mxu0 0
  %252 = vmatmul.mubr.bf16.gmra.mrb[0].mxu0 %v181
  %v253 = vpop.f32.mrb[0].mxu0
  %v254 = vadd.f32 %v110, %v253
  %v255 = vpop.f32.mrb[0].mxu0
  %v256 = vpop.f32.mrb[0].mxu0
  %v257 = vadd.f32 %v110, %v256
  %v258 = vpop.f32.mrb[0].mxu0
  %259 = vmatprep.mubr.bf16.mxu0 0
  %260 = vmatmul.mubr.bf16.gmra.mrb[0].mxu0 %v184
  %v261 = vpop.f32.mrb[0].mxu0
  %v262 = vadd.f32 %v110, %v261
  %v263 = vpop.f32.mrb[0].mxu0
  %v264 = vpop.f32.mrb[0].mxu0
  %v265 = vadd.f32 %v110, %v264
  %v266 = vpop.f32.mrb[0].mxu0
  %267 = vmatprep.mubr.bf16.mxu0 0
  %268 = vmatmul.mubr.bf16.gmra.mrb[0].mxu0 %v187
  %v269 = vpop.f32.mrb[0].mxu0
  %v270 = vadd.f32 %v110, %v269
  %v271 = vpop.f32.mrb[0].mxu0
  %v272 = vpop.f32.mrb[0].mxu0
  %v273 = vadd.f32 %v110, %v272
  %v274 = vpop.f32.mrb[0].mxu0
  %275 = vmatprep.mubr.bf16.mxu0 0
  %276 = vmatmul.mubr.bf16.gmra.mrb[0].mxu0 %v190
  %v277 = vpop.f32.mrb[0].mxu0
  %v278 = vadd.f32 %v110, %v277
  %v279 = vpop.f32.mrb[0].mxu0
  %v280 = vpop.f32.mrb[0].mxu0
  %v281 = vadd.f32 %v110, %v280
  %v282 = vpop.f32.mrb[0].mxu0
  %283 = vmatprep.mubr.bf16.mxu0 0
  %284 = vmatmul.mubr.bf16.gmra.mrb[0].mxu0 %v193
  %v285 = vpop.f32.mrb[0].mxu0
  %v286 = vadd.f32 %v110, %v285
  %v287 = vpop.f32.mrb[0].mxu0
  %v288 = vpop.f32.mrb[0].mxu0
  %v289 = vadd.f32 %v110, %v288
  %v290 = vpop.f32.mrb[0].mxu0
  %291 = vdwg.mxu0
  %v292 = vmax.f32 %v230, 0.0
  %v293 = vmax.f32 %v233, 0.0
  %v294 = vmax.f32 %v238, 0.0
  %v295 = vmax.f32 %v241, 0.0
  %v296 = vmax.f32 %v246, 0.0
  %v297 = vmax.f32 %v249, 0.0
  %v298 = vmax.f32 %v254, 0.0
  %v299 = vmax.f32 %v257, 0.0
  %v300 = vmax.f32 %v262, 0.0
  %v301 = vmax.f32 %v265, 0.0
  %v302 = vmax.f32 %v270, 0.0
  %v303 = vmax.f32 %v273, 0.0
  %v304 = vmax.f32 %v278, 0.0
  %v305 = vmax.f32 %v281, 0.0
  %v306 = vmax.f32 %v286, 0.0
  %v307 = vmax.f32 %v289, 0.0
  %s308 = scalar_lea.vmem [#allocation2], 40
  %309 = vst.msk [vmem:[%s308 + $0x8] sm:$0xff] %vm39, %v292
  %310 = vst.msk [vmem:[%s308 + $0x10] sm:$0xff] %vm39, %v293
  %311 = vst.msk [vmem:[%s308 + $0x18] sm:$0xff] %vm39, %v294
  %312 = vst.msk [vmem:[%s308 + $0x20] sm:$0xff] %vm39, %v295
  %313 = vst.msk [vmem:[%s308 + $0x30] sm:$0xff] %vm39, %v296
  %314 = vst.msk [vmem:[%s308 + $0x38] sm:$0xff] %vm39, %v297
  %315 = vst.msk [vmem:[%s308 + $0x40] sm:$0xff] %vm39, %v298
  %316 = vst.msk [vmem:[%s308 + $0x48] sm:$0xff] %vm39, %v299
  %317 = vst.msk [vmem:[%s308 + $0x58] sm:$0xff] %vm39, %v300
  %318 = vst.msk [vmem:[%s308 + $0x60] sm:$0xff] %vm39, %v301
  %319 = vst.msk [vmem:[%s308 + $0x68] sm:$0xff] %vm39, %v302
  %320 = vst.msk [vmem:[%s308 + $0x70] sm:$0xff] %vm39, %v303
  %321 = vst.msk [vmem:[%s308 + $0x80] sm:$0xff] %vm39, %v304
  %322 = vst.msk [vmem:[%s308 + $0x88] sm:$0xff] %vm39, %v305
  %323 = vst.msk [vmem:[%s308 + $0x90] sm:$0xff] %vm39, %v306
  %324 = vst.msk [vmem:[%s308 + $0x98] sm:$0xff] %vm39, %v307
  %s325 = scalar_lea.vmem %s0, 64
  %v326 = vld [vmem:[%s325] sm:$0xf]
  %v327 = vld [vmem:[%s325 + $0x4] sm:$0xf]
  %v328 = vld [vmem:[%s325 + $0x8] sm:$0xf]
  %v329 = vld [vmem:[%s325 + $0xc] sm:$0xf]
  %v330 = vld [vmem:[%s325 + $0x10] sm:$0xf]
  %v331 = vld [vmem:[%s325 + $0x14] sm:$0xf]
  %v332 = vld [vmem:[%s325 + $0x18] sm:$0xf]
  %v333 = vld [vmem:[%s325 + $0x1c] sm:$0xf]
  %v334 = vld [vmem:[%s325 + $0x20] sm:$0xf]
  %v335 = vld [vmem:[%s325 + $0x24] sm:$0xf]
  %v336 = vld [vmem:[%s325 + $0x28] sm:$0xf]
  %v337 = vld [vmem:[%s325 + $0x2c] sm:$0xf]
  %v338 = vld [vmem:[%s325 + $0x30] sm:$0xf]
  %v339 = vld [vmem:[%s325 + $0x34] sm:$0xf]
  %v340 = vld [vmem:[%s325 + $0x38] sm:$0xf]
  %v341 = vld [vmem:[%s325 + $0x3c] sm:$0xf]
  %v358 = vunpack.c.l.b16 %v326
  %v359 = vunpack.c.l.b16 %v327
  %v360 = vunpack.c.l.b16 %v328
  %v361 = vunpack.c.l.b16 %v329
  %v362 = vunpack.c.l.b16 %v330
  %v363 = vunpack.c.l.b16 %v331
  %v364 = vunpack.c.l.b16 %v332
  %v365 = vunpack.c.l.b16 %v333
  %v366 = vunpack.c.l.b16 %v334
  %v367 = vunpack.c.l.b16 %v335
  %v368 = vunpack.c.l.b16 %v336
  %v369 = vunpack.c.l.b16 %v337
  %v370 = vunpack.c.l.b16 %v338
  %v371 = vunpack.c.l.b16 %v339
  %v372 = vunpack.c.l.b16 %v340
  %v373 = vunpack.c.l.b16 %v341
  %v374 = vpack.c.b16 %v359, %v358
  %v375 = vpack.c.b16 %v361, %v360
  %v376 = vpack.c.b16 %v363, %v362
  %v377 = vpack.c.b16 %v365, %v364
  %v378 = vpack.c.b16 %v367, %v366
  %v379 = vpack.c.b16 %v369, %v368
  %v380 = vpack.c.b16 %v371, %v370
  %v381 = vpack.c.b16 %v373, %v372
  %v383 = vsel %vm170, %v374, 0
  %v386 = vsel %vm170, %v375, 0
  %v389 = vsel %vm170, %v376, 0
  %v392 = vsel %vm170, %v377, 0
  %v395 = vsel %vm170, %v378, 0
  %v398 = vsel %vm170, %v379, 0
  %v401 = vsel %vm170, %v380, 0
  %v404 = vsel %vm170, %v381, 0
  %406 = vmatprep.subr.bf16.mxu0 0
  %407 = vmatpush1.bf16.msra.mxu0 %v164
  %408 = vmatprep.subr.bf16.mxu0 0
  %409 = vmatpush1.bf16.msra.mxu0 %v165
  %410 = vmatprep.subr.bf16.mxu0 0
  %411 = vmatpush1.bf16.msra.mxu0 %v166
  %412 = vmatprep.subr.bf16.mxu0 0
  %413 = vmatpush1.bf16.msra.mxu0 0
  %414 = vmatprep.subr.bf16.mxu0 0
  %415 = vmatpush1.bf16.msra.mxu0 0
  %416 = vmatprep.subr.bf16.mxu0 0
  %417 = vmatpush1.bf16.msra.mxu0 0
  %418 = vmatprep.subr.bf16.mxu0 0
  %419 = vmatpush1.bf16.msra.mxu0 0
  %420 = vmatprep.subr.bf16.mxu0 0
  %421 = vmatpush1.bf16.msra.mxu0 0
  %422 = vmatprep.subr.bf16.mxu0 0
  %423 = vmatpush1.bf16.msra.mxu0 0
  %424 = vmatprep.subr.bf16.mxu0 0
  %425 = vmatpush1.bf16.msra.mxu0 0
  %426 = vmatprep.subr.bf16.mxu0 0
  %427 = vmatpush1.bf16.msra.mxu0 0
  %428 = vmatprep.subr.bf16.mxu0 0
  %429 = vmatpush1.bf16.msra.mxu0 0
  %430 = vmatprep.subr.bf16.mxu0 0
  %431 = vmatpush1.bf16.msra.mxu0 0
  %432 = vmatprep.subr.bf16.mxu0 0
  %433 = vmatpush1.bf16.msra.mxu0 0
  %434 = vmatprep.subr.bf16.mxu0 0
  %435 = vmatpush1.bf16.msra.mxu0 0
  %436 = vmatprep.subr.bf16.mxu0 0
  %437 = vmatpush1.bf16.msra.mxu0 0
  %438 = vmatprep.mubr.bf16.mxu0 0
  %439 = vmatmul.mubr.bf16.gmra.mrb[0].mxu0 %v383
  %v440 = vpop.f32.mrb[0].mxu0
  %v441 = vadd.f32 %v110, %v440
  %v442 = vpop.f32.mrb[0].mxu0
  %v443 = vpop.f32.mrb[0].mxu0
  %v444 = vadd.f32 %v110, %v443
  %v445 = vpop.f32.mrb[0].mxu0
  %446 = vmatprep.mubr.bf16.mxu0 0
  %447 = vmatmul.mubr.bf16.gmra.mrb[0].mxu0 %v386
  %v448 = vpop.f32.mrb[0].mxu0
  %v449 = vadd.f32 %v110, %v448
  %v450 = vpop.f32.mrb[0].mxu0
  %v451 = vpop.f32.mrb[0].mxu0
  %v452 = vadd.f32 %v110, %v451
  %v453 = vpop.f32.mrb[0].mxu0
  %454 = vmatprep.mubr.bf16.mxu0 0
  %455 = vmatmul.mubr.bf16.gmra.mrb[0].mxu0 %v389
  %v456 = vpop.f32.mrb[0].mxu0
  %v457 = vadd.f32 %v110, %v456
  %v458 = vpop.f32.mrb[0].mxu0
  %v459 = vpop.f32.mrb[0].mxu0
  %v460 = vadd.f32 %v110, %v459
  %v461 = vpop.f32.mrb[0].mxu0
  %462 = vmatprep.mubr.bf16.mxu0 0
  %463 = vmatmul.mubr.bf16.gmra.mrb[0].mxu0 %v392
  %v464 = vpop.f32.mrb[0].mxu0
  %v465 = vadd.f32 %v110, %v464
  %v466 = vpop.f32.mrb[0].mxu0
  %v467 = vpop.f32.mrb[0].mxu0
  %v468 = vadd.f32 %v110, %v467
  %v469 = vpop.f32.mrb[0].mxu0
  %470 = vmatprep.mubr.bf16.mxu0 0
  %471 = vmatmul.mubr.bf16.gmra.mrb[0].mxu0 %v395
  %v472 = vpop.f32.mrb[0].mxu0
  %v473 = vadd.f32 %v110, %v472
  %v474 = vpop.f32.mrb[0].mxu0
  %v475 = vpop.f32.mrb[0].mxu0
  %v476 = vadd.f32 %v110, %v475
  %v477 = vpop.f32.mrb[0].mxu0
  %478 = vmatprep.mubr.bf16.mxu0 0
  %479 = vmatmul.mubr.bf16.gmra.mrb[0].mxu0 %v398
  %v480 = vpop.f32.mrb[0].mxu0
  %v481 = vadd.f32 %v110, %v480
  %v482 = vpop.f32.mrb[0].mxu0
  %v483 = vpop.f32.mrb[0].mxu0
  %v484 = vadd.f32 %v110, %v483
  %v485 = vpop.f32.mrb[0].mxu0
  %486 = vmatprep.mubr.bf16.mxu0 0
  %487 = vmatmul.mubr.bf16.gmra.mrb[0].mxu0 %v401
  %v488 = vpop.f32.mrb[0].mxu0
  %v489 = vadd.f32 %v110, %v488
  %v490 = vpop.f32.mrb[0].mxu0
  %v491 = vpop.f32.mrb[0].mxu0
  %v492 = vadd.f32 %v110, %v491
  %v493 = vpop.f32.mrb[0].mxu0
  %494 = vmatprep.mubr.bf16.mxu0 0
  %495 = vmatmul.mubr.bf16.gmra.mrb[0].mxu0 %v404
  %v496 = vpop.f32.mrb[0].mxu0
  %v497 = vadd.f32 %v110, %v496
  %v498 = vpop.f32.mrb[0].mxu0
  %v499 = vpop.f32.mrb[0].mxu0
  %v500 = vadd.f32 %v110, %v499
  %v501 = vpop.f32.mrb[0].mxu0
  %502 = vdwg.mxu0
  %v503 = vmax.f32 %v441, 0.0
  %v504 = vmax.f32 %v444, 0.0
  %v505 = vmax.f32 %v449, 0.0
  %v506 = vmax.f32 %v452, 0.0
  %v507 = vmax.f32 %v457, 0.0
  %v508 = vmax.f32 %v460, 0.0
  %v509 = vmax.f32 %v465, 0.0
  %v510 = vmax.f32 %v468, 0.0
  %v511 = vmax.f32 %v473, 0.0
  %v512 = vmax.f32 %v476, 0.0
  %v513 = vmax.f32 %v481, 0.0
  %v514 = vmax.f32 %v484, 0.0
  %v515 = vmax.f32 %v489, 0.0
  %v516 = vmax.f32 %v492, 0.0
  %v517 = vmax.f32 %v497, 0.0
  %v518 = vmax.f32 %v500, 0.0
  %s519 = scalar_lea.vmem [#allocation2], 240
  %520 = vst.msk [vmem:[%s519 + $0x8] sm:$0xff] %vm39, %v503
  %521 = vst.msk [vmem:[%s519 + $0x10] sm:$0xff] %vm39, %v504
  %522 = vst.msk [vmem:[%s519 + $0x18] sm:$0xff] %vm39, %v505
  %523 = vst.msk [vmem:[%s519 + $0x20] sm:$0xff] %vm39, %v506
  %524 = vst.msk [vmem:[%s519 + $0x30] sm:$0xff] %vm39, %v507
  %525 = vst.msk [vmem:[%s519 + $0x38] sm:$0xff] %vm39, %v508
  %526 = vst.msk [vmem:[%s519 + $0x40] sm:$0xff] %vm39, %v509
  %527 = vst.msk [vmem:[%s519 + $0x48] sm:$0xff] %vm39, %v510
  %528 = vst.msk [vmem:[%s519 + $0x58] sm:$0xff] %vm39, %v511
  %529 = vst.msk [vmem:[%s519 + $0x60] sm:$0xff] %vm39, %v512
  %530 = vst.msk [vmem:[%s519 + $0x68] sm:$0xff] %vm39, %v513
  %531 = vst.msk [vmem:[%s519 + $0x70] sm:$0xff] %vm39, %v514
  %532 = vst.msk [vmem:[%s519 + $0x80] sm:$0xff] %vm39, %v515
  %533 = vst.msk [vmem:[%s519 + $0x88] sm:$0xff] %vm39, %v516
  %534 = vst.msk [vmem:[%s519 + $0x90] sm:$0xff] %vm39, %v517
  %535 = vst.msk [vmem:[%s519 + $0x98] sm:$0xff] %vm39, %v518
  %s536 = scalar_lea.vmem %s0, 128
  %v537 = vld [vmem:[%s536] sm:$0xf]
  %v538 = vld [vmem:[%s536 + $0x4] sm:$0xf]
  %v539 = vld [vmem:[%s536 + $0x8] sm:$0xf]
  %v540 = vld [vmem:[%s536 + $0xc] sm:$0xf]
  %v541 = vld [vmem:[%s536 + $0x10] sm:$0xf]
  %v542 = vld [vmem:[%s536 + $0x14] sm:$0xf]
  %v543 = vld [vmem:[%s536 + $0x18] sm:$0xf]
  %v544 = vld [vmem:[%s536 + $0x1c] sm:$0xf]
  %v545 = vld [vmem:[%s536 + $0x20] sm:$0xf]
  %v546 = vld [vmem:[%s536 + $0x24] sm:$0xf]
  %v547 = vld [vmem:[%s536 + $0x28] sm:$0xf]
  %v548 = vld [vmem:[%s536 + $0x2c] sm:$0xf]
  %v549 = vld [vmem:[%s536 + $0x30] sm:$0xf]
  %v550 = vld [vmem:[%s536 + $0x34] sm:$0xf]
  %v551 = vld [vmem:[%s536 + $0x38] sm:$0xf]
  %v552 = vld [vmem:[%s536 + $0x3c] sm:$0xf]
  %v569 = vunpack.c.l.b16 %v537
  %v570 = vunpack.c.l.b16 %v538
  %v571 = vunpack.c.l.b16 %v539
  %v572 = vunpack.c.l.b16 %v540
  %v573 = vunpack.c.l.b16 %v541
  %v574 = vunpack.c.l.b16 %v542
  %v575 = vunpack.c.l.b16 %v543
  %v576 = vunpack.c.l.b16 %v544
  %v577 = vunpack.c.l.b16 %v545
  %v578 = vunpack.c.l.b16 %v546
  %v579 = vunpack.c.l.b16 %v547
  %v580 = vunpack.c.l.b16 %v548
  %v581 = vunpack.c.l.b16 %v549
  %v582 = vunpack.c.l.b16 %v550
  %v583 = vunpack.c.l.b16 %v551
  %v584 = vunpack.c.l.b16 %v552
  %v585 = vpack.c.b16 %v570, %v569
  %v586 = vpack.c.b16 %v572, %v571
  %v587 = vpack.c.b16 %v574, %v573
  %v588 = vpack.c.b16 %v576, %v575
  %v589 = vpack.c.b16 %v578, %v577
  %v590 = vpack.c.b16 %v580, %v579
  %v591 = vpack.c.b16 %v582, %v581
  %v592 = vpack.c.b16 %v584, %v583
  %v594 = vsel %vm170, %v585, 0
  %v597 = vsel %vm170, %v586, 0
  %v600 = vsel %vm170, %v587, 0
  %v603 = vsel %vm170, %v588, 0
  %v606 = vsel %vm170, %v589, 0
  %v609 = vsel %vm170, %v590, 0
  %v612 = vsel %vm170, %v591, 0
  %v615 = vsel %vm170, %v592, 0
  %617 = vmatprep.subr.bf16.mxu0 0
  %618 = vmatpush1.bf16.msra.mxu0 %v164
  %619 = vmatprep.subr.bf16.mxu0 0
  %620 = vmatpush1.bf16.msra.mxu0 %v165
  %621 = vmatprep.subr.bf16.mxu0 0
  %622 = vmatpush1.bf16.msra.mxu0 %v166
  %623 = vmatprep.subr.bf16.mxu0 0
  %624 = vmatpush1.bf16.msra.mxu0 0
  %625 = vmatprep.subr.bf16.mxu0 0
  %626 = vmatpush1.bf16.msra.mxu0 0
  %627 = vmatprep.subr.bf16.mxu0 0
  %628 = vmatpush1.bf16.msra.mxu0 0
  %629 = vmatprep.subr.bf16.mxu0 0
  %630 = vmatpush1.bf16.msra.mxu0 0
  %631 = vmatprep.subr.bf16.mxu0 0
  %632 = vmatpush1.bf16.msra.mxu0 0
  %633 = vmatprep.subr.bf16.mxu0 0
  %634 = vmatpush1.bf16.msra.mxu0 0
  %635 = vmatprep.subr.bf16.mxu0 0
  %636 = vmatpush1.bf16.msra.mxu0 0
  %637 = vmatprep.subr.bf16.mxu0 0
  %638 = vmatpush1.bf16.msra.mxu0 0
  %639 = vmatprep.subr.bf16.mxu0 0
  %640 = vmatpush1.bf16.msra.mxu0 0
  %641 = vmatprep.subr.bf16.mxu0 0
  %642 = vmatpush1.bf16.msra.mxu0 0
  %643 = vmatprep.subr.bf16.mxu0 0
  %644 = vmatpush1.bf16.msra.mxu0 0
  %645 = vmatprep.subr.bf16.mxu0 0
  %646 = vmatpush1.bf16.msra.mxu0 0
  %647 = vmatprep.subr.bf16.mxu0 0
  %648 = vmatpush1.bf16.msra.mxu0 0
  %649 = vmatprep.mubr.bf16.mxu0 0
  %650 = vmatmul.mubr.bf16.gmra.mrb[0].mxu0 %v594
  %v651 = vpop.f32.mrb[0].mxu0
  %v652 = vadd.f32 %v110, %v651
  %v653 = vpop.f32.mrb[0].mxu0
  %v654 = vpop.f32.mrb[0].mxu0
  %v655 = vadd.f32 %v110, %v654
  %v656 = vpop.f32.mrb[0].mxu0
  %657 = vmatprep.mubr.bf16.mxu0 0
  %658 = vmatmul.mubr.bf16.gmra.mrb[0].mxu0 %v597
  %v659 = vpop.f32.mrb[0].mxu0
  %v660 = vadd.f32 %v110, %v659
  %v661 = vpop.f32.mrb[0].mxu0
  %v662 = vpop.f32.mrb[0].mxu0
  %v663 = vadd.f32 %v110, %v662
  %v664 = vpop.f32.mrb[0].mxu0
  %665 = vmatprep.mubr.bf16.mxu0 0
  %666 = vmatmul.mubr.bf16.gmra.mrb[0].mxu0 %v600
  %v667 = vpop.f32.mrb[0].mxu0
  %v668 = vadd.f32 %v110, %v667
  %v669 = vpop.f32.mrb[0].mxu0
  %v670 = vpop.f32.mrb[0].mxu0
  %v671 = vadd.f32 %v110, %v670
  %v672 = vpop.f32.mrb[0].mxu0
  %673 = vmatprep.mubr.bf16.mxu0 0
  %674 = vmatmul.mubr.bf16.gmra.mrb[0].mxu0 %v603
  %v675 = vpop.f32.mrb[0].mxu0
  %v676 = vadd.f32 %v110, %v675
  %v677 = vpop.f32.mrb[0].mxu0
  %v678 = vpop.f32.mrb[0].mxu0
  %v679 = vadd.f32 %v110, %v678
  %v680 = vpop.f32.mrb[0].mxu0
  %681 = vmatprep.mubr.bf16.mxu0 0
  %682 = vmatmul.mubr.bf16.gmra.mrb[0].mxu0 %v606
  %v683 = vpop.f32.mrb[0].mxu0
  %v684 = vadd.f32 %v110, %v683
  %v685 = vpop.f32.mrb[0].mxu0
  %v686 = vpop.f32.mrb[0].mxu0
  %v687 = vadd.f32 %v110, %v686
  %v688 = vpop.f32.mrb[0].mxu0
  %689 = vmatprep.mubr.bf16.mxu0 0
  %690 = vmatmul.mubr.bf16.gmra.mrb[0].mxu0 %v609
  %v691 = vpop.f32.mrb[0].mxu0
  %v692 = vadd.f32 %v110, %v691
  %v693 = vpop.f32.mrb[0].mxu0
  %v694 = vpop.f32.mrb[0].mxu0
  %v695 = vadd.f32 %v110, %v694
  %v696 = vpop.f32.mrb[0].mxu0
  %697 = vmatprep.mubr.bf16.mxu0 0
  %698 = vmatmul.mubr.bf16.gmra.mrb[0].mxu0 %v612
  %v699 = vpop.f32.mrb[0].mxu0
  %v700 = vadd.f32 %v110, %v699
  %v701 = vpop.f32.mrb[0].mxu0
  %v702 = vpop.f32.mrb[0].mxu0
  %v703 = vadd.f32 %v110, %v702
  %v704 = vpop.f32.mrb[0].mxu0
  %705 = vmatprep.mubr.bf16.mxu0 0
  %706 = vmatmul.mubr.bf16.gmra.mrb[0].mxu0 %v615
  %v707 = vpop.f32.mrb[0].mxu0
  %v708 = vadd.f32 %v110, %v707
  %v709 = vpop.f32.mrb[0].mxu0
  %v710 = vpop.f32.mrb[0].mxu0
  %v711 = vadd.f32 %v110, %v710
  %v712 = vpop.f32.mrb[0].mxu0
  %713 = vdwg.mxu0
  %v714 = vmax.f32 %v652, 0.0
  %v715 = vmax.f32 %v655, 0.0
  %v716 = vmax.f32 %v660, 0.0
  %v717 = vmax.f32 %v663, 0.0
  %v718 = vmax.f32 %v668, 0.0
  %v719 = vmax.f32 %v671, 0.0
  %v720 = vmax.f32 %v676, 0.0
  %v721 = vmax.f32 %v679, 0.0
  %v722 = vmax.f32 %v684, 0.0
  %v723 = vmax.f32 %v687, 0.0
  %v724 = vmax.f32 %v692, 0.0
  %v725 = vmax.f32 %v695, 0.0
  %v726 = vmax.f32 %v700, 0.0
  %v727 = vmax.f32 %v703, 0.0
  %v728 = vmax.f32 %v708, 0.0
  %v729 = vmax.f32 %v711, 0.0
  %s730 = scalar_lea.vmem [#allocation2], 440
  %731 = vst.msk [vmem:[%s730 + $0x8] sm:$0xff] %vm39, %v714
  %732 = vst.msk [vmem:[%s730 + $0x10] sm:$0xff] %vm39, %v715
  %733 = vst.msk [vmem:[%s730 + $0x18] sm:$0xff] %vm39, %v716
  %734 = vst.msk [vmem:[%s730 + $0x20] sm:$0xff] %vm39, %v717
  %735 = vst.msk [vmem:[%s730 + $0x30] sm:$0xff] %vm39, %v718
  %736 = vst.msk [vmem:[%s730 + $0x38] sm:$0xff] %vm39, %v719
  %737 = vst.msk [vmem:[%s730 + $0x40] sm:$0xff] %vm39, %v720
  %738 = vst.msk [vmem:[%s730 + $0x48] sm:$0xff] %vm39, %v721
  %739 = vst.msk [vmem:[%s730 + $0x58] sm:$0xff] %vm39, %v722
  %740 = vst.msk [vmem:[%s730 + $0x60] sm:$0xff] %vm39, %v723
  %741 = vst.msk [vmem:[%s730 + $0x68] sm:$0xff] %vm39, %v724
  %742 = vst.msk [vmem:[%s730 + $0x70] sm:$0xff] %vm39, %v725
  %743 = vst.msk [vmem:[%s730 + $0x80] sm:$0xff] %vm39, %v726
  %744 = vst.msk [vmem:[%s730 + $0x88] sm:$0xff] %vm39, %v727
  %745 = vst.msk [vmem:[%s730 + $0x90] sm:$0xff] %vm39, %v728
  %746 = vst.msk [vmem:[%s730 + $0x98] sm:$0xff] %vm39, %v729
  %s747 = scalar_lea.vmem %s0, 192
  %v748 = vld [vmem:[%s747] sm:$0xf]
  %v749 = vld [vmem:[%s747 + $0x4] sm:$0xf]
  %v750 = vld [vmem:[%s747 + $0x8] sm:$0xf]
  %v751 = vld [vmem:[%s747 + $0xc] sm:$0xf]
  %v752 = vld [vmem:[%s747 + $0x10] sm:$0xf]
  %v753 = vld [vmem:[%s747 + $0x14] sm:$0xf]
  %v754 = vld [vmem:[%s747 + $0x18] sm:$0xf]
  %v755 = vld [vmem:[%s747 + $0x1c] sm:$0xf]
  %v756 = vld [vmem:[%s747 + $0x20] sm:$0xf]
  %v757 = vld [vmem:[%s747 + $0x24] sm:$0xf]
  %v758 = vld [vmem:[%s747 + $0x28] sm:$0xf]
  %v759 = vld [vmem:[%s747 + $0x2c] sm:$0xf]
  %v760 = vld [vmem:[%s747 + $0x30] sm:$0xf]
  %v761 = vld [vmem:[%s747 + $0x34] sm:$0xf]
  %v762 = vld [vmem:[%s747 + $0x38] sm:$0xf]
  %v763 = vld [vmem:[%s747 + $0x3c] sm:$0xf]
  %v780 = vunpack.c.l.b16 %v748
  %v781 = vunpack.c.l.b16 %v749
  %v782 = vunpack.c.l.b16 %v750
  %v783 = vunpack.c.l.b16 %v751
  %v784 = vunpack.c.l.b16 %v752
  %v785 = vunpack.c.l.b16 %v753
  %v786 = vunpack.c.l.b16 %v754
  %v787 = vunpack.c.l.b16 %v755
  %v788 = vunpack.c.l.b16 %v756
  %v789 = vunpack.c.l.b16 %v757
  %v790 = vunpack.c.l.b16 %v758
  %v791 = vunpack.c.l.b16 %v759
  %v792 = vunpack.c.l.b16 %v760
  %v793 = vunpack.c.l.b16 %v761
  %v794 = vunpack.c.l.b16 %v762
  %v795 = vunpack.c.l.b16 %v763
  %v796 = vpack.c.b16 %v781, %v780
  %v797 = vpack.c.b16 %v783, %v782
  %v798 = vpack.c.b16 %v785, %v784
  %v799 = vpack.c.b16 %v787, %v786
  %v800 = vpack.c.b16 %v789, %v788
  %v801 = vpack.c.b16 %v791, %v790
  %v802 = vpack.c.b16 %v793, %v792
  %v803 = vpack.c.b16 %v795, %v794
  %v805 = vsel %vm170, %v796, 0
  %v808 = vsel %vm170, %v797, 0
  %v811 = vsel %vm170, %v798, 0
  %v814 = vsel %vm170, %v799, 0
  %v817 = vsel %vm170, %v800, 0
  %v820 = vsel %vm170, %v801, 0
  %v823 = vsel %vm170, %v802, 0
  %v826 = vsel %vm170, %v803, 0
  %828 = vmatprep.subr.bf16.mxu0 0
  %829 = vmatpush1.bf16.msra.mxu0 %v164
  %830 = vmatprep.subr.bf16.mxu0 0
  %831 = vmatpush1.bf16.msra.mxu0 %v165
  %832 = vmatprep.subr.bf16.mxu0 0
  %833 = vmatpush1.bf16.msra.mxu0 %v166
  %834 = vmatprep.subr.bf16.mxu0 0
  %835 = vmatpush1.bf16.msra.mxu0 0
  %836 = vmatprep.subr.bf16.mxu0 0
  %837 = vmatpush1.bf16.msra.mxu0 0
  %838 = vmatprep.subr.bf16.mxu0 0
  %839 = vmatpush1.bf16.msra.mxu0 0
  %840 = vmatprep.subr.bf16.mxu0 0
  %841 = vmatpush1.bf16.msra.mxu0 0
  %842 = vmatprep.subr.bf16.mxu0 0
  %843 = vmatpush1.bf16.msra.mxu0 0
  %844 = vmatprep.subr.bf16.mxu0 0
  %845 = vmatpush1.bf16.msra.mxu0 0
  %846 = vmatprep.subr.bf16.mxu0 0
  %847 = vmatpush1.bf16.msra.mxu0 0
  %848 = vmatprep.subr.bf16.mxu0 0
  %849 = vmatpush1.bf16.msra.mxu0 0
  %850 = vmatprep.subr.bf16.mxu0 0
  %851 = vmatpush1.bf16.msra.mxu0 0
  %852 = vmatprep.subr.bf16.mxu0 0
  %853 = vmatpush1.bf16.msra.mxu0 0
  %854 = vmatprep.subr.bf16.mxu0 0
  %855 = vmatpush1.bf16.msra.mxu0 0
  %856 = vmatprep.subr.bf16.mxu0 0
  %857 = vmatpush1.bf16.msra.mxu0 0
  %858 = vmatprep.subr.bf16.mxu0 0
  %859 = vmatpush1.bf16.msra.mxu0 0
  %860 = vmatprep.mubr.bf16.mxu0 0
  %861 = vmatmul.mubr.bf16.gmra.mrb[0].mxu0 %v805
  %v862 = vpop.f32.mrb[0].mxu0
  %v863 = vadd.f32 %v110, %v862
  %v864 = vpop.f32.mrb[0].mxu0
  %v865 = vpop.f32.mrb[0].mxu0
  %v866 = vadd.f32 %v110, %v865
  %v867 = vpop.f32.mrb[0].mxu0
  %868 = vmatprep.mubr.bf16.mxu0 0
  %869 = vmatmul.mubr.bf16.gmra.mrb[0].mxu0 %v808
  %v870 = vpop.f32.mrb[0].mxu0
  %v871 = vadd.f32 %v110, %v870
  %v872 = vpop.f32.mrb[0].mxu0
  %v873 = vpop.f32.mrb[0].mxu0
  %v874 = vadd.f32 %v110, %v873
  %v875 = vpop.f32.mrb[0].mxu0
  %876 = vmatprep.mubr.bf16.mxu0 0
  %877 = vmatmul.mubr.bf16.gmra.mrb[0].mxu0 %v811
  %v878 = vpop.f32.mrb[0].mxu0
  %v879 = vadd.f32 %v110, %v878
  %v880 = vpop.f32.mrb[0].mxu0
  %v881 = vpop.f32.mrb[0].mxu0
  %v882 = vadd.f32 %v110, %v881
  %v883 = vpop.f32.mrb[0].mxu0
  %884 = vmatprep.mubr.bf16.mxu0 0
  %885 = vmatmul.mubr.bf16.gmra.mrb[0].mxu0 %v814
  %v886 = vpop.f32.mrb[0].mxu0
  %v887 = vadd.f32 %v110, %v886
  %v888 = vpop.f32.mrb[0].mxu0
  %v889 = vpop.f32.mrb[0].mxu0
  %v890 = vadd.f32 %v110, %v889
  %v891 = vpop.f32.mrb[0].mxu0
  %892 = vmatprep.mubr.bf16.mxu0 0
  %893 = vmatmul.mubr.bf16.gmra.mrb[0].mxu0 %v817
  %v894 = vpop.f32.mrb[0].mxu0
  %v895 = vadd.f32 %v110, %v894
  %v896 = vpop.f32.mrb[0].mxu0
  %v897 = vpop.f32.mrb[0].mxu0
  %v898 = vadd.f32 %v110, %v897
  %v899 = vpop.f32.mrb[0].mxu0
  %900 = vmatprep.mubr.bf16.mxu0 0
  %901 = vmatmul.mubr.bf16.gmra.mrb[0].mxu0 %v820
  %v902 = vpop.f32.mrb[0].mxu0
  %v903 = vadd.f32 %v110, %v902
  %v904 = vpop.f32.mrb[0].mxu0
  %v905 = vpop.f32.mrb[0].mxu0
  %v906 = vadd.f32 %v110, %v905
  %v907 = vpop.f32.mrb[0].mxu0
  %908 = vmatprep.mubr.bf16.mxu0 0
  %909 = vmatmul.mubr.bf16.gmra.mrb[0].mxu0 %v823
  %v910 = vpop.f32.mrb[0].mxu0
  %v911 = vadd.f32 %v110, %v910
  %v912 = vpop.f32.mrb[0].mxu0
  %v913 = vpop.f32.mrb[0].mxu0
  %v914 = vadd.f32 %v110, %v913
  %v915 = vpop.f32.mrb[0].mxu0
  %916 = vmatprep.mubr.bf16.mxu0 0
  %917 = vmatmul.mubr.bf16.gmra.mrb[0].mxu0 %v826
  %v918 = vpop.f32.mrb[0].mxu0
  %v919 = vadd.f32 %v110, %v918
  %v920 = vpop.f32.mrb[0].mxu0
  %v921 = vpop.f32.mrb[0].mxu0
  %v922 = vadd.f32 %v110, %v921
  %v923 = vpop.f32.mrb[0].mxu0
  %924 = vdwg.mxu0
  %v925 = vmax.f32 %v863, 0.0
  %v926 = vmax.f32 %v866, 0.0
  %v927 = vmax.f32 %v871, 0.0
  %v928 = vmax.f32 %v874, 0.0
  %v929 = vmax.f32 %v879, 0.0
  %v930 = vmax.f32 %v882, 0.0
  %v931 = vmax.f32 %v887, 0.0
  %v932 = vmax.f32 %v890, 0.0
  %v933 = vmax.f32 %v895, 0.0
  %v934 = vmax.f32 %v898, 0.0
  %v935 = vmax.f32 %v903, 0.0
  %v936 = vmax.f32 %v906, 0.0
  %v937 = vmax.f32 %v911, 0.0
  %v938 = vmax.f32 %v914, 0.0
  %v939 = vmax.f32 %v919, 0.0
  %v940 = vmax.f32 %v922, 0.0
  %s941 = scalar_lea.vmem [#allocation2], 640
  %942 = vst.msk [vmem:[%s941 + $0x8] sm:$0xff] %vm39, %v925
  %943 = vst.msk [vmem:[%s941 + $0x10] sm:$0xff] %vm39, %v926
  %944 = vst.msk [vmem:[%s941 + $0x18] sm:$0xff] %vm39, %v927
  %945 = vst.msk [vmem:[%s941 + $0x20] sm:$0xff] %vm39, %v928
  %946 = vst.msk [vmem:[%s941 + $0x30] sm:$0xff] %vm39, %v929
  %947 = vst.msk [vmem:[%s941 + $0x38] sm:$0xff] %vm39, %v930
  %948 = vst.msk [vmem:[%s941 + $0x40] sm:$0xff] %vm39, %v931
  %949 = vst.msk [vmem:[%s941 + $0x48] sm:$0xff] %vm39, %v932
  %950 = vst.msk [vmem:[%s941 + $0x58] sm:$0xff] %vm39, %v933
  %951 = vst.msk [vmem:[%s941 + $0x60] sm:$0xff] %vm39, %v934
  %952 = vst.msk [vmem:[%s941 + $0x68] sm:$0xff] %vm39, %v935
  %953 = vst.msk [vmem:[%s941 + $0x70] sm:$0xff] %vm39, %v936
  %954 = vst.msk [vmem:[%s941 + $0x80] sm:$0xff] %vm39, %v937
  %955 = vst.msk [vmem:[%s941 + $0x88] sm:$0xff] %vm39, %v938
  %956 = vst.msk [vmem:[%s941 + $0x90] sm:$0xff] %vm39, %v939
  %957 = vst.msk [vmem:[%s941 + $0x98] sm:$0xff] %vm39, %v940
  %v958 = vld [vmem:[%s72] sm:$0xff]
  %v959 = vld [vmem:[%s72 + $0x8] sm:$0xff]
  %v960 = vld [vmem:[%s72 + $0x10] sm:$0xff]
  %v961 = vld [vmem:[%s72 + $0x18] sm:$0xff]
  %v962 = vld [vmem:[%s72 + $0x28] sm:$0xff]
  %v963 = vld [vmem:[%s72 + $0x30] sm:$0xff]
  %v964 = vld [vmem:[%s72 + $0x38] sm:$0xff]
  %v965 = vld [vmem:[%s72 + $0x40] sm:$0xff]
  %v966 = vld [vmem:[%s72 + $0x50] sm:$0xff]
  %v967 = vld [vmem:[%s72 + $0x58] sm:$0xff]
  %v968 = vld [vmem:[%s72 + $0x60] sm:$0xff]
  %v969 = vld [vmem:[%s72 + $0x68] sm:$0xff]
  %v970 = vld [vmem:[%s72 + $0x78] sm:$0xff]
  %v971 = vld [vmem:[%s72 + $0x80] sm:$0xff]
  %v972 = vld [vmem:[%s72 + $0x88] sm:$0xff]
  %v973 = vld [vmem:[%s72 + $0x90] sm:$0xff]
  %974 = vst.msk [vmem:[#allocation3] sm:$0xff] %vm39, %v958
  %975 = vst.msk [vmem:[#allocation3 + $0x10] sm:$0xff] %vm39, %v959
  %976 = vst.msk [vmem:[#allocation3 + $0x20] sm:$0xff] %vm39, %v960
  %977 = vst.msk [vmem:[#allocation3 + $0x30] sm:$0xff] %vm39, %v961
  %978 = vst.msk [vmem:[#allocation3 + $0x40] sm:$0xff] %vm39, %v962
  %979 = vst.msk [vmem:[#allocation3 + $0x50] sm:$0xff] %vm39, %v963
  %980 = vst.msk [vmem:[#allocation3 + $0x60] sm:$0xff] %vm39, %v964
  %981 = vst.msk [vmem:[#allocation3 + $0x70] sm:$0xff] %vm39, %v965
  %982 = vst.msk [vmem:[#allocation3 + $0x80] sm:$0xff] %vm39, %v966
  %983 = vst.msk [vmem:[#allocation3 + $0x90] sm:$0xff] %vm39, %v967
  %984 = vst.msk [vmem:[#allocation3 + $0xa0] sm:$0xff] %vm39, %v968
  %985 = vst.msk [vmem:[#allocation3 + $0xb0] sm:$0xff] %vm39, %v969
  %986 = vst.msk [vmem:[#allocation3 + $0xc0] sm:$0xff] %vm39, %v970
  %987 = vst.msk [vmem:[#allocation3 + $0xd0] sm:$0xff] %vm39, %v971
  %988 = vst.msk [vmem:[#allocation3 + $0xe0] sm:$0xff] %vm39, %v972
  %989 = vst.msk [vmem:[#allocation3 + $0xf0] sm:$0xff] %vm39, %v973
  %v990 = vld [vmem:[%s61 + $0x8] sm:$0xff]
  %v991 = vld [vmem:[%s61 + $0x10] sm:$0xff]
  %v992 = vld [vmem:[%s61 + $0x18] sm:$0xff]
  %v993 = vld [vmem:[%s61 + $0x20] sm:$0xff]
  %v994 = vld [vmem:[%s61 + $0x30] sm:$0xff]
  %v995 = vld [vmem:[%s61 + $0x38] sm:$0xff]
  %v996 = vld [vmem:[%s61 + $0x40] sm:$0xff]
  %v997 = vld [vmem:[%s61 + $0x48] sm:$0xff]
  %v998 = vld [vmem:[%s61 + $0x58] sm:$0xff]
  %v999 = vld [vmem:[%s61 + $0x60] sm:$0xff]
  %v1000 = vld [vmem:[%s61 + $0x68] sm:$0xff]
  %v1001 = vld [vmem:[%s61 + $0x70] sm:$0xff]
  %v1002 = vld [vmem:[%s61 + $0x80] sm:$0xff]
  %v1003 = vld [vmem:[%s61 + $0x88] sm:$0xff]
  %v1004 = vld [vmem:[%s61 + $0x90] sm:$0xff]
  %v1005 = vld [vmem:[%s61 + $0x98] sm:$0xff]
  %1022 = vrot.lane.b32.xlu0 %v990, 16
  %v1023 = vpop.permute.xlu0 %1022
  %1024 = vrot.lane.b32.xlu0 %v991, 16
  %v1025 = vpop.permute.xlu0 %1024
  %1026 = vrot.lane.b32.xlu0 %v992, 16
  %v1027 = vpop.permute.xlu0 %1026
  %1028 = vrot.lane.b32.xlu0 %v993, 16
  %v1029 = vpop.permute.xlu0 %1028
  %1030 = vrot.lane.b32.xlu0 %v994, 16
  %v1031 = vpop.permute.xlu0 %1030
  %1032 = vrot.lane.b32.xlu0 %v995, 16
  %v1033 = vpop.permute.xlu0 %1032
  %1034 = vrot.lane.b32.xlu0 %v996, 16
  %v1035 = vpop.permute.xlu0 %1034
  %1036 = vrot.lane.b32.xlu0 %v997, 16
  %v1037 = vpop.permute.xlu0 %1036
  %1038 = vrot.lane.b32.xlu0 %v998, 16
  %v1039 = vpop.permute.xlu0 %1038
  %1040 = vrot.lane.b32.xlu0 %v999, 16
  %v1041 = vpop.permute.xlu0 %1040
  %1042 = vrot.lane.b32.xlu0 %v1000, 16
  %v1043 = vpop.permute.xlu0 %1042
  %1044 = vrot.lane.b32.xlu0 %v1001, 16
  %v1045 = vpop.permute.xlu0 %1044
  %1046 = vrot.lane.b32.xlu0 %v1002, 16
  %v1047 = vpop.permute.xlu0 %1046
  %1048 = vrot.lane.b32.xlu0 %v1003, 16
  %v1049 = vpop.permute.xlu0 %1048
  %1050 = vrot.lane.b32.xlu0 %v1004, 16
  %v1051 = vpop.permute.xlu0 %1050
  %1052 = vrot.lane.b32.xlu0 %v1005, 16
  %v1053 = vpop.permute.xlu0 %1052
  %vm1070 = vcmask 261248
  %1071 = vst.msk [vmem:[#allocation3] sm:$0xff] %vm1070, %v1023
  %1072 = vst.msk [vmem:[#allocation3 + $0x10] sm:$0xff] %vm1070, %v1025
  %1073 = vst.msk [vmem:[#allocation3 + $0x20] sm:$0xff] %vm1070, %v1027
  %1074 = vst.msk [vmem:[#allocation3 + $0x30] sm:$0xff] %vm1070, %v1029
  %1075 = vst.msk [vmem:[#allocation3 + $0x40] sm:$0xff] %vm1070, %v1031
  %1076 = vst.msk [vmem:[#allocation3 + $0x50] sm:$0xff] %vm1070, %v1033
  %1077 = vst.msk [vmem:[#allocation3 + $0x60] sm:$0xff] %vm1070, %v1035
  %1078 = vst.msk [vmem:[#allocation3 + $0x70] sm:$0xff] %vm1070, %v1037
  %1079 = vst.msk [vmem:[#allocation3 + $0x80] sm:$0xff] %vm1070, %v1039
  %1080 = vst.msk [vmem:[#allocation3 + $0x90] sm:$0xff] %vm1070, %v1041
  %1081 = vst.msk [vmem:[#allocation3 + $0xa0] sm:$0xff] %vm1070, %v1043
  %1082 = vst.msk [vmem:[#allocation3 + $0xb0] sm:$0xff] %vm1070, %v1045
  %1083 = vst.msk [vmem:[#allocation3 + $0xc0] sm:$0xff] %vm1070, %v1047
  %1084 = vst.msk [vmem:[#allocation3 + $0xd0] sm:$0xff] %vm1070, %v1049
  %1085 = vst.msk [vmem:[#allocation3 + $0xe0] sm:$0xff] %vm1070, %v1051
  %1086 = vst.msk [vmem:[#allocation3 + $0xf0] sm:$0xff] %vm1070, %v1053
  %v1087 = vld [vmem:[%s72 + $0x8] sm:$0xff]
  %v1088 = vld [vmem:[%s72 + $0x10] sm:$0xff]
  %v1089 = vld [vmem:[%s72 + $0x18] sm:$0xff]
  %v1090 = vld [vmem:[%s72 + $0x20] sm:$0xff]
  %v1091 = vld [vmem:[%s72 + $0x30] sm:$0xff]
  %v1092 = vld [vmem:[%s72 + $0x38] sm:$0xff]
  %v1093 = vld [vmem:[%s72 + $0x40] sm:$0xff]
  %v1094 = vld [vmem:[%s72 + $0x48] sm:$0xff]
  %v1095 = vld [vmem:[%s72 + $0x58] sm:$0xff]
  %v1096 = vld [vmem:[%s72 + $0x60] sm:$0xff]
  %v1097 = vld [vmem:[%s72 + $0x68] sm:$0xff]
  %v1098 = vld [vmem:[%s72 + $0x70] sm:$0xff]
  %v1099 = vld [vmem:[%s72 + $0x80] sm:$0xff]
  %v1100 = vld [vmem:[%s72 + $0x88] sm:$0xff]
  %v1101 = vld [vmem:[%s72 + $0x90] sm:$0xff]
  %v1102 = vld [vmem:[%s72 + $0x98] sm:$0xff]
  %1119 = vrot.lane.b32.xlu0 %v1087, 32
  %v1120 = vpop.permute.xlu0 %1119
  %1121 = vrot.lane.b32.xlu0 %v1088, 32
  %v1122 = vpop.permute.xlu0 %1121
  %1123 = vrot.lane.b32.xlu0 %v1089, 32
  %v1124 = vpop.permute.xlu0 %1123
  %1125 = vrot.lane.b32.xlu0 %v1090, 32
  %v1126 = vpop.permute.xlu0 %1125
  %1127 = vrot.lane.b32.xlu0 %v1091, 32
  %v1128 = vpop.permute.xlu0 %1127
  %1129 = vrot.lane.b32.xlu0 %v1092, 32
  %v1130 = vpop.permute.xlu0 %1129
  %1131 = vrot.lane.b32.xlu0 %v1093, 32
  %v1132 = vpop.permute.xlu0 %1131
  %1133 = vrot.lane.b32.xlu0 %v1094, 32
  %v1134 = vpop.permute.xlu0 %1133
  %1135 = vrot.lane.b32.xlu0 %v1095, 32
  %v1136 = vpop.permute.xlu0 %1135
  %1137 = vrot.lane.b32.xlu0 %v1096, 32
  %v1138 = vpop.permute.xlu0 %1137
  %1139 = vrot.lane.b32.xlu0 %v1097, 32
  %v1140 = vpop.permute.xlu0 %1139
  %1141 = vrot.lane.b32.xlu0 %v1098, 32
  %v1142 = vpop.permute.xlu0 %1141
  %1143 = vrot.lane.b32.xlu0 %v1099, 32
  %v1144 = vpop.permute.xlu0 %1143
  %1145 = vrot.lane.b32.xlu0 %v1100, 32
  %v1146 = vpop.permute.xlu0 %1145
  %1147 = vrot.lane.b32.xlu0 %v1101, 32
  %v1148 = vpop.permute.xlu0 %1147
  %1149 = vrot.lane.b32.xlu0 %v1102, 32
  %v1150 = vpop.permute.xlu0 %1149
  %vm1167 = vcmask 392448
  %1168 = vst.msk [vmem:[#allocation3] sm:$0xff] %vm1167, %v1120
  %1169 = vst.msk [vmem:[#allocation3 + $0x10] sm:$0xff] %vm1167, %v1122
  %1170 = vst.msk [vmem:[#allocation3 + $0x20] sm:$0xff] %vm1167, %v1124
  %1171 = vst.msk [vmem:[#allocation3 + $0x30] sm:$0xff] %vm1167, %v1126
  %1172 = vst.msk [vmem:[#allocation3 + $0x40] sm:$0xff] %vm1167, %v1128
  %1173 = vst.msk [vmem:[#allocation3 + $0x50] sm:$0xff] %vm1167, %v1130
  %1174 = vst.msk [vmem:[#allocation3 + $0x60] sm:$0xff] %vm1167, %v1132
  %1175 = vst.msk [vmem:[#allocation3 + $0x70] sm:$0xff] %vm1167, %v1134
  %1176 = vst.msk [vmem:[#allocation3 + $0x80] sm:$0xff] %vm1167, %v1136
  %1177 = vst.msk [vmem:[#allocation3 + $0x90] sm:$0xff] %vm1167, %v1138
  %1178 = vst.msk [vmem:[#allocation3 + $0xa0] sm:$0xff] %vm1167, %v1140
  %1179 = vst.msk [vmem:[#allocation3 + $0xb0] sm:$0xff] %vm1167, %v1142
  %1180 = vst.msk [vmem:[#allocation3 + $0xc0] sm:$0xff] %vm1167, %v1144
  %1181 = vst.msk [vmem:[#allocation3 + $0xd0] sm:$0xff] %vm1167, %v1146
  %1182 = vst.msk [vmem:[#allocation3 + $0xe0] sm:$0xff] %vm1167, %v1148
  %1183 = vst.msk [vmem:[#allocation3 + $0xf0] sm:$0xff] %vm1167, %v1150
  %v1184 = vld [vmem:[%s519] sm:$0xff]
  %v1185 = vld [vmem:[%s519 + $0x8] sm:$0xff]
  %v1186 = vld [vmem:[%s519 + $0x10] sm:$0xff]
  %v1187 = vld [vmem:[%s519 + $0x18] sm:$0xff]
  %v1188 = vld [vmem:[%s519 + $0x28] sm:$0xff]
  %v1189 = vld [vmem:[%s519 + $0x30] sm:$0xff]
  %v1190 = vld [vmem:[%s519 + $0x38] sm:$0xff]
  %v1191 = vld [vmem:[%s519 + $0x40] sm:$0xff]
  %v1192 = vld [vmem:[%s519 + $0x50] sm:$0xff]
  %v1193 = vld [vmem:[%s519 + $0x58] sm:$0xff]
  %v1194 = vld [vmem:[%s519 + $0x60] sm:$0xff]
  %v1195 = vld [vmem:[%s519 + $0x68] sm:$0xff]
  %v1196 = vld [vmem:[%s519 + $0x78] sm:$0xff]
  %v1197 = vld [vmem:[%s519 + $0x80] sm:$0xff]
  %v1198 = vld [vmem:[%s519 + $0x88] sm:$0xff]
  %v1199 = vld [vmem:[%s519 + $0x90] sm:$0xff]
  %1216 = vrot.lane.b32.xlu0 %v1184, 48
  %v1217 = vpop.permute.xlu0 %1216
  %1218 = vrot.lane.b32.xlu0 %v1185, 48
  %v1219 = vpop.permute.xlu0 %1218
  %1220 = vrot.lane.b32.xlu0 %v1186, 48
  %v1221 = vpop.permute.xlu0 %1220
  %1222 = vrot.lane.b32.xlu0 %v1187, 48
  %v1223 = vpop.permute.xlu0 %1222
  %1224 = vrot.lane.b32.xlu0 %v1188, 48
  %v1225 = vpop.permute.xlu0 %1224
  %1226 = vrot.lane.b32.xlu0 %v1189, 48
  %v1227 = vpop.permute.xlu0 %1226
  %1228 = vrot.lane.b32.xlu0 %v1190, 48
  %v1229 = vpop.permute.xlu0 %1228
  %1230 = vrot.lane.b32.xlu0 %v1191, 48
  %v1231 = vpop.permute.xlu0 %1230
  %1232 = vrot.lane.b32.xlu0 %v1192, 48
  %v1233 = vpop.permute.xlu0 %1232
  %1234 = vrot.lane.b32.xlu0 %v1193, 48
  %v1235 = vpop.permute.xlu0 %1234
  %1236 = vrot.lane.b32.xlu0 %v1194, 48
  %v1237 = vpop.permute.xlu0 %1236
  %1238 = vrot.lane.b32.xlu0 %v1195, 48
  %v1239 = vpop.permute.xlu0 %1238
  %1240 = vrot.lane.b32.xlu0 %v1196, 48
  %v1241 = vpop.permute.xlu0 %1240
  %1242 = vrot.lane.b32.xlu0 %v1197, 48
  %v1243 = vpop.permute.xlu0 %1242
  %1244 = vrot.lane.b32.xlu0 %v1198, 48
  %v1245 = vpop.permute.xlu0 %1244
  %1246 = vrot.lane.b32.xlu0 %v1199, 48
  %v1247 = vpop.permute.xlu0 %1246
  %vm1264 = vcmask 523648
  %1265 = vst.msk [vmem:[#allocation3] sm:$0xff] %vm1264, %v1217
  %1266 = vst.msk [vmem:[#allocation3 + $0x10] sm:$0xff] %vm1264, %v1219
  %1267 = vst.msk [vmem:[#allocation3 + $0x20] sm:$0xff] %vm1264, %v1221
  %1268 = vst.msk [vmem:[#allocation3 + $0x30] sm:$0xff] %vm1264, %v1223
  %1269 = vst.msk [vmem:[#allocation3 + $0x40] sm:$0xff] %vm1264, %v1225
  %1270 = vst.msk [vmem:[#allocation3 + $0x50] sm:$0xff] %vm1264, %v1227
  %1271 = vst.msk [vmem:[#allocation3 + $0x60] sm:$0xff] %vm1264, %v1229
  %1272 = vst.msk [vmem:[#allocation3 + $0x70] sm:$0xff] %vm1264, %v1231
  %1273 = vst.msk [vmem:[#allocation3 + $0x80] sm:$0xff] %vm1264, %v1233
  %1274 = vst.msk [vmem:[#allocation3 + $0x90] sm:$0xff] %vm1264, %v1235
  %1275 = vst.msk [vmem:[#allocation3 + $0xa0] sm:$0xff] %vm1264, %v1237
  %1276 = vst.msk [vmem:[#allocation3 + $0xb0] sm:$0xff] %vm1264, %v1239
  %1277 = vst.msk [vmem:[#allocation3 + $0xc0] sm:$0xff] %vm1264, %v1241
  %1278 = vst.msk [vmem:[#allocation3 + $0xd0] sm:$0xff] %vm1264, %v1243
  %1279 = vst.msk [vmem:[#allocation3 + $0xe0] sm:$0xff] %vm1264, %v1245
  %1280 = vst.msk [vmem:[#allocation3 + $0xf0] sm:$0xff] %vm1264, %v1247
  %v1281 = vld [vmem:[%s308 + $0x8] sm:$0xff]
  %v1282 = vld [vmem:[%s308 + $0x10] sm:$0xff]
  %v1283 = vld [vmem:[%s308 + $0x18] sm:$0xff]
  %v1284 = vld [vmem:[%s308 + $0x20] sm:$0xff]
  %v1285 = vld [vmem:[%s308 + $0x30] sm:$0xff]
  %v1286 = vld [vmem:[%s308 + $0x38] sm:$0xff]
  %v1287 = vld [vmem:[%s308 + $0x40] sm:$0xff]
  %v1288 = vld [vmem:[%s308 + $0x48] sm:$0xff]
  %v1289 = vld [vmem:[%s308 + $0x58] sm:$0xff]
  %v1290 = vld [vmem:[%s308 + $0x60] sm:$0xff]
  %v1291 = vld [vmem:[%s308 + $0x68] sm:$0xff]
  %v1292 = vld [vmem:[%s308 + $0x70] sm:$0xff]
  %v1293 = vld [vmem:[%s308 + $0x80] sm:$0xff]
  %v1294 = vld [vmem:[%s308 + $0x88] sm:$0xff]
  %v1295 = vld [vmem:[%s308 + $0x90] sm:$0xff]
  %v1296 = vld [vmem:[%s308 + $0x98] sm:$0xff]
  %1313 = vrot.lane.b32.xlu0 %v1281, 64
  %v1314 = vpop.permute.xlu0 %1313
  %1315 = vrot.lane.b32.xlu0 %v1282, 64
  %v1316 = vpop.permute.xlu0 %1315
  %1317 = vrot.lane.b32.xlu0 %v1283, 64
  %v1318 = vpop.permute.xlu0 %1317
  %1319 = vrot.lane.b32.xlu0 %v1284, 64
  %v1320 = vpop.permute.xlu0 %1319
  %1321 = vrot.lane.b32.xlu0 %v1285, 64
  %v1322 = vpop.permute.xlu0 %1321
  %1323 = vrot.lane.b32.xlu0 %v1286, 64
  %v1324 = vpop.permute.xlu0 %1323
  %1325 = vrot.lane.b32.xlu0 %v1287, 64
  %v1326 = vpop.permute.xlu0 %1325
  %1327 = vrot.lane.b32.xlu0 %v1288, 64
  %v1328 = vpop.permute.xlu0 %1327
  %1329 = vrot.lane.b32.xlu0 %v1289, 64
  %v1330 = vpop.permute.xlu0 %1329
  %1331 = vrot.lane.b32.xlu0 %v1290, 64
  %v1332 = vpop.permute.xlu0 %1331
  %1333 = vrot.lane.b32.xlu0 %v1291, 64
  %v1334 = vpop.permute.xlu0 %1333
  %1335 = vrot.lane.b32.xlu0 %v1292, 64
  %v1336 = vpop.permute.xlu0 %1335
  %1337 = vrot.lane.b32.xlu0 %v1293, 64
  %v1338 = vpop.permute.xlu0 %1337
  %1339 = vrot.lane.b32.xlu0 %v1294, 64
  %v1340 = vpop.permute.xlu0 %1339
  %1341 = vrot.lane.b32.xlu0 %v1295, 64
  %v1342 = vpop.permute.xlu0 %1341
  %1343 = vrot.lane.b32.xlu0 %v1296, 64
  %v1344 = vpop.permute.xlu0 %1343
  %vm1361 = vcmask 654848
  %1362 = vst.msk [vmem:[#allocation3] sm:$0xff] %vm1361, %v1314
  %1363 = vst.msk [vmem:[#allocation3 + $0x10] sm:$0xff] %vm1361, %v1316
  %1364 = vst.msk [vmem:[#allocation3 + $0x20] sm:$0xff] %vm1361, %v1318
  %1365 = vst.msk [vmem:[#allocation3 + $0x30] sm:$0xff] %vm1361, %v1320
  %1366 = vst.msk [vmem:[#allocation3 + $0x40] sm:$0xff] %vm1361, %v1322
  %1367 = vst.msk [vmem:[#allocation3 + $0x50] sm:$0xff] %vm1361, %v1324
  %1368 = vst.msk [vmem:[#allocation3 + $0x60] sm:$0xff] %vm1361, %v1326
  %1369 = vst.msk [vmem:[#allocation3 + $0x70] sm:$0xff] %vm1361, %v1328
  %1370 = vst.msk [vmem:[#allocation3 + $0x80] sm:$0xff] %vm1361, %v1330
  %1371 = vst.msk [vmem:[#allocation3 + $0x90] sm:$0xff] %vm1361, %v1332
  %1372 = vst.msk [vmem:[#allocation3 + $0xa0] sm:$0xff] %vm1361, %v1334
  %1373 = vst.msk [vmem:[#allocation3 + $0xb0] sm:$0xff] %vm1361, %v1336
  %1374 = vst.msk [vmem:[#allocation3 + $0xc0] sm:$0xff] %vm1361, %v1338
  %1375 = vst.msk [vmem:[#allocation3 + $0xd0] sm:$0xff] %vm1361, %v1340
  %1376 = vst.msk [vmem:[#allocation3 + $0xe0] sm:$0xff] %vm1361, %v1342
  %1377 = vst.msk [vmem:[#allocation3 + $0xf0] sm:$0xff] %vm1361, %v1344
  %v1378 = vld [vmem:[%s519 + $0x8] sm:$0xff]
  %v1379 = vld [vmem:[%s519 + $0x10] sm:$0xff]
  %v1380 = vld [vmem:[%s519 + $0x18] sm:$0xff]
  %v1381 = vld [vmem:[%s519 + $0x20] sm:$0xff]
  %v1382 = vld [vmem:[%s519 + $0x30] sm:$0xff]
  %v1383 = vld [vmem:[%s519 + $0x38] sm:$0xff]
  %v1384 = vld [vmem:[%s519 + $0x40] sm:$0xff]
  %v1385 = vld [vmem:[%s519 + $0x48] sm:$0xff]
  %v1386 = vld [vmem:[%s519 + $0x58] sm:$0xff]
  %v1387 = vld [vmem:[%s519 + $0x60] sm:$0xff]
  %v1388 = vld [vmem:[%s519 + $0x68] sm:$0xff]
  %v1389 = vld [vmem:[%s519 + $0x70] sm:$0xff]
  %v1390 = vld [vmem:[%s519 + $0x80] sm:$0xff]
  %v1391 = vld [vmem:[%s519 + $0x88] sm:$0xff]
  %v1392 = vld [vmem:[%s519 + $0x90] sm:$0xff]
  %v1393 = vld [vmem:[%s519 + $0x98] sm:$0xff]
  %1410 = vrot.lane.b32.xlu0 %v1378, 80
  %v1411 = vpop.permute.xlu0 %1410
  %1412 = vrot.lane.b32.xlu0 %v1379, 80
  %v1413 = vpop.permute.xlu0 %1412
  %1414 = vrot.lane.b32.xlu0 %v1380, 80
  %v1415 = vpop.permute.xlu0 %1414
  %1416 = vrot.lane.b32.xlu0 %v1381, 80
  %v1417 = vpop.permute.xlu0 %1416
  %1418 = vrot.lane.b32.xlu0 %v1382, 80
  %v1419 = vpop.permute.xlu0 %1418
  %1420 = vrot.lane.b32.xlu0 %v1383, 80
  %v1421 = vpop.permute.xlu0 %1420
  %1422 = vrot.lane.b32.xlu0 %v1384, 80
  %v1423 = vpop.permute.xlu0 %1422
  %1424 = vrot.lane.b32.xlu0 %v1385, 80
  %v1425 = vpop.permute.xlu0 %1424
  %1426 = vrot.lane.b32.xlu0 %v1386, 80
  %v1427 = vpop.permute.xlu0 %1426
  %1428 = vrot.lane.b32.xlu0 %v1387, 80
  %v1429 = vpop.permute.xlu0 %1428
  %1430 = vrot.lane.b32.xlu0 %v1388, 80
  %v1431 = vpop.permute.xlu0 %1430
  %1432 = vrot.lane.b32.xlu0 %v1389, 80
  %v1433 = vpop.permute.xlu0 %1432
  %1434 = vrot.lane.b32.xlu0 %v1390, 80
  %v1435 = vpop.permute.xlu0 %1434
  %1436 = vrot.lane.b32.xlu0 %v1391, 80
  %v1437 = vpop.permute.xlu0 %1436
  %1438 = vrot.lane.b32.xlu0 %v1392, 80
  %v1439 = vpop.permute.xlu0 %1438
  %1440 = vrot.lane.b32.xlu0 %v1393, 80
  %v1441 = vpop.permute.xlu0 %1440
  %vm1458 = vcmask 786048
  %1459 = vst.msk [vmem:[#allocation3] sm:$0xff] %vm1458, %v1411
  %1460 = vst.msk [vmem:[#allocation3 + $0x10] sm:$0xff] %vm1458, %v1413
  %1461 = vst.msk [vmem:[#allocation3 + $0x20] sm:$0xff] %vm1458, %v1415
  %1462 = vst.msk [vmem:[#allocation3 + $0x30] sm:$0xff] %vm1458, %v1417
  %1463 = vst.msk [vmem:[#allocation3 + $0x40] sm:$0xff] %vm1458, %v1419
  %1464 = vst.msk [vmem:[#allocation3 + $0x50] sm:$0xff] %vm1458, %v1421
  %1465 = vst.msk [vmem:[#allocation3 + $0x60] sm:$0xff] %vm1458, %v1423
  %1466 = vst.msk [vmem:[#allocation3 + $0x70] sm:$0xff] %vm1458, %v1425
  %1467 = vst.msk [vmem:[#allocation3 + $0x80] sm:$0xff] %vm1458, %v1427
  %1468 = vst.msk [vmem:[#allocation3 + $0x90] sm:$0xff] %vm1458, %v1429
  %1469 = vst.msk [vmem:[#allocation3 + $0xa0] sm:$0xff] %vm1458, %v1431
  %1470 = vst.msk [vmem:[#allocation3 + $0xb0] sm:$0xff] %vm1458, %v1433
  %1471 = vst.msk [vmem:[#allocation3 + $0xc0] sm:$0xff] %vm1458, %v1435
  %1472 = vst.msk [vmem:[#allocation3 + $0xd0] sm:$0xff] %vm1458, %v1437
  %1473 = vst.msk [vmem:[#allocation3 + $0xe0] sm:$0xff] %vm1458, %v1439
  %1474 = vst.msk [vmem:[#allocation3 + $0xf0] sm:$0xff] %vm1458, %v1441
  %v1475 = vld [vmem:[%s941] sm:$0xff]
  %v1476 = vld [vmem:[%s941 + $0x8] sm:$0xff]
  %v1477 = vld [vmem:[%s941 + $0x10] sm:$0xff]
  %v1478 = vld [vmem:[%s941 + $0x18] sm:$0xff]
  %v1479 = vld [vmem:[%s941 + $0x28] sm:$0xff]
  %v1480 = vld [vmem:[%s941 + $0x30] sm:$0xff]
  %v1481 = vld [vmem:[%s941 + $0x38] sm:$0xff]
  %v1482 = vld [vmem:[%s941 + $0x40] sm:$0xff]
  %v1483 = vld [vmem:[%s941 + $0x50] sm:$0xff]
  %v1484 = vld [vmem:[%s941 + $0x58] sm:$0xff]
  %v1485 = vld [vmem:[%s941 + $0x60] sm:$0xff]
  %v1486 = vld [vmem:[%s941 + $0x68] sm:$0xff]
  %v1487 = vld [vmem:[%s941 + $0x78] sm:$0xff]
  %v1488 = vld [vmem:[%s941 + $0x80] sm:$0xff]
  %v1489 = vld [vmem:[%s941 + $0x88] sm:$0xff]
  %v1490 = vld [vmem:[%s941 + $0x90] sm:$0xff]
  %1507 = vrot.lane.b32.xlu0 %v1475, 96
  %v1508 = vpop.permute.xlu0 %1507
  %1509 = vrot.lane.b32.xlu0 %v1476, 96
  %v1510 = vpop.permute.xlu0 %1509
  %1511 = vrot.lane.b32.xlu0 %v1477, 96
  %v1512 = vpop.permute.xlu0 %1511
  %1513 = vrot.lane.b32.xlu0 %v1478, 96
  %v1514 = vpop.permute.xlu0 %1513
  %1515 = vrot.lane.b32.xlu0 %v1479, 96
  %v1516 = vpop.permute.xlu0 %1515
  %1517 = vrot.lane.b32.xlu0 %v1480, 96
  %v1518 = vpop.permute.xlu0 %1517
  %1519 = vrot.lane.b32.xlu0 %v1481, 96
  %v1520 = vpop.permute.xlu0 %1519
  %1521 = vrot.lane.b32.xlu0 %v1482, 96
  %v1522 = vpop.permute.xlu0 %1521
  %1523 = vrot.lane.b32.xlu0 %v1483, 96
  %v1524 = vpop.permute.xlu0 %1523
  %1525 = vrot.lane.b32.xlu0 %v1484, 96
  %v1526 = vpop.permute.xlu0 %1525
  %1527 = vrot.lane.b32.xlu0 %v1485, 96
  %v1528 = vpop.permute.xlu0 %1527
  %1529 = vrot.lane.b32.xlu0 %v1486, 96
  %v1530 = vpop.permute.xlu0 %1529
  %1531 = vrot.lane.b32.xlu0 %v1487, 96
  %v1532 = vpop.permute.xlu0 %1531
  %1533 = vrot.lane.b32.xlu0 %v1488, 96
  %v1534 = vpop.permute.xlu0 %1533
  %1535 = vrot.lane.b32.xlu0 %v1489, 96
  %v1536 = vpop.permute.xlu0 %1535
  %1537 = vrot.lane.b32.xlu0 %v1490, 96
  %v1538 = vpop.permute.xlu0 %1537
  %vm1555 = vcmask 917248
  %1556 = vst.msk [vmem:[#allocation3] sm:$0xff] %vm1555, %v1508
  %1557 = vst.msk [vmem:[#allocation3 + $0x10] sm:$0xff] %vm1555, %v1510
  %1558 = vst.msk [vmem:[#allocation3 + $0x20] sm:$0xff] %vm1555, %v1512
  %1559 = vst.msk [vmem:[#allocation3 + $0x30] sm:$0xff] %vm1555, %v1514
  %1560 = vst.msk [vmem:[#allocation3 + $0x40] sm:$0xff] %vm1555, %v1516
  %1561 = vst.msk [vmem:[#allocation3 + $0x50] sm:$0xff] %vm1555, %v1518
  %1562 = vst.msk [vmem:[#allocation3 + $0x60] sm:$0xff] %vm1555, %v1520
  %1563 = vst.msk [vmem:[#allocation3 + $0x70] sm:$0xff] %vm1555, %v1522
  %1564 = vst.msk [vmem:[#allocation3 + $0x80] sm:$0xff] %vm1555, %v1524
  %1565 = vst.msk [vmem:[#allocation3 + $0x90] sm:$0xff] %vm1555, %v1526
  %1566 = vst.msk [vmem:[#allocation3 + $0xa0] sm:$0xff] %vm1555, %v1528
  %1567 = vst.msk [vmem:[#allocation3 + $0xb0] sm:$0xff] %vm1555, %v1530
  %1568 = vst.msk [vmem:[#allocation3 + $0xc0] sm:$0xff] %vm1555, %v1532
  %1569 = vst.msk [vmem:[#allocation3 + $0xd0] sm:$0xff] %vm1555, %v1534
  %1570 = vst.msk [vmem:[#allocation3 + $0xe0] sm:$0xff] %vm1555, %v1536
  %1571 = vst.msk [vmem:[#allocation3 + $0xf0] sm:$0xff] %vm1555, %v1538
  %v1572 = vld [vmem:[%s730 + $0x8] sm:$0xff]
  %v1573 = vld [vmem:[%s730 + $0x10] sm:$0xff]
  %v1574 = vld [vmem:[%s730 + $0x18] sm:$0xff]
  %v1575 = vld [vmem:[%s730 + $0x20] sm:$0xff]
  %v1576 = vld [vmem:[%s730 + $0x30] sm:$0xff]
  %v1577 = vld [vmem:[%s730 + $0x38] sm:$0xff]
  %v1578 = vld [vmem:[%s730 + $0x40] sm:$0xff]
  %v1579 = vld [vmem:[%s730 + $0x48] sm:$0xff]
  %v1580 = vld [vmem:[%s730 + $0x58] sm:$0xff]
  %v1581 = vld [vmem:[%s730 + $0x60] sm:$0xff]
  %v1582 = vld [vmem:[%s730 + $0x68] sm:$0xff]
  %v1583 = vld [vmem:[%s730 + $0x70] sm:$0xff]
  %v1584 = vld [vmem:[%s730 + $0x80] sm:$0xff]
  %v1585 = vld [vmem:[%s730 + $0x88] sm:$0xff]
  %v1586 = vld [vmem:[%s730 + $0x90] sm:$0xff]
  %v1587 = vld [vmem:[%s730 + $0x98] sm:$0xff]
  %1604 = vrot.lane.b32.xlu0 %v1572, 112
  %v1605 = vpop.permute.xlu0 %1604
  %1606 = vrot.lane.b32.xlu0 %v1573, 112
  %v1607 = vpop.permute.xlu0 %1606
  %1608 = vrot.lane.b32.xlu0 %v1574, 112
  %v1609 = vpop.permute.xlu0 %1608
  %1610 = vrot.lane.b32.xlu0 %v1575, 112
  %v1611 = vpop.permute.xlu0 %1610
  %1612 = vrot.lane.b32.xlu0 %v1576, 112
  %v1613 = vpop.permute.xlu0 %1612
  %1614 = vrot.lane.b32.xlu0 %v1577, 112
  %v1615 = vpop.permute.xlu0 %1614
  %1616 = vrot.lane.b32.xlu0 %v1578, 112
  %v1617 = vpop.permute.xlu0 %1616
  %1618 = vrot.lane.b32.xlu0 %v1579, 112
  %v1619 = vpop.permute.xlu0 %1618
  %1620 = vrot.lane.b32.xlu0 %v1580, 112
  %v1621 = vpop.permute.xlu0 %1620
  %1622 = vrot.lane.b32.xlu0 %v1581, 112
  %v1623 = vpop.permute.xlu0 %1622
  %1624 = vrot.lane.b32.xlu0 %v1582, 112
  %v1625 = vpop.permute.xlu0 %1624
  %1626 = vrot.lane.b32.xlu0 %v1583, 112
  %v1627 = vpop.permute.xlu0 %1626
  %1628 = vrot.lane.b32.xlu0 %v1584, 112
  %v1629 = vpop.permute.xlu0 %1628
  %1630 = vrot.lane.b32.xlu0 %v1585, 112
  %v1631 = vpop.permute.xlu0 %1630
  %1632 = vrot.lane.b32.xlu0 %v1586, 112
  %v1633 = vpop.permute.xlu0 %1632
  %1634 = vrot.lane.b32.xlu0 %v1587, 112
  %v1635 = vpop.permute.xlu0 %1634
  %vm1652 = vcmask 1048448
  %1653 = vst.msk [vmem:[#allocation3] sm:$0xff] %vm1652, %v1605
  %1654 = vst.msk [vmem:[#allocation3 + $0x10] sm:$0xff] %vm1652, %v1607
  %1655 = vst.msk [vmem:[#allocation3 + $0x20] sm:$0xff] %vm1652, %v1609
  %1656 = vst.msk [vmem:[#allocation3 + $0x30] sm:$0xff] %vm1652, %v1611
  %1657 = vst.msk [vmem:[#allocation3 + $0x40] sm:$0xff] %vm1652, %v1613
  %1658 = vst.msk [vmem:[#allocation3 + $0x50] sm:$0xff] %vm1652, %v1615
  %1659 = vst.msk [vmem:[#allocation3 + $0x60] sm:$0xff] %vm1652, %v1617
  %1660 = vst.msk [vmem:[#allocation3 + $0x70] sm:$0xff] %vm1652, %v1619
  %1661 = vst.msk [vmem:[#allocation3 + $0x80] sm:$0xff] %vm1652, %v1621
  %1662 = vst.msk [vmem:[#allocation3 + $0x90] sm:$0xff] %vm1652, %v1623
  %1663 = vst.msk [vmem:[#allocation3 + $0xa0] sm:$0xff] %vm1652, %v1625
  %1664 = vst.msk [vmem:[#allocation3 + $0xb0] sm:$0xff] %vm1652, %v1627
  %1665 = vst.msk [vmem:[#allocation3 + $0xc0] sm:$0xff] %vm1652, %v1629
  %1666 = vst.msk [vmem:[#allocation3 + $0xd0] sm:$0xff] %vm1652, %v1631
  %1667 = vst.msk [vmem:[#allocation3 + $0xe0] sm:$0xff] %vm1652, %v1633
  %1668 = vst.msk [vmem:[#allocation3 + $0xf0] sm:$0xff] %vm1652, %v1635
  %v1669 = vld [vmem:[%s941 + $0x8] sm:$0xff]
  %v1670 = vld [vmem:[%s941 + $0x10] sm:$0xff]
  %v1671 = vld [vmem:[%s941 + $0x18] sm:$0xff]
  %v1672 = vld [vmem:[%s941 + $0x20] sm:$0xff]
  %v1673 = vld [vmem:[%s941 + $0x30] sm:$0xff]
  %v1674 = vld [vmem:[%s941 + $0x38] sm:$0xff]
  %v1675 = vld [vmem:[%s941 + $0x40] sm:$0xff]
  %v1676 = vld [vmem:[%s941 + $0x48] sm:$0xff]
  %v1677 = vld [vmem:[%s941 + $0x58] sm:$0xff]
  %v1678 = vld [vmem:[%s941 + $0x60] sm:$0xff]
  %v1679 = vld [vmem:[%s941 + $0x68] sm:$0xff]
  %v1680 = vld [vmem:[%s941 + $0x70] sm:$0xff]
  %v1681 = vld [vmem:[%s941 + $0x80] sm:$0xff]
  %v1682 = vld [vmem:[%s941 + $0x88] sm:$0xff]
  %v1683 = vld [vmem:[%s941 + $0x90] sm:$0xff]
  %v1684 = vld [vmem:[%s941 + $0x98] sm:$0xff]
  %1685 = vst.msk [vmem:[#allocation3 + $0x8] sm:$0xff] %vm39, %v1669
  %1686 = vst.msk [vmem:[#allocation3 + $0x18] sm:$0xff] %vm39, %v1670
  %1687 = vst.msk [vmem:[#allocation3 + $0x28] sm:$0xff] %vm39, %v1671
  %1688 = vst.msk [vmem:[#allocation3 + $0x38] sm:$0xff] %vm39, %v1672
  %1689 = vst.msk [vmem:[#allocation3 + $0x48] sm:$0xff] %vm39, %v1673
  %1690 = vst.msk [vmem:[#allocation3 + $0x58] sm:$0xff] %vm39, %v1674
  %1691 = vst.msk [vmem:[#allocation3 + $0x68] sm:$0xff] %vm39, %v1675
  %1692 = vst.msk [vmem:[#allocation3 + $0x78] sm:$0xff] %vm39, %v1676
  %1693 = vst.msk [vmem:[#allocation3 + $0x88] sm:$0xff] %vm39, %v1677
  %1694 = vst.msk [vmem:[#allocation3 + $0x98] sm:$0xff] %vm39, %v1678
  %1695 = vst.msk [vmem:[#allocation3 + $0xa8] sm:$0xff] %vm39, %v1679
  %1696 = vst.msk [vmem:[#allocation3 + $0xb8] sm:$0xff] %vm39, %v1680
  %1697 = vst.msk [vmem:[#allocation3 + $0xc8] sm:$0xff] %vm39, %v1681
  %1698 = vst.msk [vmem:[#allocation3 + $0xd8] sm:$0xff] %vm39, %v1682
  %1699 = vst.msk [vmem:[#allocation3 + $0xe8] sm:$0xff] %vm39, %v1683
  %1700 = vst.msk [vmem:[#allocation3 + $0xf8] sm:$0xff] %vm39, %v1684
  %v1701 = vld [vmem:[#allocation3] sm:$0xff]
  %v1702 = vld [vmem:[#allocation3 + $0x8] sm:$0xff]
  %v1703 = vld [vmem:[#allocation3 + $0x10] sm:$0xff]
  %v1704 = vld [vmem:[#allocation3 + $0x18] sm:$0xff]
  %v1705 = vld [vmem:[#allocation3 + $0x20] sm:$0xff]
  %v1706 = vld [vmem:[#allocation3 + $0x28] sm:$0xff]
  %v1707 = vld [vmem:[#allocation3 + $0x30] sm:$0xff]
  %v1708 = vld [vmem:[#allocation3 + $0x38] sm:$0xff]
  %v1709 = vld [vmem:[#allocation3 + $0x40] sm:$0xff]
  %v1710 = vld [vmem:[#allocation3 + $0x48] sm:$0xff]
  %v1711 = vld [vmem:[#allocation3 + $0x50] sm:$0xff]
  %v1712 = vld [vmem:[#allocation3 + $0x58] sm:$0xff]
  %v1713 = vld [vmem:[#allocation3 + $0x60] sm:$0xff]
  %v1714 = vld [vmem:[#allocation3 + $0x68] sm:$0xff]
  %v1715 = vld [vmem:[#allocation3 + $0x70] sm:$0xff]
  %v1716 = vld [vmem:[#allocation3 + $0x78] sm:$0xff]
  %v1717 = vld [vmem:[#allocation3 + $0x80] sm:$0xff]
  %v1718 = vld [vmem:[#allocation3 + $0x88] sm:$0xff]
  %v1719 = vld [vmem:[#allocation3 + $0x90] sm:$0xff]
  %v1720 = vld [vmem:[#allocation3 + $0x98] sm:$0xff]
  %v1721 = vld [vmem:[#allocation3 + $0xa0] sm:$0xff]
  %v1722 = vld [vmem:[#allocation3 + $0xa8] sm:$0xff]
  %v1723 = vld [vmem:[#allocation3 + $0xb0] sm:$0xff]
  %v1724 = vld [vmem:[#allocation3 + $0xb8] sm:$0xff]
  %v1725 = vld [vmem:[#allocation3 + $0xc0] sm:$0xff]
  %v1726 = vld [vmem:[#allocation3 + $0xc8] sm:$0xff]
  %v1727 = vld [vmem:[#allocation3 + $0xd0] sm:$0xff]
  %v1728 = vld [vmem:[#allocation3 + $0xd8] sm:$0xff]
  %v1729 = vld [vmem:[#allocation3 + $0xe0] sm:$0xff]
  %v1730 = vld [vmem:[#allocation3 + $0xe8] sm:$0xff]
  %v1731 = vld [vmem:[#allocation3 + $0xf0] sm:$0xff]
  %v1732 = vld [vmem:[#allocation3 + $0xf8] sm:$0xff]
  %v1733 = vpack.c.bf16 %v1703, %v1701
  %v1734 = vpack.c.bf16 %v1704, %v1702
  %v1735 = vpack.c.bf16 %v1707, %v1705
  %v1736 = vpack.c.bf16 %v1708, %v1706
  %v1737 = vpack.c.bf16 %v1711, %v1709
  %v1738 = vpack.c.bf16 %v1712, %v1710
  %v1739 = vpack.c.bf16 %v1715, %v1713
  %v1740 = vpack.c.bf16 %v1716, %v1714
  %v1741 = vpack.c.bf16 %v1719, %v1717
  %v1742 = vpack.c.bf16 %v1720, %v1718
  %v1743 = vpack.c.bf16 %v1723, %v1721
  %v1744 = vpack.c.bf16 %v1724, %v1722
  %v1745 = vpack.c.bf16 %v1727, %v1725
  %v1746 = vpack.c.bf16 %v1728, %v1726
  %v1747 = vpack.c.bf16 %v1731, %v1729
  %v1748 = vpack.c.bf16 %v1732, %v1730
  %v1749 = vld [vmem:[%s3] sm:$0xf]
  %v1750 = vld [vmem:[%s3 + $0x4] sm:$0xf]
  %v1751 = vld [vmem:[%s3 + $0x8] sm:$0xf]
  %v1752 = vld [vmem:[%s3 + $0xc] sm:$0xf]
  %v1753 = vld [vmem:[%s3 + $0x10] sm:$0xf]
  %v1754 = vld [vmem:[%s3 + $0x14] sm:$0xf]
  %v1755 = vld [vmem:[%s3 + $0x18] sm:$0xf]
  %v1756 = vld [vmem:[%s3 + $0x1c] sm:$0xf]
  %v1757 = vld [vmem:[%s3 + $0x20] sm:$0xf]
  %v1758 = vld [vmem:[%s3 + $0x24] sm:$0xf]
  %v1759 = vld [vmem:[%s3 + $0x28] sm:$0xf]
  %v1760 = vld [vmem:[%s3 + $0x2c] sm:$0xf]
  %v1761 = vld [vmem:[%s3 + $0x30] sm:$0xf]
  %v1762 = vld [vmem:[%s3 + $0x34] sm:$0xf]
  %v1763 = vld [vmem:[%s3 + $0x38] sm:$0xf]
  %v1764 = vld [vmem:[%s3 + $0x3c] sm:$0xf]
  %v1765 = vld [vmem:[%s3 + $0x40] sm:$0xf]
  %v1766 = vld [vmem:[%s3 + $0x44] sm:$0xf]
  %v1767 = vld [vmem:[%s4] sm:$0x1]
  %v1769 = vlaneseq
  %v1770 = vshrl.u32 %v1769, 7
  %v1771 = vsub.s32 0, %v1770
  %v1772 = vrot.slane %v1767, %v1771
  %v1792 = vunpack.c.l.b16 %v1749
  %v1793 = vunpack.c.l.b16 %v1750
  %v1794 = vunpack.c.l.b16 %v1751
  %v1795 = vunpack.c.l.b16 %v1752
  %v1796 = vunpack.c.l.b16 %v1753
  %v1797 = vunpack.c.l.b16 %v1754
  %v1798 = vunpack.c.l.b16 %v1755
  %v1799 = vunpack.c.l.b16 %v1756
  %v1800 = vunpack.c.l.b16 %v1757
  %v1801 = vunpack.c.l.b16 %v1758
  %v1802 = vunpack.c.l.b16 %v1759
  %v1803 = vunpack.c.l.b16 %v1760
  %v1804 = vunpack.c.l.b16 %v1761
  %v1805 = vunpack.c.l.b16 %v1762
  %v1806 = vunpack.c.l.b16 %v1763
  %v1807 = vunpack.c.l.b16 %v1764
  %v1808 = vunpack.c.l.b16 %v1765
  %v1809 = vunpack.c.l.b16 %v1766
  %v1810 = vpack.c.b16 %v1793, %v1792
  %v1811 = vpack.c.b16 %v1795, %v1794
  %v1812 = vpack.c.b16 %v1797, %v1796
  %v1813 = vpack.c.b16 %v1799, %v1798
  %v1814 = vpack.c.b16 %v1801, %v1800
  %v1815 = vpack.c.b16 %v1803, %v1802
  %v1816 = vpack.c.b16 %v1805, %v1804
  %v1817 = vpack.c.b16 %v1807, %v1806
  %v1818 = vpack.c.b16 %v1809, %v1808
  %v1829 = vsel %vm39, %v1734, 0
  %v1832 = vsel %vm39, %v1736, 0
  %v1835 = vsel %vm39, %v1738, 0
  %v1838 = vsel %vm39, %v1740, 0
  %v1841 = vsel %vm39, %v1742, 0
  %v1844 = vsel %vm39, %v1744, 0
  %v1847 = vsel %vm39, %v1746, 0
  %v1850 = vsel %vm39, %v1748, 0
  %1852 = vmatprep.subr.bf16.mxu0 0
  %1853 = vmatpush1.bf16.msra.mxu0 %v1810
  %1854 = vmatprep.subr.bf16.mxu0 0
  %1855 = vmatpush1.bf16.msra.mxu0 %v1811
  %1856 = vmatprep.subr.bf16.mxu0 0
  %1857 = vmatpush1.bf16.msra.mxu0 %v1812
  %1858 = vmatprep.subr.bf16.mxu0 0
  %1859 = vmatpush1.bf16.msra.mxu0 %v1813
  %1860 = vmatprep.subr.bf16.mxu0 0
  %1861 = vmatpush1.bf16.msra.mxu0 %v1814
  %1862 = vmatprep.subr.bf16.mxu0 0
  %1863 = vmatpush1.bf16.msra.mxu0 %v1815
  %1864 = vmatprep.subr.bf16.mxu0 0
  %1865 = vmatpush1.bf16.msra.mxu0 %v1816
  %1866 = vmatprep.subr.bf16.mxu0 0
  %1867 = vmatpush1.bf16.msra.mxu0 %v1817
  %1868 = vmatprep.subr.bf16.mxu0 0
  %1869 = vmatpush1.bf16.msra.mxu0 %v1818
  %1870 = vmatprep.subr.bf16.mxu0 0
  %1871 = vmatpush1.bf16.msra.mxu0 0
  %1872 = vmatprep.subr.bf16.mxu0 0
  %1873 = vmatpush1.bf16.msra.mxu0 0
  %1874 = vmatprep.subr.bf16.mxu0 0
  %1875 = vmatpush1.bf16.msra.mxu0 0
  %1876 = vmatprep.subr.bf16.mxu0 0
  %1877 = vmatpush1.bf16.msra.mxu0 0
  %1878 = vmatprep.subr.bf16.mxu0 0
  %1879 = vmatpush1.bf16.msra.mxu0 0
  %1880 = vmatprep.subr.bf16.mxu0 0
  %1881 = vmatpush1.bf16.msra.mxu0 0
  %1882 = vmatprep.subr.bf16.mxu0 0
  %1883 = vmatpush1.bf16.msra.mxu0 0
  %1884 = vmatprep.mubr.bf16.mxu0 %v1829
  %1885 = vmatmul.mubr.bf16.gmra.mrb[0].mxu0 %v1733
  %v1886 = vpop.f32.mrb[0].mxu0
  %v1887 = vadd.f32 %v1772, %v1886
  %v1888 = vpop.f32.mrb[0].mxu0
  %v1889 = vpop.f32.mrb[0].mxu0
  %v1890 = vadd.f32 %v1772, %v1889
  %v1891 = vpop.f32.mrb[0].mxu0
  %1892 = vmatprep.mubr.bf16.mxu0 %v1832
  %1893 = vmatmul.mubr.bf16.gmra.mrb[0].mxu0 %v1735
  %v1894 = vpop.f32.mrb[0].mxu0
  %v1895 = vadd.f32 %v1772, %v1894
  %v1896 = vpop.f32.mrb[0].mxu0
  %v1897 = vpop.f32.mrb[0].mxu0
  %v1898 = vadd.f32 %v1772, %v1897
  %v1899 = vpop.f32.mrb[0].mxu0
  %1900 = vmatprep.mubr.bf16.mxu0 %v1835
  %1901 = vmatmul.mubr.bf16.gmra.mrb[0].mxu0 %v1737
  %v1902 = vpop.f32.mrb[0].mxu0
  %v1903 = vadd.f32 %v1772, %v1902
  %v1904 = vpop.f32.mrb[0].mxu0
  %v1905 = vpop.f32.mrb[0].mxu0
  %v1906 = vadd.f32 %v1772, %v1905
  %v1907 = vpop.f32.mrb[0].mxu0
  %1908 = vmatprep.mubr.bf16.mxu0 %v1838
  %1909 = vmatmul.mubr.bf16.gmra.mrb[0].mxu0 %v1739
  %v1910 = vpop.f32.mrb[0].mxu0
  %v1911 = vadd.f32 %v1772, %v1910
  %v1912 = vpop.f32.mrb[0].mxu0
  %v1913 = vpop.f32.mrb[0].mxu0
  %v1914 = vadd.f32 %v1772, %v1913
  %v1915 = vpop.f32.mrb[0].mxu0
  %1916 = vmatprep.mubr.bf16.mxu0 %v1841
  %1917 = vmatmul.mubr.bf16.gmra.mrb[0].mxu0 %v1741
  %v1918 = vpop.f32.mrb[0].mxu0
  %v1919 = vadd.f32 %v1772, %v1918
  %v1920 = vpop.f32.mrb[0].mxu0
  %v1921 = vpop.f32.mrb[0].mxu0
  %v1922 = vadd.f32 %v1772, %v1921
  %v1923 = vpop.f32.mrb[0].mxu0
  %1924 = vmatprep.mubr.bf16.mxu0 %v1844
  %1925 = vmatmul.mubr.bf16.gmra.mrb[0].mxu0 %v1743
  %v1926 = vpop.f32.mrb[0].mxu0
  %v1927 = vadd.f32 %v1772, %v1926
  %v1928 = vpop.f32.mrb[0].mxu0
  %v1929 = vpop.f32.mrb[0].mxu0
  %v1930 = vadd.f32 %v1772, %v1929
  %v1931 = vpop.f32.mrb[0].mxu0
  %1932 = vmatprep.mubr.bf16.mxu0 %v1847
  %1933 = vmatmul.mubr.bf16.gmra.mrb[0].mxu0 %v1745
  %v1934 = vpop.f32.mrb[0].mxu0
  %v1935 = vadd.f32 %v1772, %v1934
  %v1936 = vpop.f32.mrb[0].mxu0
  %v1937 = vpop.f32.mrb[0].mxu0
  %v1938 = vadd.f32 %v1772, %v1937
  %v1939 = vpop.f32.mrb[0].mxu0
  %1940 = vmatprep.mubr.bf16.mxu0 %v1850
  %1941 = vmatmul.mubr.bf16.gmra.mrb[0].mxu0 %v1747
  %v1942 = vpop.f32.mrb[0].mxu0
  %v1943 = vadd.f32 %v1772, %v1942
  %v1944 = vpop.f32.mrb[0].mxu0
  %v1945 = vpop.f32.mrb[0].mxu0
  %v1946 = vadd.f32 %v1772, %v1945
  %v1947 = vpop.f32.mrb[0].mxu0
  %1948 = vdwg.mxu0
  %v1949 = vmax.f32 %v1887, 0.0
  %v1950 = vmax.f32 %v1890, 0.0
  %v1951 = vmax.f32 %v1895, 0.0
  %v1952 = vmax.f32 %v1898, 0.0
  %v1953 = vmax.f32 %v1903, 0.0
  %v1954 = vmax.f32 %v1906, 0.0
  %v1955 = vmax.f32 %v1911, 0.0
  %v1956 = vmax.f32 %v1914, 0.0
  %v1957 = vmax.f32 %v1919, 0.0
  %v1958 = vmax.f32 %v1922, 0.0
  %v1959 = vmax.f32 %v1927, 0.0
  %v1960 = vmax.f32 %v1930, 0.0
  %v1961 = vmax.f32 %v1935, 0.0
  %v1962 = vmax.f32 %v1938, 0.0
  %v1963 = vmax.f32 %v1943, 0.0
  %v1964 = vmax.f32 %v1946, 0.0
  %v1965 = vpack.c.bf16 %v1949, %v1949
  %v1966 = vld [vmem:[%s5] sm:$0xf]
  %v1967 = vld [vmem:[%s5 + $0x4] sm:$0xf]
  %v1968 = vld [vmem:[%s5 + $0x8] sm:$0xf]
  %v1969 = vld [vmem:[%s5 + $0xc] sm:$0xf]
  %v1970 = vpack.c.bf16 %v1950, %v1950
  %s1971 = scalar_lea.vmem %s5, 16
  %v1972 = vld [vmem:[%s1971] sm:$0xf]
  %v1973 = vld [vmem:[%s1971 + $0x4] sm:$0xf]
  %v1974 = vld [vmem:[%s1971 + $0x8] sm:$0xf]
  %v1975 = vld [vmem:[%s1971 + $0xc] sm:$0xf]
  %v1980 = vunpack.c.l.b16 %v1972
  %v1981 = vunpack.c.l.b16 %v1973
  %v1982 = vunpack.c.l.b16 %v1974
  %v1983 = vunpack.c.l.b16 %v1975
  %v1984 = vpack.c.b16 %v1981, %v1980
  %v1985 = vpack.c.b16 %v1983, %v1982
  %vm1988 = vcmask 261120
  %v1990 = vsel %vm1988, %v1970, 0
  %1992 = vmatprep.subr.bf16.mxu0 0
  %1993 = vmatpush1.bf16.msra.mxu0 %v1984
  %1994 = vmatprep.subr.bf16.mxu0 0
  %1995 = vmatpush1.bf16.msra.mxu0 %v1985
  %1996 = vmatprep.subr.bf16.mxu0 0
  %1997 = vmatpush1.bf16.msra.mxu0 0
  %1998 = vmatprep.subr.bf16.mxu0 0
  %1999 = vmatpush1.bf16.msra.mxu0 0
  %2000 = vmatprep.subr.bf16.mxu0 0
  %2001 = vmatpush1.bf16.msra.mxu0 0
  %2002 = vmatprep.subr.bf16.mxu0 0
  %2003 = vmatpush1.bf16.msra.mxu0 0
  %2004 = vmatprep.subr.bf16.mxu0 0
  %2005 = vmatpush1.bf16.msra.mxu0 0
  %2006 = vmatprep.subr.bf16.mxu0 0
  %2007 = vmatpush1.bf16.msra.mxu0 0
  %2008 = vmatprep.subr.bf16.mxu0 0
  %2009 = vmatpush1.bf16.msra.mxu0 0
  %2010 = vmatprep.subr.bf16.mxu0 0
  %2011 = vmatpush1.bf16.msra.mxu0 0
  %2012 = vmatprep.subr.bf16.mxu0 0
  %2013 = vmatpush1.bf16.msra.mxu0 0
  %2014 = vmatprep.subr.bf16.mxu0 0
  %2015 = vmatpush1.bf16.msra.mxu0 0
  %2016 = vmatprep.subr.bf16.mxu0 0
  %2017 = vmatpush1.bf16.msra.mxu0 0
  %2018 = vmatprep.subr.bf16.mxu0 0
  %2019 = vmatpush1.bf16.msra.mxu0 0
  %2020 = vmatprep.subr.bf16.mxu0 0
  %2021 = vmatpush1.bf16.msra.mxu0 0
  %2022 = vmatprep.subr.bf16.mxu0 0
  %2023 = vmatpush1.bf16.msra.mxu0 0
  %2024 = vmatprep.mubr.bf16.mxu0 0
  %2025 = vmatmul.mubr.bf16.gmra.mrb[0].mxu0 %v1990
  %v2026 = vpop.f32.mrb[0].mxu0
  %v2027 = vadd.f32 0.0, %v2026
  %v2028 = vpop.f32.mrb[0].mxu0
  %v2029 = vpop.f32.mrb[0].mxu0
  %v2030 = vpop.f32.mrb[0].mxu0
  %2031 = vdwg.mxu0
  %v2036 = vunpack.c.l.b16 %v1966
  %v2037 = vunpack.c.l.b16 %v1967
  %v2038 = vunpack.c.l.b16 %v1968
  %v2039 = vunpack.c.l.b16 %v1969
  %v2040 = vpack.c.b16 %v2037, %v2036
  %v2041 = vpack.c.b16 %v2039, %v2038
  %v2045 = vsel %vm1988, %v1965, 0
  %2047 = vmatprep.subr.bf16.mxu0 0
  %2048 = vmatpush1.bf16.msra.mxu0 %v2040
  %2049 = vmatprep.subr.bf16.mxu0 0
  %2050 = vmatpush1.bf16.msra.mxu0 %v2041
  %2051 = vmatprep.subr.bf16.mxu0 0
  %2052 = vmatpush1.bf16.msra.mxu0 0
  %2053 = vmatprep.subr.bf16.mxu0 0
  %2054 = vmatpush1.bf16.msra.mxu0 0
  %2055 = vmatprep.subr.bf16.mxu0 0
  %2056 = vmatpush1.bf16.msra.mxu0 0
  %2057 = vmatprep.subr.bf16.mxu0 0
  %2058 = vmatpush1.bf16.msra.mxu0 0
  %2059 = vmatprep.subr.bf16.mxu0 0
  %2060 = vmatpush1.bf16.msra.mxu0 0
  %2061 = vmatprep.subr.bf16.mxu0 0
  %2062 = vmatpush1.bf16.msra.mxu0 0
  %2063 = vmatprep.subr.bf16.mxu0 0
  %2064 = vmatpush1.bf16.msra.mxu0 0
  %2065 = vmatprep.subr.bf16.mxu0 0
  %2066 = vmatpush1.bf16.msra.mxu0 0
  %2067 = vmatprep.subr.bf16.mxu0 0
  %2068 = vmatpush1.bf16.msra.mxu0 0
  %2069 = vmatprep.subr.bf16.mxu0 0
  %2070 = vmatpush1.bf16.msra.mxu0 0
  %2071 = vmatprep.subr.bf16.mxu0 0
  %2072 = vmatpush1.bf16.msra.mxu0 0
  %2073 = vmatprep.subr.bf16.mxu0 0
  %2074 = vmatpush1.bf16.msra.mxu0 0
  %2075 = vmatprep.subr.bf16.mxu0 0
  %2076 = vmatpush1.bf16.msra.mxu0 0
  %2077 = vmatprep.subr.bf16.mxu0 0
  %2078 = vmatpush1.bf16.msra.mxu0 0
  %2079 = vmatprep.mubr.bf16.mxu0 0
  %2080 = vmatmul.mubr.bf16.gmra.mrb[0].mxu0 %v2045
  %v2081 = vpop.f32.mrb[0].mxu0
  %v2082 = vadd.f32 %v2027, %v2081
  %v2083 = vpop.f32.mrb[0].mxu0
  %v2084 = vpop.f32.mrb[0].mxu0
  %v2085 = vpop.f32.mrb[0].mxu0
  %2086 = vdwg.mxu0
  %v2087 = vpack.c.bf16 %v1951, %v1951
  %s2088 = scalar_lea.vmem %s5, 32
  %v2089 = vld [vmem:[%s2088] sm:$0xf]
  %v2090 = vld [vmem:[%s2088 + $0x4] sm:$0xf]
  %v2091 = vld [vmem:[%s2088 + $0x8] sm:$0xf]
  %v2092 = vld [vmem:[%s2088 + $0xc] sm:$0xf]
  %v2097 = vunpack.c.l.b16 %v2089
  %v2098 = vunpack.c.l.b16 %v2090
  %v2099 = vunpack.c.l.b16 %v2091
  %v2100 = vunpack.c.l.b16 %v2092
  %v2101 = vpack.c.b16 %v2098, %v2097
  %v2102 = vpack.c.b16 %v2100, %v2099
  %v2106 = vsel %vm1988, %v2087, 0
  %2108 = vmatprep.subr.bf16.mxu0 0
  %2109 = vmatpush1.bf16.msra.mxu0 %v2101
  %2110 = vmatprep.subr.bf16.mxu0 0
  %2111 = vmatpush1.bf16.msra.mxu0 %v2102
  %2112 = vmatprep.subr.bf16.mxu0 0
  %2113 = vmatpush1.bf16.msra.mxu0 0
  %2114 = vmatprep.subr.bf16.mxu0 0
  %2115 = vmatpush1.bf16.msra.mxu0 0
  %2116 = vmatprep.subr.bf16.mxu0 0
  %2117 = vmatpush1.bf16.msra.mxu0 0
  %2118 = vmatprep.subr.bf16.mxu0 0
  %2119 = vmatpush1.bf16.msra.mxu0 0
  %2120 = vmatprep.subr.bf16.mxu0 0
  %2121 = vmatpush1.bf16.msra.mxu0 0
  %2122 = vmatprep.subr.bf16.mxu0 0
  %2123 = vmatpush1.bf16.msra.mxu0 0
  %2124 = vmatprep.subr.bf16.mxu0 0
  %2125 = vmatpush1.bf16.msra.mxu0 0
  %2126 = vmatprep.subr.bf16.mxu0 0
  %2127 = vmatpush1.bf16.msra.mxu0 0
  %2128 = vmatprep.subr.bf16.mxu0 0
  %2129 = vmatpush1.bf16.msra.mxu0 0
  %2130 = vmatprep.subr.bf16.mxu0 0
  %2131 = vmatpush1.bf16.msra.mxu0 0
  %2132 = vmatprep.subr.bf16.mxu0 0
  %2133 = vmatpush1.bf16.msra.mxu0 0
  %2134 = vmatprep.subr.bf16.mxu0 0
  %2135 = vmatpush1.bf16.msra.mxu0 0
  %2136 = vmatprep.subr.bf16.mxu0 0
  %2137 = vmatpush1.bf16.msra.mxu0 0
  %2138 = vmatprep.subr.bf16.mxu0 0
  %2139 = vmatpush1.bf16.msra.mxu0 0
  %2140 = vmatprep.mubr.bf16.mxu0 0
  %2141 = vmatmul.mubr.bf16.gmra.mrb[0].mxu0 %v2106
  %v2142 = vpop.f32.mrb[0].mxu0
  %v2143 = vadd.f32 0.0, %v2142
  %v2144 = vpop.f32.mrb[0].mxu0
  %v2145 = vpop.f32.mrb[0].mxu0
  %v2146 = vpop.f32.mrb[0].mxu0
  %2147 = vdwg.mxu0
  %v2148 = vadd.f32 %v2082, %v2143
  %v2149 = vpack.c.bf16 %v1952, %v1952
  %s2150 = scalar_lea.vmem %s5, 48
  %v2151 = vld [vmem:[%s2150] sm:$0xf]
  %v2152 = vld [vmem:[%s2150 + $0x4] sm:$0xf]
  %v2153 = vld [vmem:[%s2150 + $0x8] sm:$0xf]
  %v2154 = vld [vmem:[%s2150 + $0xc] sm:$0xf]
  %v2159 = vunpack.c.l.b16 %v2151
  %v2160 = vunpack.c.l.b16 %v2152
  %v2161 = vunpack.c.l.b16 %v2153
  %v2162 = vunpack.c.l.b16 %v2154
  %v2163 = vpack.c.b16 %v2160, %v2159
  %v2164 = vpack.c.b16 %v2162, %v2161
  %v2168 = vsel %vm1988, %v2149, 0
  %2170 = vmatprep.subr.bf16.mxu0 0
  %2171 = vmatpush1.bf16.msra.mxu0 %v2163
  %2172 = vmatprep.subr.bf16.mxu0 0
  %2173 = vmatpush1.bf16.msra.mxu0 %v2164
  %2174 = vmatprep.subr.bf16.mxu0 0
  %2175 = vmatpush1.bf16.msra.mxu0 0
  %2176 = vmatprep.subr.bf16.mxu0 0
  %2177 = vmatpush1.bf16.msra.mxu0 0
  %2178 = vmatprep.subr.bf16.mxu0 0
  %2179 = vmatpush1.bf16.msra.mxu0 0
  %2180 = vmatprep.subr.bf16.mxu0 0
  %2181 = vmatpush1.bf16.msra.mxu0 0
  %2182 = vmatprep.subr.bf16.mxu0 0
  %2183 = vmatpush1.bf16.msra.mxu0 0
  %2184 = vmatprep.subr.bf16.mxu0 0
  %2185 = vmatpush1.bf16.msra.mxu0 0
  %2186 = vmatprep.subr.bf16.mxu0 0
  %2187 = vmatpush1.bf16.msra.mxu0 0
  %2188 = vmatprep.subr.bf16.mxu0 0
  %2189 = vmatpush1.bf16.msra.mxu0 0
  %2190 = vmatprep.subr.bf16.mxu0 0
  %2191 = vmatpush1.bf16.msra.mxu0 0
  %2192 = vmatprep.subr.bf16.mxu0 0
  %2193 = vmatpush1.bf16.msra.mxu0 0
  %2194 = vmatprep.subr.bf16.mxu0 0
  %2195 = vmatpush1.bf16.msra.mxu0 0
  %2196 = vmatprep.subr.bf16.mxu0 0
  %2197 = vmatpush1.bf16.msra.mxu0 0
  %2198 = vmatprep.subr.bf16.mxu0 0
  %2199 = vmatpush1.bf16.msra.mxu0 0
  %2200 = vmatprep.subr.bf16.mxu0 0
  %2201 = vmatpush1.bf16.msra.mxu0 0
  %2202 = vmatprep.mubr.bf16.mxu0 0
  %2203 = vmatmul.mubr.bf16.gmra.mrb[0].mxu0 %v2168
  %v2204 = vpop.f32.mrb[0].mxu0
  %v2205 = vadd.f32 0.0, %v2204
  %v2206 = vpop.f32.mrb[0].mxu0
  %v2207 = vpop.f32.mrb[0].mxu0
  %v2208 = vpop.f32.mrb[0].mxu0
  %2209 = vdwg.mxu0
  %v2210 = vadd.f32 %v2148, %v2205
  %v2211 = vpack.c.bf16 %v1953, %v1953
  %s2212 = scalar_lea.vmem %s5, 64
  %v2213 = vld [vmem:[%s2212] sm:$0xf]
  %v2214 = vld [vmem:[%s2212 + $0x4] sm:$0xf]
  %v2215 = vld [vmem:[%s2212 + $0x8] sm:$0xf]
  %v2216 = vld [vmem:[%s2212 + $0xc] sm:$0xf]
  %v2221 = vunpack.c.l.b16 %v2213
  %v2222 = vunpack.c.l.b16 %v2214
  %v2223 = vunpack.c.l.b16 %v2215
  %v2224 = vunpack.c.l.b16 %v2216
  %v2225 = vpack.c.b16 %v2222, %v2221
  %v2226 = vpack.c.b16 %v2224, %v2223
  %v2230 = vsel %vm1988, %v2211, 0
  %2232 = vmatprep.subr.bf16.mxu0 0
  %2233 = vmatpush1.bf16.msra.mxu0 %v2225
  %2234 = vmatprep.subr.bf16.mxu0 0
  %2235 = vmatpush1.bf16.msra.mxu0 %v2226
  %2236 = vmatprep.subr.bf16.mxu0 0
  %2237 = vmatpush1.bf16.msra.mxu0 0
  %2238 = vmatprep.subr.bf16.mxu0 0
  %2239 = vmatpush1.bf16.msra.mxu0 0
  %2240 = vmatprep.subr.bf16.mxu0 0
  %2241 = vmatpush1.bf16.msra.mxu0 0
  %2242 = vmatprep.subr.bf16.mxu0 0
  %2243 = vmatpush1.bf16.msra.mxu0 0
  %2244 = vmatprep.subr.bf16.mxu0 0
  %2245 = vmatpush1.bf16.msra.mxu0 0
  %2246 = vmatprep.subr.bf16.mxu0 0
  %2247 = vmatpush1.bf16.msra.mxu0 0
  %2248 = vmatprep.subr.bf16.mxu0 0
  %2249 = vmatpush1.bf16.msra.mxu0 0
  %2250 = vmatprep.subr.bf16.mxu0 0
  %2251 = vmatpush1.bf16.msra.mxu0 0
  %2252 = vmatprep.subr.bf16.mxu0 0
  %2253 = vmatpush1.bf16.msra.mxu0 0
  %2254 = vmatprep.subr.bf16.mxu0 0
  %2255 = vmatpush1.bf16.msra.mxu0 0
  %2256 = vmatprep.subr.bf16.mxu0 0
  %2257 = vmatpush1.bf16.msra.mxu0 0
  %2258 = vmatprep.subr.bf16.mxu0 0
  %2259 = vmatpush1.bf16.msra.mxu0 0
  %2260 = vmatprep.subr.bf16.mxu0 0
  %2261 = vmatpush1.bf16.msra.mxu0 0
  %2262 = vmatprep.subr.bf16.mxu0 0
  %2263 = vmatpush1.bf16.msra.mxu0 0
  %2264 = vmatprep.mubr.bf16.mxu0 0
  %2265 = vmatmul.mubr.bf16.gmra.mrb[0].mxu0 %v2230
  %v2266 = vpop.f32.mrb[0].mxu0
  %v2267 = vadd.f32 0.0, %v2266
  %v2268 = vpop.f32.mrb[0].mxu0
  %v2269 = vpop.f32.mrb[0].mxu0
  %v2270 = vpop.f32.mrb[0].mxu0
  %2271 = vdwg.mxu0
  %v2272 = vadd.f32 %v2210, %v2267
  %v2273 = vpack.c.bf16 %v1954, %v1954
  %s2274 = scalar_lea.vmem %s5, 80
  %v2275 = vld [vmem:[%s2274] sm:$0xf]
  %v2276 = vld [vmem:[%s2274 + $0x4] sm:$0xf]
  %v2277 = vld [vmem:[%s2274 + $0x8] sm:$0xf]
  %v2278 = vld [vmem:[%s2274 + $0xc] sm:$0xf]
  %v2283 = vunpack.c.l.b16 %v2275
  %v2284 = vunpack.c.l.b16 %v2276
  %v2285 = vunpack.c.l.b16 %v2277
  %v2286 = vunpack.c.l.b16 %v2278
  %v2287 = vpack.c.b16 %v2284, %v2283
  %v2288 = vpack.c.b16 %v2286, %v2285
  %v2292 = vsel %vm1988, %v2273, 0
  %2294 = vmatprep.subr.bf16.mxu0 0
  %2295 = vmatpush1.bf16.msra.mxu0 %v2287
  %2296 = vmatprep.subr.bf16.mxu0 0
  %2297 = vmatpush1.bf16.msra.mxu0 %v2288
  %2298 = vmatprep.subr.bf16.mxu0 0
  %2299 = vmatpush1.bf16.msra.mxu0 0
  %2300 = vmatprep.subr.bf16.mxu0 0
  %2301 = vmatpush1.bf16.msra.mxu0 0
  %2302 = vmatprep.subr.bf16.mxu0 0
  %2303 = vmatpush1.bf16.msra.mxu0 0
  %2304 = vmatprep.subr.bf16.mxu0 0
  %2305 = vmatpush1.bf16.msra.mxu0 0
  %2306 = vmatprep.subr.bf16.mxu0 0
  %2307 = vmatpush1.bf16.msra.mxu0 0
  %2308 = vmatprep.subr.bf16.mxu0 0
  %2309 = vmatpush1.bf16.msra.mxu0 0
  %2310 = vmatprep.subr.bf16.mxu0 0
  %2311 = vmatpush1.bf16.msra.mxu0 0
  %2312 = vmatprep.subr.bf16.mxu0 0
  %2313 = vmatpush1.bf16.msra.mxu0 0
  %2314 = vmatprep.subr.bf16.mxu0 0
  %2315 = vmatpush1.bf16.msra.mxu0 0
  %2316 = vmatprep.subr.bf16.mxu0 0
  %2317 = vmatpush1.bf16.msra.mxu0 0
  %2318 = vmatprep.subr.bf16.mxu0 0
  %2319 = vmatpush1.bf16.msra.mxu0 0
  %2320 = vmatprep.subr.bf16.mxu0 0
  %2321 = vmatpush1.bf16.msra.mxu0 0
  %2322 = vmatprep.subr.bf16.mxu0 0
  %2323 = vmatpush1.bf16.msra.mxu0 0
  %2324 = vmatprep.subr.bf16.mxu0 0
  %2325 = vmatpush1.bf16.msra.mxu0 0
  %2326 = vmatprep.mubr.bf16.mxu0 0
  %2327 = vmatmul.mubr.bf16.gmra.mrb[0].mxu0 %v2292
  %v2328 = vpop.f32.mrb[0].mxu0
  %v2329 = vadd.f32 0.0, %v2328
  %v2330 = vpop.f32.mrb[0].mxu0
  %v2331 = vpop.f32.mrb[0].mxu0
  %v2332 = vpop.f32.mrb[0].mxu0
  %2333 = vdwg.mxu0
  %v2334 = vadd.f32 %v2272, %v2329
  %v2335 = vpack.c.bf16 %v1955, %v1955
  %s2336 = scalar_lea.vmem %s5, 96
  %v2337 = vld [vmem:[%s2336] sm:$0xf]
  %v2338 = vld [vmem:[%s2336 + $0x4] sm:$0xf]
  %v2339 = vld [vmem:[%s2336 + $0x8] sm:$0xf]
  %v2340 = vld [vmem:[%s2336 + $0xc] sm:$0xf]
  %v2345 = vunpack.c.l.b16 %v2337
  %v2346 = vunpack.c.l.b16 %v2338
  %v2347 = vunpack.c.l.b16 %v2339
  %v2348 = vunpack.c.l.b16 %v2340
  %v2349 = vpack.c.b16 %v2346, %v2345
  %v2350 = vpack.c.b16 %v2348, %v2347
  %v2354 = vsel %vm1988, %v2335, 0
  %2356 = vmatprep.subr.bf16.mxu0 0
  %2357 = vmatpush1.bf16.msra.mxu0 %v2349
  %2358 = vmatprep.subr.bf16.mxu0 0
  %2359 = vmatpush1.bf16.msra.mxu0 %v2350
  %2360 = vmatprep.subr.bf16.mxu0 0
  %2361 = vmatpush1.bf16.msra.mxu0 0
  %2362 = vmatprep.subr.bf16.mxu0 0
  %2363 = vmatpush1.bf16.msra.mxu0 0
  %2364 = vmatprep.subr.bf16.mxu0 0
  %2365 = vmatpush1.bf16.msra.mxu0 0
  %2366 = vmatprep.subr.bf16.mxu0 0
  %2367 = vmatpush1.bf16.msra.mxu0 0
  %2368 = vmatprep.subr.bf16.mxu0 0
  %2369 = vmatpush1.bf16.msra.mxu0 0
  %2370 = vmatprep.subr.bf16.mxu0 0
  %2371 = vmatpush1.bf16.msra.mxu0 0
  %2372 = vmatprep.subr.bf16.mxu0 0
  %2373 = vmatpush1.bf16.msra.mxu0 0
  %2374 = vmatprep.subr.bf16.mxu0 0
  %2375 = vmatpush1.bf16.msra.mxu0 0
  %2376 = vmatprep.subr.bf16.mxu0 0
  %2377 = vmatpush1.bf16.msra.mxu0 0
  %2378 = vmatprep.subr.bf16.mxu0 0
  %2379 = vmatpush1.bf16.msra.mxu0 0
  %2380 = vmatprep.subr.bf16.mxu0 0
  %2381 = vmatpush1.bf16.msra.mxu0 0
  %2382 = vmatprep.subr.bf16.mxu0 0
  %2383 = vmatpush1.bf16.msra.mxu0 0
  %2384 = vmatprep.subr.bf16.mxu0 0
  %2385 = vmatpush1.bf16.msra.mxu0 0
  %2386 = vmatprep.subr.bf16.mxu0 0
  %2387 = vmatpush1.bf16.msra.mxu0 0
  %2388 = vmatprep.mubr.bf16.mxu0 0
  %2389 = vmatmul.mubr.bf16.gmra.mrb[0].mxu0 %v2354
  %v2390 = vpop.f32.mrb[0].mxu0
  %v2391 = vadd.f32 0.0, %v2390
  %v2392 = vpop.f32.mrb[0].mxu0
  %v2393 = vpop.f32.mrb[0].mxu0
  %v2394 = vpop.f32.mrb[0].mxu0
  %2395 = vdwg.mxu0
  %v2396 = vadd.f32 %v2334, %v2391
  %v2397 = vpack.c.bf16 %v1956, %v1956
  %s2398 = scalar_lea.vmem %s5, 112
  %v2399 = vld [vmem:[%s2398] sm:$0xf]
  %v2400 = vld [vmem:[%s2398 + $0x4] sm:$0xf]
  %v2401 = vld [vmem:[%s2398 + $0x8] sm:$0xf]
  %v2402 = vld [vmem:[%s2398 + $0xc] sm:$0xf]
  %v2407 = vunpack.c.l.b16 %v2399
  %v2408 = vunpack.c.l.b16 %v2400
  %v2409 = vunpack.c.l.b16 %v2401
  %v2410 = vunpack.c.l.b16 %v2402
  %v2411 = vpack.c.b16 %v2408, %v2407
  %v2412 = vpack.c.b16 %v2410, %v2409
  %v2416 = vsel %vm1988, %v2397, 0
  %2418 = vmatprep.subr.bf16.mxu0 0
  %2419 = vmatpush1.bf16.msra.mxu0 %v2411
  %2420 = vmatprep.subr.bf16.mxu0 0
  %2421 = vmatpush1.bf16.msra.mxu0 %v2412
  %2422 = vmatprep.subr.bf16.mxu0 0
  %2423 = vmatpush1.bf16.msra.mxu0 0
  %2424 = vmatprep.subr.bf16.mxu0 0
  %2425 = vmatpush1.bf16.msra.mxu0 0
  %2426 = vmatprep.subr.bf16.mxu0 0
  %2427 = vmatpush1.bf16.msra.mxu0 0
  %2428 = vmatprep.subr.bf16.mxu0 0
  %2429 = vmatpush1.bf16.msra.mxu0 0
  %2430 = vmatprep.subr.bf16.mxu0 0
  %2431 = vmatpush1.bf16.msra.mxu0 0
  %2432 = vmatprep.subr.bf16.mxu0 0
  %2433 = vmatpush1.bf16.msra.mxu0 0
  %2434 = vmatprep.subr.bf16.mxu0 0
  %2435 = vmatpush1.bf16.msra.mxu0 0
  %2436 = vmatprep.subr.bf16.mxu0 0
  %2437 = vmatpush1.bf16.msra.mxu0 0
  %2438 = vmatprep.subr.bf16.mxu0 0
  %2439 = vmatpush1.bf16.msra.mxu0 0
  %2440 = vmatprep.subr.bf16.mxu0 0
  %2441 = vmatpush1.bf16.msra.mxu0 0
  %2442 = vmatprep.subr.bf16.mxu0 0
  %2443 = vmatpush1.bf16.msra.mxu0 0
  %2444 = vmatprep.subr.bf16.mxu0 0
  %2445 = vmatpush1.bf16.msra.mxu0 0
  %2446 = vmatprep.subr.bf16.mxu0 0
  %2447 = vmatpush1.bf16.msra.mxu0 0
  %2448 = vmatprep.subr.bf16.mxu0 0
  %2449 = vmatpush1.bf16.msra.mxu0 0
  %2450 = vmatprep.mubr.bf16.mxu0 0
  %2451 = vmatmul.mubr.bf16.gmra.mrb[0].mxu0 %v2416
  %v2452 = vpop.f32.mrb[0].mxu0
  %v2453 = vadd.f32 0.0, %v2452
  %v2454 = vpop.f32.mrb[0].mxu0
  %v2455 = vpop.f32.mrb[0].mxu0
  %v2456 = vpop.f32.mrb[0].mxu0
  %2457 = vdwg.mxu0
  %v2458 = vadd.f32 %v2396, %v2453
  %v2459 = vpack.c.bf16 %v1957, %v1957
  %s2460 = scalar_lea.vmem %s5, 128
  %v2461 = vld [vmem:[%s2460] sm:$0xf]
  %v2462 = vld [vmem:[%s2460 + $0x4] sm:$0xf]
  %v2463 = vld [vmem:[%s2460 + $0x8] sm:$0xf]
  %v2464 = vld [vmem:[%s2460 + $0xc] sm:$0xf]
  %v2469 = vunpack.c.l.b16 %v2461
  %v2470 = vunpack.c.l.b16 %v2462
  %v2471 = vunpack.c.l.b16 %v2463
  %v2472 = vunpack.c.l.b16 %v2464
  %v2473 = vpack.c.b16 %v2470, %v2469
  %v2474 = vpack.c.b16 %v2472, %v2471
  %v2478 = vsel %vm1988, %v2459, 0
  %2480 = vmatprep.subr.bf16.mxu0 0
  %2481 = vmatpush1.bf16.msra.mxu0 %v2473
  %2482 = vmatprep.subr.bf16.mxu0 0
  %2483 = vmatpush1.bf16.msra.mxu0 %v2474
  %2484 = vmatprep.subr.bf16.mxu0 0
  %2485 = vmatpush1.bf16.msra.mxu0 0
  %2486 = vmatprep.subr.bf16.mxu0 0
  %2487 = vmatpush1.bf16.msra.mxu0 0
  %2488 = vmatprep.subr.bf16.mxu0 0
  %2489 = vmatpush1.bf16.msra.mxu0 0
  %2490 = vmatprep.subr.bf16.mxu0 0
  %2491 = vmatpush1.bf16.msra.mxu0 0
  %2492 = vmatprep.subr.bf16.mxu0 0
  %2493 = vmatpush1.bf16.msra.mxu0 0
  %2494 = vmatprep.subr.bf16.mxu0 0
  %2495 = vmatpush1.bf16.msra.mxu0 0
  %2496 = vmatprep.subr.bf16.mxu0 0
  %2497 = vmatpush1.bf16.msra.mxu0 0
  %2498 = vmatprep.subr.bf16.mxu0 0
  %2499 = vmatpush1.bf16.msra.mxu0 0
  %2500 = vmatprep.subr.bf16.mxu0 0
  %2501 = vmatpush1.bf16.msra.mxu0 0
  %2502 = vmatprep.subr.bf16.mxu0 0
  %2503 = vmatpush1.bf16.msra.mxu0 0
  %2504 = vmatprep.subr.bf16.mxu0 0
  %2505 = vmatpush1.bf16.msra.mxu0 0
  %2506 = vmatprep.subr.bf16.mxu0 0
  %2507 = vmatpush1.bf16.msra.mxu0 0
  %2508 = vmatprep.subr.bf16.mxu0 0
  %2509 = vmatpush1.bf16.msra.mxu0 0
  %2510 = vmatprep.subr.bf16.mxu0 0
  %2511 = vmatpush1.bf16.msra.mxu0 0
  %2512 = vmatprep.mubr.bf16.mxu0 0
  %2513 = vmatmul.mubr.bf16.gmra.mrb[0].mxu0 %v2478
  %v2514 = vpop.f32.mrb[0].mxu0
  %v2515 = vadd.f32 0.0, %v2514
  %v2516 = vpop.f32.mrb[0].mxu0
  %v2517 = vpop.f32.mrb[0].mxu0
  %v2518 = vpop.f32.mrb[0].mxu0
  %2519 = vdwg.mxu0
  %v2520 = vadd.f32 %v2458, %v2515
  %v2521 = vpack.c.bf16 %v1958, %v1958
  %s2522 = scalar_lea.vmem %s5, 144
  %v2523 = vld [vmem:[%s2522] sm:$0xf]
  %v2524 = vld [vmem:[%s2522 + $0x4] sm:$0xf]
  %v2525 = vld [vmem:[%s2522 + $0x8] sm:$0xf]
  %v2526 = vld [vmem:[%s2522 + $0xc] sm:$0xf]
  %v2531 = vunpack.c.l.b16 %v2523
  %v2532 = vunpack.c.l.b16 %v2524
  %v2533 = vunpack.c.l.b16 %v2525
  %v2534 = vunpack.c.l.b16 %v2526
  %v2535 = vpack.c.b16 %v2532, %v2531
  %v2536 = vpack.c.b16 %v2534, %v2533
  %v2540 = vsel %vm1988, %v2521, 0
  %2542 = vmatprep.subr.bf16.mxu0 0
  %2543 = vmatpush1.bf16.msra.mxu0 %v2535
  %2544 = vmatprep.subr.bf16.mxu0 0
  %2545 = vmatpush1.bf16.msra.mxu0 %v2536
  %2546 = vmatprep.subr.bf16.mxu0 0
  %2547 = vmatpush1.bf16.msra.mxu0 0
  %2548 = vmatprep.subr.bf16.mxu0 0
  %2549 = vmatpush1.bf16.msra.mxu0 0
  %2550 = vmatprep.subr.bf16.mxu0 0
  %2551 = vmatpush1.bf16.msra.mxu0 0
  %2552 = vmatprep.subr.bf16.mxu0 0
  %2553 = vmatpush1.bf16.msra.mxu0 0
  %2554 = vmatprep.subr.bf16.mxu0 0
  %2555 = vmatpush1.bf16.msra.mxu0 0
  %2556 = vmatprep.subr.bf16.mxu0 0
  %2557 = vmatpush1.bf16.msra.mxu0 0
  %2558 = vmatprep.subr.bf16.mxu0 0
  %2559 = vmatpush1.bf16.msra.mxu0 0
  %2560 = vmatprep.subr.bf16.mxu0 0
  %2561 = vmatpush1.bf16.msra.mxu0 0
  %2562 = vmatprep.subr.bf16.mxu0 0
  %2563 = vmatpush1.bf16.msra.mxu0 0
  %2564 = vmatprep.subr.bf16.mxu0 0
  %2565 = vmatpush1.bf16.msra.mxu0 0
  %2566 = vmatprep.subr.bf16.mxu0 0
  %2567 = vmatpush1.bf16.msra.mxu0 0
  %2568 = vmatprep.subr.bf16.mxu0 0
  %2569 = vmatpush1.bf16.msra.mxu0 0
  %2570 = vmatprep.subr.bf16.mxu0 0
  %2571 = vmatpush1.bf16.msra.mxu0 0
  %2572 = vmatprep.subr.bf16.mxu0 0
  %2573 = vmatpush1.bf16.msra.mxu0 0
  %2574 = vmatprep.mubr.bf16.mxu0 0
  %2575 = vmatmul.mubr.bf16.gmra.mrb[0].mxu0 %v2540
  %v2576 = vpop.f32.mrb[0].mxu0
  %v2577 = vadd.f32 0.0, %v2576
  %v2578 = vpop.f32.mrb[0].mxu0
  %v2579 = vpop.f32.mrb[0].mxu0
  %v2580 = vpop.f32.mrb[0].mxu0
  %2581 = vdwg.mxu0
  %v2582 = vadd.f32 %v2520, %v2577
  %v2583 = vpack.c.bf16 %v1959, %v1959
  %s2584 = scalar_lea.vmem %s5, 160
  %v2585 = vld [vmem:[%s2584] sm:$0xf]
  %v2586 = vld [vmem:[%s2584 + $0x4] sm:$0xf]
  %v2587 = vld [vmem:[%s2584 + $0x8] sm:$0xf]
  %v2588 = vld [vmem:[%s2584 + $0xc] sm:$0xf]
  %v2593 = vunpack.c.l.b16 %v2585
  %v2594 = vunpack.c.l.b16 %v2586
  %v2595 = vunpack.c.l.b16 %v2587
  %v2596 = vunpack.c.l.b16 %v2588
  %v2597 = vpack.c.b16 %v2594, %v2593
  %v2598 = vpack.c.b16 %v2596, %v2595
  %v2602 = vsel %vm1988, %v2583, 0
  %2604 = vmatprep.subr.bf16.mxu0 0
  %2605 = vmatpush1.bf16.msra.mxu0 %v2597
  %2606 = vmatprep.subr.bf16.mxu0 0
  %2607 = vmatpush1.bf16.msra.mxu0 %v2598
  %2608 = vmatprep.subr.bf16.mxu0 0
  %2609 = vmatpush1.bf16.msra.mxu0 0
  %2610 = vmatprep.subr.bf16.mxu0 0
  %2611 = vmatpush1.bf16.msra.mxu0 0
  %2612 = vmatprep.subr.bf16.mxu0 0
  %2613 = vmatpush1.bf16.msra.mxu0 0
  %2614 = vmatprep.subr.bf16.mxu0 0
  %2615 = vmatpush1.bf16.msra.mxu0 0
  %2616 = vmatprep.subr.bf16.mxu0 0
  %2617 = vmatpush1.bf16.msra.mxu0 0
  %2618 = vmatprep.subr.bf16.mxu0 0
  %2619 = vmatpush1.bf16.msra.mxu0 0
  %2620 = vmatprep.subr.bf16.mxu0 0
  %2621 = vmatpush1.bf16.msra.mxu0 0
  %2622 = vmatprep.subr.bf16.mxu0 0
  %2623 = vmatpush1.bf16.msra.mxu0 0
  %2624 = vmatprep.subr.bf16.mxu0 0
  %2625 = vmatpush1.bf16.msra.mxu0 0
  %2626 = vmatprep.subr.bf16.mxu0 0
  %2627 = vmatpush1.bf16.msra.mxu0 0
  %2628 = vmatprep.subr.bf16.mxu0 0
  %2629 = vmatpush1.bf16.msra.mxu0 0
  %2630 = vmatprep.subr.bf16.mxu0 0
  %2631 = vmatpush1.bf16.msra.mxu0 0
  %2632 = vmatprep.subr.bf16.mxu0 0
  %2633 = vmatpush1.bf16.msra.mxu0 0
  %2634 = vmatprep.subr.bf16.mxu0 0
  %2635 = vmatpush1.bf16.msra.mxu0 0
  %2636 = vmatprep.mubr.bf16.mxu0 0
  %2637 = vmatmul.mubr.bf16.gmra.mrb[0].mxu0 %v2602
  %v2638 = vpop.f32.mrb[0].mxu0
  %v2639 = vadd.f32 0.0, %v2638
  %v2640 = vpop.f32.mrb[0].mxu0
  %v2641 = vpop.f32.mrb[0].mxu0
  %v2642 = vpop.f32.mrb[0].mxu0
  %2643 = vdwg.mxu0
  %v2644 = vadd.f32 %v2582, %v2639
  %v2645 = vpack.c.bf16 %v1960, %v1960
  %s2646 = scalar_lea.vmem %s5, 176
  %v2647 = vld [vmem:[%s2646] sm:$0xf]
  %v2648 = vld [vmem:[%s2646 + $0x4] sm:$0xf]
  %v2649 = vld [vmem:[%s2646 + $0x8] sm:$0xf]
  %v2650 = vld [vmem:[%s2646 + $0xc] sm:$0xf]
  %v2655 = vunpack.c.l.b16 %v2647
  %v2656 = vunpack.c.l.b16 %v2648
  %v2657 = vunpack.c.l.b16 %v2649
  %v2658 = vunpack.c.l.b16 %v2650
  %v2659 = vpack.c.b16 %v2656, %v2655
  %v2660 = vpack.c.b16 %v2658, %v2657
  %v2664 = vsel %vm1988, %v2645, 0
  %2666 = vmatprep.subr.bf16.mxu0 0
  %2667 = vmatpush1.bf16.msra.mxu0 %v2659
  %2668 = vmatprep.subr.bf16.mxu0 0
  %2669 = vmatpush1.bf16.msra.mxu0 %v2660
  %2670 = vmatprep.subr.bf16.mxu0 0
  %2671 = vmatpush1.bf16.msra.mxu0 0
  %2672 = vmatprep.subr.bf16.mxu0 0
  %2673 = vmatpush1.bf16.msra.mxu0 0
  %2674 = vmatprep.subr.bf16.mxu0 0
  %2675 = vmatpush1.bf16.msra.mxu0 0
  %2676 = vmatprep.subr.bf16.mxu0 0
  %2677 = vmatpush1.bf16.msra.mxu0 0
  %2678 = vmatprep.subr.bf16.mxu0 0
  %2679 = vmatpush1.bf16.msra.mxu0 0
  %2680 = vmatprep.subr.bf16.mxu0 0
  %2681 = vmatpush1.bf16.msra.mxu0 0
  %2682 = vmatprep.subr.bf16.mxu0 0
  %2683 = vmatpush1.bf16.msra.mxu0 0
  %2684 = vmatprep.subr.bf16.mxu0 0
  %2685 = vmatpush1.bf16.msra.mxu0 0
  %2686 = vmatprep.subr.bf16.mxu0 0
  %2687 = vmatpush1.bf16.msra.mxu0 0
  %2688 = vmatprep.subr.bf16.mxu0 0
  %2689 = vmatpush1.bf16.msra.mxu0 0
  %2690 = vmatprep.subr.bf16.mxu0 0
  %2691 = vmatpush1.bf16.msra.mxu0 0
  %2692 = vmatprep.subr.bf16.mxu0 0
  %2693 = vmatpush1.bf16.msra.mxu0 0
  %2694 = vmatprep.subr.bf16.mxu0 0
  %2695 = vmatpush1.bf16.msra.mxu0 0
  %2696 = vmatprep.subr.bf16.mxu0 0
  %2697 = vmatpush1.bf16.msra.mxu0 0
  %2698 = vmatprep.mubr.bf16.mxu0 0
  %2699 = vmatmul.mubr.bf16.gmra.mrb[0].mxu0 %v2664
  %v2700 = vpop.f32.mrb[0].mxu0
  %v2701 = vadd.f32 0.0, %v2700
  %v2702 = vpop.f32.mrb[0].mxu0
  %v2703 = vpop.f32.mrb[0].mxu0
  %v2704 = vpop.f32.mrb[0].mxu0
  %2705 = vdwg.mxu0
  %v2706 = vadd.f32 %v2644, %v2701
  %v2707 = vpack.c.bf16 %v1961, %v1961
  %s2708 = scalar_lea.vmem %s5, 192
  %v2709 = vld [vmem:[%s2708] sm:$0xf]
  %v2710 = vld [vmem:[%s2708 + $0x4] sm:$0xf]
  %v2711 = vld [vmem:[%s2708 + $0x8] sm:$0xf]
  %v2712 = vld [vmem:[%s2708 + $0xc] sm:$0xf]
  %v2717 = vunpack.c.l.b16 %v2709
  %v2718 = vunpack.c.l.b16 %v2710
  %v2719 = vunpack.c.l.b16 %v2711
  %v2720 = vunpack.c.l.b16 %v2712
  %v2721 = vpack.c.b16 %v2718, %v2717
  %v2722 = vpack.c.b16 %v2720, %v2719
  %v2726 = vsel %vm1988, %v2707, 0
  %2728 = vmatprep.subr.bf16.mxu0 0
  %2729 = vmatpush1.bf16.msra.mxu0 %v2721
  %2730 = vmatprep.subr.bf16.mxu0 0
  %2731 = vmatpush1.bf16.msra.mxu0 %v2722
  %2732 = vmatprep.subr.bf16.mxu0 0
  %2733 = vmatpush1.bf16.msra.mxu0 0
  %2734 = vmatprep.subr.bf16.mxu0 0
  %2735 = vmatpush1.bf16.msra.mxu0 0
  %2736 = vmatprep.subr.bf16.mxu0 0
  %2737 = vmatpush1.bf16.msra.mxu0 0
  %2738 = vmatprep.subr.bf16.mxu0 0
  %2739 = vmatpush1.bf16.msra.mxu0 0
  %2740 = vmatprep.subr.bf16.mxu0 0
  %2741 = vmatpush1.bf16.msra.mxu0 0
  %2742 = vmatprep.subr.bf16.mxu0 0
  %2743 = vmatpush1.bf16.msra.mxu0 0
  %2744 = vmatprep.subr.bf16.mxu0 0
  %2745 = vmatpush1.bf16.msra.mxu0 0
  %2746 = vmatprep.subr.bf16.mxu0 0
  %2747 = vmatpush1.bf16.msra.mxu0 0
  %2748 = vmatprep.subr.bf16.mxu0 0
  %2749 = vmatpush1.bf16.msra.mxu0 0
  %2750 = vmatprep.subr.bf16.mxu0 0
  %2751 = vmatpush1.bf16.msra.mxu0 0
  %2752 = vmatprep.subr.bf16.mxu0 0
  %2753 = vmatpush1.bf16.msra.mxu0 0
  %2754 = vmatprep.subr.bf16.mxu0 0
  %2755 = vmatpush1.bf16.msra.mxu0 0
  %2756 = vmatprep.subr.bf16.mxu0 0
  %2757 = vmatpush1.bf16.msra.mxu0 0
  %2758 = vmatprep.subr.bf16.mxu0 0
  %2759 = vmatpush1.bf16.msra.mxu0 0
  %2760 = vmatprep.mubr.bf16.mxu0 0
  %2761 = vmatmul.mubr.bf16.gmra.mrb[0].mxu0 %v2726
  %v2762 = vpop.f32.mrb[0].mxu0
  %v2763 = vadd.f32 0.0, %v2762
  %v2764 = vpop.f32.mrb[0].mxu0
  %v2765 = vpop.f32.mrb[0].mxu0
  %v2766 = vpop.f32.mrb[0].mxu0
  %2767 = vdwg.mxu0
  %v2768 = vadd.f32 %v2706, %v2763
  %v2769 = vpack.c.bf16 %v1962, %v1962
  %s2770 = scalar_lea.vmem %s5, 208
  %v2771 = vld [vmem:[%s2770] sm:$0xf]
  %v2772 = vld [vmem:[%s2770 + $0x4] sm:$0xf]
  %v2773 = vld [vmem:[%s2770 + $0x8] sm:$0xf]
  %v2774 = vld [vmem:[%s2770 + $0xc] sm:$0xf]
  %v2779 = vunpack.c.l.b16 %v2771
  %v2780 = vunpack.c.l.b16 %v2772
  %v2781 = vunpack.c.l.b16 %v2773
  %v2782 = vunpack.c.l.b16 %v2774
  %v2783 = vpack.c.b16 %v2780, %v2779
  %v2784 = vpack.c.b16 %v2782, %v2781
  %v2788 = vsel %vm1988, %v2769, 0
  %2790 = vmatprep.subr.bf16.mxu0 0
  %2791 = vmatpush1.bf16.msra.mxu0 %v2783
  %2792 = vmatprep.subr.bf16.mxu0 0
  %2793 = vmatpush1.bf16.msra.mxu0 %v2784
  %2794 = vmatprep.subr.bf16.mxu0 0
  %2795 = vmatpush1.bf16.msra.mxu0 0
  %2796 = vmatprep.subr.bf16.mxu0 0
  %2797 = vmatpush1.bf16.msra.mxu0 0
  %2798 = vmatprep.subr.bf16.mxu0 0
  %2799 = vmatpush1.bf16.msra.mxu0 0
  %2800 = vmatprep.subr.bf16.mxu0 0
  %2801 = vmatpush1.bf16.msra.mxu0 0
  %2802 = vmatprep.subr.bf16.mxu0 0
  %2803 = vmatpush1.bf16.msra.mxu0 0
  %2804 = vmatprep.subr.bf16.mxu0 0
  %2805 = vmatpush1.bf16.msra.mxu0 0
  %2806 = vmatprep.subr.bf16.mxu0 0
  %2807 = vmatpush1.bf16.msra.mxu0 0
  %2808 = vmatprep.subr.bf16.mxu0 0
  %2809 = vmatpush1.bf16.msra.mxu0 0
  %2810 = vmatprep.subr.bf16.mxu0 0
  %2811 = vmatpush1.bf16.msra.mxu0 0
  %2812 = vmatprep.subr.bf16.mxu0 0
  %2813 = vmatpush1.bf16.msra.mxu0 0
  %2814 = vmatprep.subr.bf16.mxu0 0
  %2815 = vmatpush1.bf16.msra.mxu0 0
  %2816 = vmatprep.subr.bf16.mxu0 0
  %2817 = vmatpush1.bf16.msra.mxu0 0
  %2818 = vmatprep.subr.bf16.mxu0 0
  %2819 = vmatpush1.bf16.msra.mxu0 0
  %2820 = vmatprep.subr.bf16.mxu0 0
  %2821 = vmatpush1.bf16.msra.mxu0 0
  %2822 = vmatprep.mubr.bf16.mxu0 0
  %2823 = vmatmul.mubr.bf16.gmra.mrb[0].mxu0 %v2788
  %v2824 = vpop.f32.mrb[0].mxu0
  %v2825 = vadd.f32 0.0, %v2824
  %v2826 = vpop.f32.mrb[0].mxu0
  %v2827 = vpop.f32.mrb[0].mxu0
  %v2828 = vpop.f32.mrb[0].mxu0
  %2829 = vdwg.mxu0
  %v2830 = vadd.f32 %v2768, %v2825
  %v2831 = vpack.c.bf16 %v1963, %v1963
  %s2832 = scalar_lea.vmem %s5, 224
  %v2833 = vld [vmem:[%s2832] sm:$0xf]
  %v2834 = vld [vmem:[%s2832 + $0x4] sm:$0xf]
  %v2835 = vld [vmem:[%s2832 + $0x8] sm:$0xf]
  %v2836 = vld [vmem:[%s2832 + $0xc] sm:$0xf]
  %v2841 = vunpack.c.l.b16 %v2833
  %v2842 = vunpack.c.l.b16 %v2834
  %v2843 = vunpack.c.l.b16 %v2835
  %v2844 = vunpack.c.l.b16 %v2836
  %v2845 = vpack.c.b16 %v2842, %v2841
  %v2846 = vpack.c.b16 %v2844, %v2843
  %v2850 = vsel %vm1988, %v2831, 0
  %2852 = vmatprep.subr.bf16.mxu0 0
  %2853 = vmatpush1.bf16.msra.mxu0 %v2845
  %2854 = vmatprep.subr.bf16.mxu0 0
  %2855 = vmatpush1.bf16.msra.mxu0 %v2846
  %2856 = vmatprep.subr.bf16.mxu0 0
  %2857 = vmatpush1.bf16.msra.mxu0 0
  %2858 = vmatprep.subr.bf16.mxu0 0
  %2859 = vmatpush1.bf16.msra.mxu0 0
  %2860 = vmatprep.subr.bf16.mxu0 0
  %2861 = vmatpush1.bf16.msra.mxu0 0
  %2862 = vmatprep.subr.bf16.mxu0 0
  %2863 = vmatpush1.bf16.msra.mxu0 0
  %2864 = vmatprep.subr.bf16.mxu0 0
  %2865 = vmatpush1.bf16.msra.mxu0 0
  %2866 = vmatprep.subr.bf16.mxu0 0
  %2867 = vmatpush1.bf16.msra.mxu0 0
  %2868 = vmatprep.subr.bf16.mxu0 0
  %2869 = vmatpush1.bf16.msra.mxu0 0
  %2870 = vmatprep.subr.bf16.mxu0 0
  %2871 = vmatpush1.bf16.msra.mxu0 0
  %2872 = vmatprep.subr.bf16.mxu0 0
  %2873 = vmatpush1.bf16.msra.mxu0 0
  %2874 = vmatprep.subr.bf16.mxu0 0
  %2875 = vmatpush1.bf16.msra.mxu0 0
  %2876 = vmatprep.subr.bf16.mxu0 0
  %2877 = vmatpush1.bf16.msra.mxu0 0
  %2878 = vmatprep.subr.bf16.mxu0 0
  %2879 = vmatpush1.bf16.msra.mxu0 0
  %2880 = vmatprep.subr.bf16.mxu0 0
  %2881 = vmatpush1.bf16.msra.mxu0 0
  %2882 = vmatprep.subr.bf16.mxu0 0
  %2883 = vmatpush1.bf16.msra.mxu0 0
  %2884 = vmatprep.mubr.bf16.mxu0 0
  %2885 = vmatmul.mubr.bf16.gmra.mrb[0].mxu0 %v2850
  %v2886 = vpop.f32.mrb[0].mxu0
  %v2887 = vadd.f32 0.0, %v2886
  %v2888 = vpop.f32.mrb[0].mxu0
  %v2889 = vpop.f32.mrb[0].mxu0
  %v2890 = vpop.f32.mrb[0].mxu0
  %2891 = vdwg.mxu0
  %v2892 = vadd.f32 %v2830, %v2887
  %v2893 = vpack.c.bf16 %v1964, %v1964
  %s2894 = scalar_lea.vmem %s5, 240
  %v2895 = vld [vmem:[%s2894] sm:$0xf]
  %v2896 = vld [vmem:[%s2894 + $0x4] sm:$0xf]
  %v2897 = vld [vmem:[%s2894 + $0x8] sm:$0xf]
  %v2898 = vld [vmem:[%s2894 + $0xc] sm:$0xf]
  %v2903 = vunpack.c.l.b16 %v2895
  %v2904 = vunpack.c.l.b16 %v2896
  %v2905 = vunpack.c.l.b16 %v2897
  %v2906 = vunpack.c.l.b16 %v2898
  %v2907 = vpack.c.b16 %v2904, %v2903
  %v2908 = vpack.c.b16 %v2906, %v2905
  %v2912 = vsel %vm1988, %v2893, 0
  %2914 = vmatprep.subr.bf16.mxu0 0
  %2915 = vmatpush1.bf16.msra.mxu0 %v2907
  %2916 = vmatprep.subr.bf16.mxu0 0
  %2917 = vmatpush1.bf16.msra.mxu0 %v2908
  %2918 = vmatprep.subr.bf16.mxu0 0
  %2919 = vmatpush1.bf16.msra.mxu0 0
  %2920 = vmatprep.subr.bf16.mxu0 0
  %2921 = vmatpush1.bf16.msra.mxu0 0
  %2922 = vmatprep.subr.bf16.mxu0 0
  %2923 = vmatpush1.bf16.msra.mxu0 0
  %2924 = vmatprep.subr.bf16.mxu0 0
  %2925 = vmatpush1.bf16.msra.mxu0 0
  %2926 = vmatprep.subr.bf16.mxu0 0
  %2927 = vmatpush1.bf16.msra.mxu0 0
  %2928 = vmatprep.subr.bf16.mxu0 0
  %2929 = vmatpush1.bf16.msra.mxu0 0
  %2930 = vmatprep.subr.bf16.mxu0 0
  %2931 = vmatpush1.bf16.msra.mxu0 0
  %2932 = vmatprep.subr.bf16.mxu0 0
  %2933 = vmatpush1.bf16.msra.mxu0 0
  %2934 = vmatprep.subr.bf16.mxu0 0
  %2935 = vmatpush1.bf16.msra.mxu0 0
  %2936 = vmatprep.subr.bf16.mxu0 0
  %2937 = vmatpush1.bf16.msra.mxu0 0
  %2938 = vmatprep.subr.bf16.mxu0 0
  %2939 = vmatpush1.bf16.msra.mxu0 0
  %2940 = vmatprep.subr.bf16.mxu0 0
  %2941 = vmatpush1.bf16.msra.mxu0 0
  %2942 = vmatprep.subr.bf16.mxu0 0
  %2943 = vmatpush1.bf16.msra.mxu0 0
  %2944 = vmatprep.subr.bf16.mxu0 0
  %2945 = vmatpush1.bf16.msra.mxu0 0
  %2946 = vmatprep.mubr.bf16.mxu0 0
  %2947 = vmatmul.mubr.bf16.gmra.mrb[0].mxu0 %v2912
  %v2948 = vpop.f32.mrb[0].mxu0
  %v2949 = vadd.f32 0.0, %v2948
  %v2950 = vpop.f32.mrb[0].mxu0
  %v2951 = vpop.f32.mrb[0].mxu0
  %v2952 = vpop.f32.mrb[0].mxu0
  %2953 = vdwg.mxu0
  %v2954 = vadd.f32 %v2892, %v2949
  %v2955 = vld [vmem:[%s6] sm:$0x1]
  %v2957 = vlaneseq
  %v2958 = vshrl.u32 %v2957, 7
  %v2959 = vsub.s32 0, %v2958
  %v2960 = vrot.slane %v2955, %v2959
  %v2962 = vadd.f32 %v2954, %v2960
  %v2963 = vmul.f32 %v2962, %v2962
  %vm2964 = vcmask 523264
  %v2965 = vsel %vm2964, %v2963, 0.0
  %2966 = vadd.xlane.f32.xlu0 %v2965
  %v2967 = vpop.xlane.xlu0 %2966
  %v2968 = vmax.f32 %v2967, 1e-24
  %v2969 = vrsqrt.pop %v2968
  %v2970 = vmul.f32 %v2962, %v2969
  %v2971 = vpack.c.bf16 %v2970, %v2970
  %v2972 = vld [vmem:[%s7] sm:$0xf]
  %v2973 = vld [vmem:[%s7 + $0x4] sm:$0xf]
  %v2974 = vld [vmem:[%s7 + $0x8] sm:$0xf]
  %v2975 = vld [vmem:[%s7 + $0xc] sm:$0xf]
  %v2976 = vld [vmem:[%s7 + $0x10] sm:$0xf]
  %v2977 = vld [vmem:[%s7 + $0x14] sm:$0xf]
  %v2978 = vld [vmem:[%s7 + $0x18] sm:$0xf]
  %v2979 = vld [vmem:[%s7 + $0x1c] sm:$0xf]
  %v2980 = vld [vmem:[%s8] sm:$0x1]
  %v2982 = vlaneseq
  %v2983 = vshrl.u32 %v2982, 7
  %v2984 = vsub.s32 0, %v2983
  %v2985 = vrot.slane %v2980, %v2984
  %v2995 = vunpack.c.l.b16 %v2972
  %v2996 = vunpack.c.l.b16 %v2973
  %v2997 = vunpack.c.l.b16 %v2974
  %v2998 = vunpack.c.l.b16 %v2975
  %v2999 = vunpack.c.l.b16 %v2976
  %v3000 = vunpack.c.l.b16 %v2977
  %v3001 = vunpack.c.l.b16 %v2978
  %v3002 = vunpack.c.l.b16 %v2979
  %v3003 = vpack.c.b16 %v2996, %v2995
  %v3004 = vpack.c.b16 %v2998, %v2997
  %v3005 = vpack.c.b16 %v3000, %v2999
  %v3006 = vpack.c.b16 %v3002, %v3001
  %v3012 = vsel %vm2964, %v2971, 0
  %3014 = vmatprep.subr.bf16.mxu0 0
  %3015 = vmatpush1.bf16.msra.mxu0 %v3003
  %3016 = vmatprep.subr.bf16.mxu0 0
  %3017 = vmatpush1.bf16.msra.mxu0 %v3004
  %3018 = vmatprep.subr.bf16.mxu0 0
  %3019 = vmatpush1.bf16.msra.mxu0 %v3005
  %3020 = vmatprep.subr.bf16.mxu0 0
  %3021 = vmatpush1.bf16.msra.mxu0 %v3006
  %3022 = vmatprep.subr.bf16.mxu0 0
  %3023 = vmatpush1.bf16.msra.mxu0 0
  %3024 = vmatprep.subr.bf16.mxu0 0
  %3025 = vmatpush1.bf16.msra.mxu0 0
  %3026 = vmatprep.subr.bf16.mxu0 0
  %3027 = vmatpush1.bf16.msra.mxu0 0
  %3028 = vmatprep.subr.bf16.mxu0 0
  %3029 = vmatpush1.bf16.msra.mxu0 0
  %3030 = vmatprep.subr.bf16.mxu0 0
  %3031 = vmatpush1.bf16.msra.mxu0 0
  %3032 = vmatprep.subr.bf16.mxu0 0
  %3033 = vmatpush1.bf16.msra.mxu0 0
  %3034 = vmatprep.subr.bf16.mxu0 0
  %3035 = vmatpush1.bf16.msra.mxu0 0
  %3036 = vmatprep.subr.bf16.mxu0 0
  %3037 = vmatpush1.bf16.msra.mxu0 0
  %3038 = vmatprep.subr.bf16.mxu0 0
  %3039 = vmatpush1.bf16.msra.mxu0 0
  %3040 = vmatprep.subr.bf16.mxu0 0
  %3041 = vmatpush1.bf16.msra.mxu0 0
  %3042 = vmatprep.subr.bf16.mxu0 0
  %3043 = vmatpush1.bf16.msra.mxu0 0
  %3044 = vmatprep.subr.bf16.mxu0 0
  %3045 = vmatpush1.bf16.msra.mxu0 0
  %3046 = vmatprep.mubr.bf16.mxu0 0
  %3047 = vmatmul.mubr.bf16.gmra.mrb[0].mxu0 %v3012
  %v3048 = vpop.f32.mrb[0].mxu0
  %v3049 = vadd.f32 %v2985, %v3048
  %v3050 = vpop.f32.mrb[0].mxu0
  %v3051 = vpop.f32.mrb[0].mxu0
  %v3052 = vpop.f32.mrb[0].mxu0
  %3053 = vdwg.mxu0
  %v3054 = vmax.f32 %v3049, 0.0
  %v3055 = vpack.c.bf16 %v3054, %v3054
  %v3056 = vld [vmem:[%s9] sm:$0xf]
  %v3057 = vld [vmem:[%s9 + $0x4] sm:$0xf]
  %v3058 = vld [vmem:[%s9 + $0x8] sm:$0xf]
  %v3059 = vld [vmem:[%s9 + $0xc] sm:$0xf]
  %v3060 = vld [vmem:[%s9 + $0x10] sm:$0xf]
  %v3061 = vld [vmem:[%s9 + $0x14] sm:$0xf]
  %v3062 = vld [vmem:[%s9 + $0x18] sm:$0xf]
  %v3063 = vld [vmem:[%s9 + $0x1c] sm:$0xf]
  %v3064 = vld [vmem:[%s9 + $0x20] sm:$0xf]
  %v3065 = vld [vmem:[%s9 + $0x24] sm:$0xf]
  %v3066 = vld [vmem:[%s9 + $0x28] sm:$0xf]
  %v3067 = vld [vmem:[%s9 + $0x2c] sm:$0xf]
  %v3068 = vld [vmem:[%s9 + $0x30] sm:$0xf]
  %v3069 = vld [vmem:[%s9 + $0x34] sm:$0xf]
  %v3070 = vld [vmem:[%s9 + $0x38] sm:$0xf]
  %v3071 = vld [vmem:[%s9 + $0x3c] sm:$0xf]
  %v3072 = vld [vmem:[%s10] sm:$0x1]
  %v3074 = vlaneseq
  %v3075 = vshrl.u32 %v3074, 7
  %v3076 = vsub.s32 0, %v3075
  %v3077 = vrot.slane %v3072, %v3076
  %v3095 = vunpack.c.l.b16 %v3056
  %v3096 = vunpack.c.l.b16 %v3057
  %v3097 = vunpack.c.l.b16 %v3058
  %v3098 = vunpack.c.l.b16 %v3059
  %v3099 = vunpack.c.l.b16 %v3060
  %v3100 = vunpack.c.l.b16 %v3061
  %v3101 = vunpack.c.l.b16 %v3062
  %v3102 = vunpack.c.l.b16 %v3063
  %v3103 = vunpack.c.l.b16 %v3064
  %v3104 = vunpack.c.l.b16 %v3065
  %v3105 = vunpack.c.l.b16 %v3066
  %v3106 = vunpack.c.l.b16 %v3067
  %v3107 = vunpack.c.l.b16 %v3068
  %v3108 = vunpack.c.l.b16 %v3069
  %v3109 = vunpack.c.l.b16 %v3070
  %v3110 = vunpack.c.l.b16 %v3071
  %v3111 = vpack.c.b16 %v3096, %v3095
  %v3112 = vpack.c.b16 %v3098, %v3097
  %v3113 = vpack.c.b16 %v3100, %v3099
  %v3114 = vpack.c.b16 %v3102, %v3101
  %v3115 = vpack.c.b16 %v3104, %v3103
  %v3116 = vpack.c.b16 %v3106, %v3105
  %v3117 = vpack.c.b16 %v3108, %v3107
  %v3118 = vpack.c.b16 %v3110, %v3109
  %3127 = vmatprep.subr.bf16.mxu0 0
  %3128 = vmatpush1.bf16.msra.mxu0 %v3111
  %3129 = vmatprep.subr.bf16.mxu0 0
  %3130 = vmatpush1.bf16.msra.mxu0 %v3112
  %3131 = vmatprep.subr.bf16.mxu0 0
  %3132 = vmatpush1.bf16.msra.mxu0 %v3113
  %3133 = vmatprep.subr.bf16.mxu0 0
  %3134 = vmatpush1.bf16.msra.mxu0 %v3114
  %3135 = vmatprep.subr.bf16.mxu0 0
  %3136 = vmatpush1.bf16.msra.mxu0 %v3115
  %3137 = vmatprep.subr.bf16.mxu0 0
  %3138 = vmatpush1.bf16.msra.mxu0 %v3116
  %3139 = vmatprep.subr.bf16.mxu0 0
  %3140 = vmatpush1.bf16.msra.mxu0 %v3117
  %3141 = vmatprep.subr.bf16.mxu0 0
  %3142 = vmatpush1.bf16.msra.mxu0 %v3118
  %3143 = vmatprep.subr.bf16.mxu0 0
  %3144 = vmatpush1.bf16.msra.mxu0 0
  %3145 = vmatprep.subr.bf16.mxu0 0
  %3146 = vmatpush1.bf16.msra.mxu0 0
  %3147 = vmatprep.subr.bf16.mxu0 0
  %3148 = vmatpush1.bf16.msra.mxu0 0
  %3149 = vmatprep.subr.bf16.mxu0 0
  %3150 = vmatpush1.bf16.msra.mxu0 0
  %3151 = vmatprep.subr.bf16.mxu0 0
  %3152 = vmatpush1.bf16.msra.mxu0 0
  %3153 = vmatprep.subr.bf16.mxu0 0
  %3154 = vmatpush1.bf16.msra.mxu0 0
  %3155 = vmatprep.subr.bf16.mxu0 0
  %3156 = vmatpush1.bf16.msra.mxu0 0
  %3157 = vmatprep.subr.bf16.mxu0 0
  %3158 = vmatpush1.bf16.msra.mxu0 0
  %3159 = vmatprep.mubr.bf16.mxu0 0
  %3160 = vmatmul.mubr.bf16.gmra.mrb[0].mxu0 %v3055
  %v3161 = vpop.f32.mrb[0].mxu0
  %v3162 = vadd.f32 %v3077, %v3161
  %v3163 = vpop.f32.mrb[0].mxu0
  %v3164 = vpop.f32.mrb[0].mxu0
  %v3165 = vpop.f32.mrb[0].mxu0
  %3166 = vdwg.mxu0
  %3167 = vst [vmem:[%s11] sm:$0xff] %v3162
  // Predicated region
  $region46: #{_lambda_.1} parent=0 // pred_check
    _
  $region47: #{_lambda_.1} parent=0 // pred_check_branch
    %3169 = sbr.rel (0) target = $region49
  $region48: #{_lambda_.1} parent=0 // pred_region
    _
  $region49: #{_lambda_.1} parent=0 // pred_fallthru
    _
  // Predicated region
  $region50: #{_lambda_.1} parent=0 // pred_check
    _
  $region51: #{_lambda_.1} parent=0 // pred_check_branch
    %3171 = sbr.rel (0) target = $region53
  $region52: #{_lambda_.1} parent=0 // pred_region
    _
  $region53: #{_lambda_.1} parent=0 // pred_fallthru
    _

</llo_original>
